<compile_context>
chip_gen: v6e
topology: v6e:2x2x1
jax: 0.10.0
libtpu: 0.0.40
codegen_flags: <defaults>
</compile_context>

<pallas_src>
import functools

import jax
import jax.numpy as jnp
import numpy as np
from jax.experimental import pallas as pl
from jax.experimental.pallas import tpu as pltpu

LRELU_SLOPE = 0.2
BN_EPS = 1e-5

_VMEM_LIMIT_BYTES = 48 * 1024 * 1024    # explicit scoped-VMEM request (< v7x 64 MiB physical)
_TILE_BUDGET_BYTES = 20 * 1024 * 1024   # target double-buffered working set per conv call
_K_TILE_MAX = 2048                      # split K onto a grid axis above this


# ----------------------------- Pallas kernels ------------------------------

def _conv_lrelu_kernel(p_ref, w_ref, o_ref, acc_ref):
    # (Cout, tk) @ (tk, tm) accumulated over the K grid axis into an f32 VMEM
    # scratch, then LeakyReLU(0.2) and a bf16 lane-dense store.
    kk = pl.program_id(1)

    @pl.when(kk == 0)
    def _():
        acc_ref[...] = jnp.zeros_like(acc_ref)

    acc_ref[...] += jnp.dot(w_ref[...], p_ref[...],
                            preferred_element_type=jnp.float32)

    @pl.when(kk == pl.num_programs(1) - 1)
    def _():
        y = acc_ref[...]
        o_ref[...] = jnp.where(y > 0, y, LRELU_SLOPE * y).astype(o_ref.dtype)


def _conv_stats_kernel(p_ref, w_ref, y_ref, ssum_ref, ssq_ref, acc_ref):
    # Conv tile (K-tiled, f32 accumulator) + one-pass BN partials computed
    # from the f32 accumulator at the final K step: per-channel sum and
    # sum-of-squares of this M tile, emitted lane-dense as (1, 1, Cout).
    kk = pl.program_id(1)

    @pl.when(kk == 0)
    def _():
        acc_ref[...] = jnp.zeros_like(acc_ref)

    acc_ref[...] += jnp.dot(w_ref[...], p_ref[...],
                            preferred_element_type=jnp.float32)

    @pl.when(kk == pl.num_programs(1) - 1)
    def _():
        y = acc_ref[...]                                    # (Cout, tm) f32
        y_ref[...] = y.astype(y_ref.dtype)                  # bf16 round trip
        ssum_ref[...] = jnp.sum(y, axis=1)[None, None, :]   # (1, 1, Cout)
        ssq_ref[...] = jnp.sum(y * y, axis=1)[None, None, :]


def _bn_lrelu_kernel(y_ref, ssum_ref, ssq_ref, g_ref, b_ref, o_ref, *, inv_m):
    # Normalize with tile-combined batch statistics (biased variance,
    # training-mode PyTorch BN), then LeakyReLU(0.2).  Per-channel scalars are
    # (Cout, 1) f32 columns broadcast along the lane (M) axis.
    mean = ssum_ref[...] * inv_m
    var = ssq_ref[...] * inv_m - mean * mean
    scale = g_ref[...] * jax.lax.rsqrt(var + BN_EPS)
    shift = b_ref[...] - mean * scale
    z = y_ref[...].astype(jnp.float32) * scale + shift
    o_ref[...] = jnp.where(z > 0, z, LRELU_SLOPE * z).astype(o_ref.dtype)


def _head_mean_kernel(p_ref, w_ref, o_ref):
    # Final 4x4 conv fused with the batch mean, routed through the MXU:
    # (1, K) @ (K, N) then mean over the N lanes.
    y = jnp.dot(w_ref[...], p_ref[...], preferred_element_type=jnp.float32)
    o_ref[...] = jnp.mean(y, axis=1, keepdims=True)          # (1, 1)


def _vmem_full():
    return pl.BlockSpec(memory_space=pltpu.MemorySpace.VMEM)


# ------------------------------- JAX glue -----------------------------------

def _choose_tiles(k, m, cout):
    """VMEM-budget-aware (tk, tm).  tk keeps whole K unless K is large; tm is
    the largest lane-dense multiple of 128 dividing M that fits the budget,
    preferring >= 2 grid steps so the pipeline overlaps DMA with the MXU."""
    tk = k
    if k > _K_TILE_MAX:
        for cand in (2048, 1024, 512, 256):
            if k % cand == 0:
                tk = cand
                break

    def footprint(tm):
        return (2 * tk * tm * 2          # bf16 patch tile, double-buffered
                + 2 * cout * tk * 2      # bf16 weight tile, double-buffered
                + 2 * cout * tm * 2      # bf16 output tile, double-buffered
                + cout * tm * 4)         # f32 accumulator scratch

    tm = None
    for cand in (8192, 4096, 2048, 1024, 512, 256, 128):
        if m % cand != 0 or footprint(cand) > _TILE_BUDGET_BYTES:
            continue
        if m // cand >= 2:
            tm = cand
            break
        if tm is None:
            tm = cand                    # single-step fallback for tiny M
    if tm is None:
        tm = m                           # M < 128 or no 128-divisor
    return tk, tm


def _im2col_cm(x, ksize, stride, pad):
    """Channel-major im2col (bf16).  x: (C, N, H, W) -> patchesT (K, M) with
    K = ksize*ksize*C ordered (kh, kw, cin) and M = N*Ho*Wo on the last axis."""
    c, n, h, w = x.shape
    xp = jnp.pad(x, ((0, 0), (0, 0), (pad, pad), (pad, pad)))
    ho = (h + 2 * pad - ksize) // stride + 1
    wo = (w + 2 * pad - ksize) // stride + 1
    cols = []
    for kh in range(ksize):
        for kw in range(ksize):
            sl = xp[:, :, kh:kh + stride * (ho - 1) + 1:stride,
                          kw:kw + stride * (wo - 1) + 1:stride]
            cols.append(sl.reshape(c, n * ho * wo))
    return jnp.concatenate(cols, axis=0), (n, ho, wo)


def _wmat(w_hwio):
    """(KH, KW, Cin, Cout) -> bf16 (Cout, K) with K ordered (kh, kw, cin)."""
    kh, kw, cin, cout = w_hwio.shape
    return jnp.transpose(w_hwio, (3, 0, 1, 2)).reshape(
        cout, kh * kw * cin).astype(jnp.bfloat16)


def _conv_lrelu(patches, wmat):
    k, m = patches.shape
    cout = wmat.shape[0]
    tk, tm = _choose_tiles(k, m, cout)
    nt_m, nt_k = m // tm, k // tk
    return pl.pallas_call(
        _conv_lrelu_kernel,
        out_shape=jax.ShapeDtypeStruct((cout, m), jnp.bfloat16),
        grid=(nt_m, nt_k),
        in_specs=[pl.BlockSpec((tk, tm), lambda i, kk: (kk, i)),
                  pl.BlockSpec((cout, tk), lambda i, kk: (0, kk))],
        out_specs=pl.BlockSpec((cout, tm), lambda i, kk: (0, i)),
        scratch_shapes=[pltpu.VMEM((cout, tm), jnp.float32)],
        compiler_params=pltpu.CompilerParams(
            dimension_semantics=("parallel", "arbitrary"),
            vmem_limit_bytes=_VMEM_LIMIT_BYTES),
        cost_estimate=pl.CostEstimate(
            flops=2 * m * k * cout, transcendentals=0,
            bytes_accessed=2 * (k * m + cout * k + cout * m)),
    )(patches, wmat)


def _conv_bn_lrelu(patches, wmat, gamma, beta):
    k, m = patches.shape
    cout = wmat.shape[0]
    tk, tm = _choose_tiles(k, m, cout)
    nt_m, nt_k = m // tm, k // tk

    # Pass 1: K-tiled conv + per-M-tile per-channel (sum, sumsq) partials.
    y, psum, psq = pl.pallas_call(
        _conv_stats_kernel,
        out_shape=(jax.ShapeDtypeStruct((cout, m), jnp.bfloat16),
                   jax.ShapeDtypeStruct((nt_m, 1, cout), jnp.float32),
                   jax.ShapeDtypeStruct((nt_m, 1, cout), jnp.float32)),
        grid=(nt_m, nt_k),
        in_specs=[pl.BlockSpec((tk, tm), lambda i, kk: (kk, i)),
                  pl.BlockSpec((cout, tk), lambda i, kk: (0, kk))],
        out_specs=(pl.BlockSpec((cout, tm), lambda i, kk: (0, i)),
                   pl.BlockSpec((1, 1, cout), lambda i, kk: (i, 0, 0)),
                   pl.BlockSpec((1, 1, cout), lambda i, kk: (i, 0, 0))),
        scratch_shapes=[pltpu.VMEM((cout, tm), jnp.float32)],
        compiler_params=pltpu.CompilerParams(
            dimension_semantics=("parallel", "arbitrary"),
            vmem_limit_bytes=_VMEM_LIMIT_BYTES),
        cost_estimate=pl.CostEstimate(
            flops=2 * m * k * cout, transcendentals=0,
            bytes_accessed=2 * (k * m + cout * k + cout * m)),
    )(patches, wmat)

    # Tiny cross-tile combine of the BN partials in XLA.
    ssum = jnp.sum(psum, axis=0).reshape(cout, 1)   # (Cout, 1) f32
    ssq = jnp.sum(psq, axis=0).reshape(cout, 1)

    # Pass 2: lane-dense normalize + LeakyReLU over the same M tiles.
    return pl.pallas_call(
        functools.partial(_bn_lrelu_kernel, inv_m=1.0 / m),
        out_shape=jax.ShapeDtypeStruct((cout, m), jnp.bfloat16),
        grid=(nt_m,),
        in_specs=[pl.BlockSpec((cout, tm), lambda i: (0, i)),
                  pl.BlockSpec((cout, 1), lambda i: (0, 0)),
                  pl.BlockSpec((cout, 1), lambda i: (0, 0)),
                  pl.BlockSpec((cout, 1), lambda i: (0, 0)),
                  pl.BlockSpec((cout, 1), lambda i: (0, 0))],
        out_specs=pl.BlockSpec((cout, tm), lambda i: (0, i)),
        compiler_params=pltpu.CompilerParams(
            dimension_semantics=("parallel",),
            vmem_limit_bytes=_VMEM_LIMIT_BYTES),
        cost_estimate=pl.CostEstimate(
            flops=6 * cout * m, transcendentals=cout,
            bytes_accessed=2 * 2 * cout * m + 4 * 4 * cout),
    )(y, ssum, ssq, gamma, beta)


def _conv_batchmean(patches, wrow):
    # patches: (K, N) bf16, wrow: (1, K) bf16.  Output (1,) f32
    # == conv(...).mean(0).view(1), contraction on the MXU.
    out = pl.pallas_call(
        _head_mean_kernel,
        out_shape=jax.ShapeDtypeStruct((1, 1), jnp.float32),
        in_specs=[_vmem_full(), _vmem_full()],
        out_specs=_vmem_full(),
    )(patches, wrow)
    return out.reshape(1)


def init_params(key, ndf, nc, ksize):
    """Deterministic DCGAN-style init; BN gamma=1, beta=0 (PyTorch default)."""
    ks = jax.random.split(key, 5)

    def conv_w(k, cin, cout):
        # stored HWIO (KH, KW, Cin, Cout); reshaped per layer to (Cout, K).
        return 0.02 * jax.random.normal(k, (ksize, ksize, cin, cout),
                                        jnp.float32)

    def bn(c):
        return jnp.ones((c, 1), jnp.float32), jnp.zeros((c, 1), jnp.float32)

    p = {"w1": conv_w(ks[0], nc, ndf),
         "w2": conv_w(ks[1], ndf, ndf * 2),
         "w3": conv_w(ks[2], ndf * 2, ndf * 4),
         "w4": conv_w(ks[3], ndf * 4, ndf * 8),
         "w5": conv_w(ks[4], ndf * 8, 1)}
    p["g2"], p["b2"] = bn(ndf * 2)
    p["g3"], p["b3"] = bn(ndf * 4)
    p["g4"], p["b4"] = bn(ndf * 8)
    return p


def w_discriminator_forward(x_nchw, p):
    """x_nchw: (N, C, H, W) float32 -> shape (1,) float32."""
    # Channel-major (C, N, H, W) in bf16: M = N*Ho*Wo stays on the lane axis
    # for every layer (lane-dense loads/stores, no per-layer transposes), and
    # bf16 storage halves all activation/patch HBM traffic.
    x = jnp.transpose(x_nchw, (1, 0, 2, 3)).astype(jnp.bfloat16)

    def layer(x_cm, w, stride, pad, gb=None):
        patches, (n, ho, wo) = _im2col_cm(x_cm, w.shape[0], stride, pad)
        wm = _wmat(w)
        if gb is None:
            out = _conv_lrelu(patches, wm)
        else:
            out = _conv_bn_lrelu(patches, wm, gb[0], gb[1])
        return out.reshape(w.shape[-1], n, ho, wo)

    h = layer(x, p["w1"], 2, 1)
    h = layer(h, p["w2"], 2, 1, (p["g2"], p["b2"]))
    h = layer(h, p["w3"], 2, 1, (p["g3"], p["b3"]))
    h = layer(h, p["w4"], 2, 1, (p["g4"], p["b4"]))
    patches, (n, ho, wo) = _im2col_cm(h, p["w5"].shape[0], 1, 0)
    assert ho == 1 and wo == 1, "final conv must collapse spatial dims to 1x1"
    wrow = _wmat(p["w5"])                 # (1, K) bf16
    return _conv_batchmean(patches, wrow)


# --------------------------- pure-JAX reference ------------------------------

def reference_forward(x_nchw, p):
    x = jnp.transpose(x_nchw, (0, 2, 3, 1))   # NHWC for lax.conv

    def conv(x, w, stride, pad):
        return jax.lax.conv_general_dilated(
            x, w, (stride, stride), [(pad, pad), (pad, pad)],
            dimension_numbers=("NHWC", "HWIO", "NHWC"))

    def bn(x, g, b):
        m = jnp.mean(x, axis=(0, 1, 2), keepdims=True)
        v = jnp.mean(jnp.square(x - m), axis=(0, 1, 2), keepdims=True)
        return ((x - m) * jax.lax.rsqrt(v + BN_EPS)
                * g.reshape(1, 1, 1, -1) + b.reshape(1, 1, 1, -1))

    def lrelu(x):
        return jnp.where(x > 0, x, LRELU_SLOPE * x)

    h = lrelu(conv(x, p["w1"], 2, 1))
    h = lrelu(bn(conv(h, p["w2"], 2, 1), p["g2"], p["b2"]))
    h = lrelu(bn(conv(h, p["w3"], 2, 1), p["g3"], p["b3"]))
    h = lrelu(bn(conv(h, p["w4"], 2, 1), p["g4"], p["b4"]))
    h = conv(h, p["w5"], 1, 0)          # (N, 1, 1, 1)
    return jnp.mean(h, axis=0).reshape(1)


# ---------------------------------- main -------------------------------------

if __name__ == "__main__":
    NDF, NC, KSIZE = 4, 3, 4        # kernel_size=4 (DCGAN); 64x64 input -> 1x1
    BATCH, SPATIAL = 2, 64

    key = jax.random.PRNGKey(0)
    k_x, k_p = jax.random.split(key)
    x = jax.random.normal(k_x, (BATCH, NC, SPATIAL, SPATIAL), jnp.float32)
    params = init_params(k_p, NDF, NC, KSIZE)

    fwd = jax.jit(w_discriminator_forward)
    ref_fn = jax.jit(reference_forward)

    out = jax.block_until_ready(fwd(x, params))
    ref = jax.block_until_ready(ref_fn(x, params))

    assert out.shape == (1,) and out.dtype == jnp.float32
    # Both paths contract in bf16 on the MXU; the extra slack covers bf16
    # *storage* of activations/patches between layers and the one-pass
    # E[y^2]-mean^2 BN formulation in the kernels.
    np.testing.assert_allclose(np.asarray(out), np.asarray(ref),
                               rtol=5e-2, atol=2e-2)
    print("KERNEL_OK")
</pallas_src>

<mosaic_0001>
module attributes {stable_mosaic.version = 11 : i64} {
  func.func @_conv_lrelu_kernel(%arg0: i32, %arg1: i32, %arg2: memref<48x1024xbf16, #tpu.memory_space<vmem>>, %arg3: memref<4x48xbf16, #tpu.memory_space<vmem>>, %arg4: memref<4x1024xbf16, #tpu.memory_space<vmem>>, %arg5: memref<4x1024xf32, #tpu.memory_space<vmem>>) attributes {dimension_semantics = [#tpu.dimension_semantics<parallel>, #tpu.dimension_semantics<arbitrary>], iteration_bounds = array<i64: 2, 1>, scalar_prefetch = 0 : i64, scratch_operands = 1 : i64, tpu.core_type = #tpu.core_type<tc>, window_params = [{transform_indices = @transform_0, window_bounds = array<i64: 48, 1024>}, {transform_indices = @transform_1, window_bounds = array<i64: 4, 48>}, {transform_indices = @transform_2, window_bounds = array<i64: 4, 1024>}]} {
    %c0_i32 = arith.constant 0 : i32
    %0 = arith.cmpi eq, %arg1, %c0_i32 : i32
    %1 = arith.extui %0 : i1 to i32
    %c0_i32_0 = arith.constant 0 : i32
    %2 = arith.cmpi ne, %1, %c0_i32_0 : i32
    scf.if %2 {
      %cst_10 = arith.constant 0.000000e+00 : f32
      %12 = vector.broadcast %cst_10 : f32 to vector<4x1024xf32>
      %c0_11 = arith.constant 0 : index
      %c0_12 = arith.constant 0 : index
      %13 = vector.load %arg5[%c0_11, %c0_12] : memref<4x1024xf32, #tpu.memory_space<vmem>>, vector<4x1024xf32>
      tpu.vector_store %arg5[%c0_11, %c0_12], %12 {strides = array<i32>} : memref<4x1024xf32, #tpu.memory_space<vmem>>, vector<4x1024xf32>,
    } else {
    }
    %c0 = arith.constant 0 : index
    %c0_1 = arith.constant 0 : index
    %3 = vector.load %arg5[%c0, %c0_1] : memref<4x1024xf32, #tpu.memory_space<vmem>>, vector<4x1024xf32>
    %c0_2 = arith.constant 0 : index
    %c0_3 = arith.constant 0 : index
    %4 = vector.load %arg3[%c0_2, %c0_3] : memref<4x48xbf16, #tpu.memory_space<vmem>>, vector<4x48xbf16>
    %c0_4 = arith.constant 0 : index
    %c0_5 = arith.constant 0 : index
    %5 = vector.load %arg2[%c0_4, %c0_5] : memref<48x1024xbf16, #tpu.memory_space<vmem>>, vector<48x1024xbf16>
    %cst = arith.constant dense<0.000000e+00> : vector<4x1024xf32>
    %6 = tpu.matmul %4, %5, %cst {dimension_numbers = #tpu.dot_dimension_numbers<[1], [0], [0], [1], [0, 0, 1, 1], [], []>} : vector<4x48xbf16>, vector<48x1024xbf16>, vector<4x1024xf32> -> vector<4x1024xf32>
    %7 = arith.addf %3, %6 : vector<4x1024xf32>
    %c0_6 = arith.constant 0 : index
    %c0_7 = arith.constant 0 : index
    %8 = vector.load %arg5[%c0_6, %c0_7] : memref<4x1024xf32, #tpu.memory_space<vmem>>, vector<4x1024xf32>
    tpu.vector_store %arg5[%c0_6, %c0_7], %7 {strides = array<i32>} : memref<4x1024xf32, #tpu.memory_space<vmem>>, vector<4x1024xf32>,
    %c0_i32_8 = arith.constant 0 : i32
    %9 = arith.cmpi eq, %arg1, %c0_i32_8 : i32
    %10 = arith.extui %9 : i1 to i32
    %c0_i32_9 = arith.constant 0 : i32
    %11 = arith.cmpi ne, %10, %c0_i32_9 : i32
    scf.if %11 {
      %c0_10 = arith.constant 0 : index
      %c0_11 = arith.constant 0 : index
      %12 = vector.load %arg5[%c0_10, %c0_11] : memref<4x1024xf32, #tpu.memory_space<vmem>>, vector<4x1024xf32>
      %cst_12 = arith.constant 0.000000e+00 : f32
      %13 = vector.broadcast %cst_12 : f32 to vector<4x1024xf32>
      %14 = arith.cmpf ogt, %12, %13 : vector<4x1024xf32>
      %cst_13 = arith.constant 2.000000e-01 : f32
      %15 = vector.broadcast %cst_13 : f32 to vector<4x1024xf32>
      %16 = arith.mulf %15, %12 : vector<4x1024xf32>
      %17 = arith.select %14, %12, %16 : vector<4x1024xi1>, vector<4x1024xf32>
      %18 = arith.truncf %17 : vector<4x1024xf32> to vector<4x1024xbf16>
      %c0_14 = arith.constant 0 : index
      %c0_15 = arith.constant 0 : index
      %19 = vector.load %arg4[%c0_14, %c0_15] : memref<4x1024xbf16, #tpu.memory_space<vmem>>, vector<4x1024xbf16>
      tpu.vector_store %arg4[%c0_14, %c0_15], %18 {strides = array<i32>} : memref<4x1024xbf16, #tpu.memory_space<vmem>>, vector<4x1024xbf16>,
    } else {
    }
    return
  }
  func.func @transform_0(%arg0: i32, %arg1: i32) -> (i32, i32) {
    %c0_i32 = arith.constant 0 : i32
    return %arg1, %arg0 : i32, i32
  }
  func.func @transform_1(%arg0: i32, %arg1: i32) -> (i32, i32) {
    %c0_i32 = arith.constant 0 : i32
    %c0_i32_0 = arith.constant 0 : i32
    return %c0_i32, %arg1 : i32, i32
  }
  func.func @transform_2(%arg0: i32, %arg1: i32) -> (i32, i32) {
    %c0_i32 = arith.constant 0 : i32
    %c0_i32_0 = arith.constant 0 : i32
    return %c0_i32, %arg0 : i32, i32
  }
}

module attributes {stable_mosaic.version = 11 : i64} {
  func.func @_conv_stats_kernel(%arg0: i32, %arg1: i32, %arg2: memref<64x256xbf16, #tpu.memory_space<vmem>>, %arg3: memref<8x64xbf16, #tpu.memory_space<vmem>>, %arg4: memref<8x256xbf16, #tpu.memory_space<vmem>>, %arg5: memref<1x1x8xf32, #tpu.memory_space<vmem>>, %arg6: memref<1x1x8xf32, #tpu.memory_space<vmem>>, %arg7: memref<8x256xf32, #tpu.memory_space<vmem>>) attributes {dimension_semantics = [#tpu.dimension_semantics<parallel>, #tpu.dimension_semantics<arbitrary>], iteration_bounds = array<i64: 2, 1>, scalar_prefetch = 0 : i64, scratch_operands = 1 : i64, tpu.core_type = #tpu.core_type<tc>, window_params = [{transform_indices = @transform_0, window_bounds = array<i64: 64, 256>}, {transform_indices = @transform_1, window_bounds = array<i64: 8, 64>}, {transform_indices = @transform_2, window_bounds = array<i64: 8, 256>}, {transform_indices = @transform_3, window_bounds = array<i64: 1, 1, 8>}, {transform_indices = @transform_4, window_bounds = array<i64: 1, 1, 8>}]} {
    %c0_i32 = arith.constant 0 : i32
    %0 = arith.cmpi eq, %arg1, %c0_i32 : i32
    %1 = arith.extui %0 : i1 to i32
    %c0_i32_0 = arith.constant 0 : i32
    %2 = arith.cmpi ne, %1, %c0_i32_0 : i32
    scf.if %2 {
      %cst_10 = arith.constant 0.000000e+00 : f32
      %12 = vector.broadcast %cst_10 : f32 to vector<8x256xf32>
      %c0_11 = arith.constant 0 : index
      %c0_12 = arith.constant 0 : index
      %13 = vector.load %arg7[%c0_11, %c0_12] : memref<8x256xf32, #tpu.memory_space<vmem>>, vector<8x256xf32>
      tpu.vector_store %arg7[%c0_11, %c0_12], %12 {strides = array<i32>} : memref<8x256xf32, #tpu.memory_space<vmem>>, vector<8x256xf32>,
    } else {
    }
    %c0 = arith.constant 0 : index
    %c0_1 = arith.constant 0 : index
    %3 = vector.load %arg7[%c0, %c0_1] : memref<8x256xf32, #tpu.memory_space<vmem>>, vector<8x256xf32>
    %c0_2 = arith.constant 0 : index
    %c0_3 = arith.constant 0 : index
    %4 = vector.load %arg3[%c0_2, %c0_3] : memref<8x64xbf16, #tpu.memory_space<vmem>>, vector<8x64xbf16>
    %c0_4 = arith.constant 0 : index
    %c0_5 = arith.constant 0 : index
    %5 = vector.load %arg2[%c0_4, %c0_5] : memref<64x256xbf16, #tpu.memory_space<vmem>>, vector<64x256xbf16>
    %cst = arith.constant dense<0.000000e+00> : vector<8x256xf32>
    %6 = tpu.matmul %4, %5, %cst {dimension_numbers = #tpu.dot_dimension_numbers<[1], [0], [0], [1], [0, 0, 1, 1], [], []>} : vector<8x64xbf16>, vector<64x256xbf16>, vector<8x256xf32> -> vector<8x256xf32>
    %7 = arith.addf %3, %6 : vector<8x256xf32>
    %c0_6 = arith.constant 0 : index
    %c0_7 = arith.constant 0 : index
    %8 = vector.load %arg7[%c0_6, %c0_7] : memref<8x256xf32, #tpu.memory_space<vmem>>, vector<8x256xf32>
    tpu.vector_store %arg7[%c0_6, %c0_7], %7 {strides = array<i32>} : memref<8x256xf32, #tpu.memory_space<vmem>>, vector<8x256xf32>,
    %c0_i32_8 = arith.constant 0 : i32
    %9 = arith.cmpi eq, %arg1, %c0_i32_8 : i32
    %10 = arith.extui %9 : i1 to i32
    %c0_i32_9 = arith.constant 0 : i32
    %11 = arith.cmpi ne, %10, %c0_i32_9 : i32
    scf.if %11 {
      %c0_10 = arith.constant 0 : index
      %c0_11 = arith.constant 0 : index
      %12 = vector.load %arg7[%c0_10, %c0_11] : memref<8x256xf32, #tpu.memory_space<vmem>>, vector<8x256xf32>
      %13 = arith.truncf %12 : vector<8x256xf32> to vector<8x256xbf16>
      %c0_12 = arith.constant 0 : index
      %c0_13 = arith.constant 0 : index
      %14 = vector.load %arg4[%c0_12, %c0_13] : memref<8x256xbf16, #tpu.memory_space<vmem>>, vector<8x256xbf16>
      tpu.vector_store %arg4[%c0_12, %c0_13], %13 {strides = array<i32>} : memref<8x256xbf16, #tpu.memory_space<vmem>>, vector<8x256xbf16>,
      %cst_14 = arith.constant dense<0.000000e+00> : vector<8xf32>
      %15 = vector.multi_reduction <add>, %12, %cst_14 [1] : vector<8x256xf32> to vector<8xf32>
      %16 = vector.shape_cast %15 : vector<8xf32> to vector<1x1x8xf32>
      %c0_15 = arith.constant 0 : index
      %c0_16 = arith.constant 0 : index
      %c0_17 = arith.constant 0 : index
      %17 = vector.load %arg5[%c0_15, %c0_16, %c0_17] : memref<1x1x8xf32, #tpu.memory_space<vmem>>, vector<1x1x8xf32>
      tpu.vector_store %arg5[%c0_15, %c0_16, %c0_17], %16 {strides = array<i32>} : memref<1x1x8xf32, #tpu.memory_space<vmem>>, vector<1x1x8xf32>,
      %18 = arith.mulf %12, %12 : vector<8x256xf32>
      %cst_18 = arith.constant dense<0.000000e+00> : vector<8xf32>
      %19 = vector.multi_reduction <add>, %18, %cst_18 [1] : vector<8x256xf32> to vector<8xf32>
      %20 = vector.shape_cast %19 : vector<8xf32> to vector<1x1x8xf32>
      %c0_19 = arith.constant 0 : index
      %c0_20 = arith.constant 0 : index
      %c0_21 = arith.constant 0 : index
      %21 = vector.load %arg6[%c0_19, %c0_20, %c0_21] : memref<1x1x8xf32, #tpu.memory_space<vmem>>, vector<1x1x8xf32>
      tpu.vector_store %arg6[%c0_19, %c0_20, %c0_21], %20 {strides = array<i32>} : memref<1x1x8xf32, #tpu.memory_space<vmem>>, vector<1x1x8xf32>,
    } else {
    }
    return
  }
  func.func @transform_0(%arg0: i32, %arg1: i32) -> (i32, i32) {
    %c0_i32 = arith.constant 0 : i32
    return %arg1, %arg0 : i32, i32
  }
  func.func @transform_1(%arg0: i32, %arg1: i32) -> (i32, i32) {
    %c0_i32 = arith.constant 0 : i32
    %c0_i32_0 = arith.constant 0 : i32
    return %c0_i32, %arg1 : i32, i32
  }
  func.func @transform_2(%arg0: i32, %arg1: i32) -> (i32, i32) {
    %c0_i32 = arith.constant 0 : i32
    %c0_i32_0 = arith.constant 0 : i32
    return %c0_i32, %arg0 : i32, i32
  }
  func.func @transform_3(%arg0: i32, %arg1: i32) -> (i32, i32, i32) {
    %c0_i32 = arith.constant 0 : i32
    %c0_i32_0 = arith.constant 0 : i32
    %c0_i32_1 = arith.constant 0 : i32
    return %arg0, %c0_i32, %c0_i32_0 : i32, i32, i32
  }
  func.func @transform_4(%arg0: i32, %arg1: i32) -> (i32, i32, i32) {
    %c0_i32 = arith.constant 0 : i32
    %c0_i32_0 = arith.constant 0 : i32
    %c0_i32_1 = arith.constant 0 : i32
    return %arg0, %c0_i32, %c0_i32_0 : i32, i32, i32
  }
}

module attributes {stable_mosaic.version = 11 : i64} {
  func.func @_bn_lrelu_kernel(%arg0: i32, %arg1: memref<8x256xbf16, #tpu.memory_space<vmem>>, %arg2: memref<8x1xf32, #tpu.memory_space<vmem>>, %arg3: memref<8x1xf32, #tpu.memory_space<vmem>>, %arg4: memref<8x1xf32, #tpu.memory_space<vmem>>, %arg5: memref<8x1xf32, #tpu.memory_space<vmem>>, %arg6: memref<8x256xbf16, #tpu.memory_space<vmem>>) attributes {dimension_semantics = [#tpu.dimension_semantics<parallel>], iteration_bounds = array<i64: 2>, scalar_prefetch = 0 : i64, scratch_operands = 0 : i64, tpu.core_type = #tpu.core_type<tc>, window_params = [{transform_indices = @transform_0, window_bounds = array<i64: 8, 256>}, {pipeline_mode = #tpu.pipeline_mode<synchronous>, transform_indices = @transform_1, window_bounds = array<i64: 8, 1>}, {pipeline_mode = #tpu.pipeline_mode<synchronous>, transform_indices = @transform_2, window_bounds = array<i64: 8, 1>}, {pipeline_mode = #tpu.pipeline_mode<synchronous>, transform_indices = @transform_3, window_bounds = array<i64: 8, 1>}, {pipeline_mode = #tpu.pipeline_mode<synchronous>, transform_indices = @transform_4, window_bounds = array<i64: 8, 1>}, {transform_indices = @transform_5, window_bounds = array<i64: 8, 256>}]} {
    %c0 = arith.constant 0 : index
    %c0_0 = arith.constant 0 : index
    %0 = vector.load %arg2[%c0, %c0_0] : memref<8x1xf32, #tpu.memory_space<vmem>>, vector<8x1xf32>
    %cst = arith.constant 0.001953125 : f32
    %1 = vector.broadcast %cst : f32 to vector<8x1xf32>
    %2 = arith.mulf %0, %1 : vector<8x1xf32>
    %c0_1 = arith.constant 0 : index
    %c0_2 = arith.constant 0 : index
    %3 = vector.load %arg3[%c0_1, %c0_2] : memref<8x1xf32, #tpu.memory_space<vmem>>, vector<8x1xf32>
    %cst_3 = arith.constant 0.001953125 : f32
    %4 = vector.broadcast %cst_3 : f32 to vector<8x1xf32>
    %5 = arith.mulf %3, %4 : vector<8x1xf32>
    %6 = arith.mulf %2, %2 : vector<8x1xf32>
    %7 = arith.subf %5, %6 : vector<8x1xf32>
    %c0_4 = arith.constant 0 : index
    %c0_5 = arith.constant 0 : index
    %8 = vector.load %arg4[%c0_4, %c0_5] : memref<8x1xf32, #tpu.memory_space<vmem>>, vector<8x1xf32>
    %cst_6 = arith.constant 9.99999974E-6 : f32
    %9 = vector.broadcast %cst_6 : f32 to vector<8x1xf32>
    %10 = arith.addf %7, %9 : vector<8x1xf32>
    %11 = math.rsqrt %10 : vector<8x1xf32>
    %12 = arith.mulf %8, %11 : vector<8x1xf32>
    %c0_7 = arith.constant 0 : index
    %c0_8 = arith.constant 0 : index
    %13 = vector.load %arg5[%c0_7, %c0_8] : memref<8x1xf32, #tpu.memory_space<vmem>>, vector<8x1xf32>
    %14 = arith.mulf %2, %12 : vector<8x1xf32>
    %15 = arith.subf %13, %14 : vector<8x1xf32>
    %c0_9 = arith.constant 0 : index
    %c0_10 = arith.constant 0 : index
    %16 = vector.load %arg1[%c0_9, %c0_10] : memref<8x256xbf16, #tpu.memory_space<vmem>>, vector<8x256xbf16>
    %17 = arith.extf %16 : vector<8x256xbf16> to vector<8x256xf32>
    %18 = vector.broadcast %12 : vector<8x1xf32> to vector<8x256xf32>
    %19 = arith.mulf %17, %18 : vector<8x256xf32>
    %20 = vector.broadcast %15 : vector<8x1xf32> to vector<8x256xf32>
    %21 = arith.addf %19, %20 : vector<8x256xf32>
    %cst_11 = arith.constant 0.000000e+00 : f32
    %22 = vector.broadcast %cst_11 : f32 to vector<8x256xf32>
    %23 = arith.cmpf ogt, %21, %22 : vector<8x256xf32>
    %cst_12 = arith.constant 2.000000e-01 : f32
    %24 = vector.broadcast %cst_12 : f32 to vector<8x256xf32>
    %25 = arith.mulf %24, %21 : vector<8x256xf32>
    %26 = arith.select %23, %21, %25 : vector<8x256xi1>, vector<8x256xf32>
    %27 = arith.truncf %26 : vector<8x256xf32> to vector<8x256xbf16>
    %c0_13 = arith.constant 0 : index
    %c0_14 = arith.constant 0 : index
    %28 = vector.load %arg6[%c0_13, %c0_14] : memref<8x256xbf16, #tpu.memory_space<vmem>>, vector<8x256xbf16>
    tpu.vector_store %arg6[%c0_13, %c0_14], %27 {strides = array<i32>} : memref<8x256xbf16, #tpu.memory_space<vmem>>, vector<8x256xbf16>,
    return
  }
  func.func @transform_0(%arg0: i32) -> (i32, i32) {
    %c0_i32 = arith.constant 0 : i32
    %c0_i32_0 = arith.constant 0 : i32
    return %c0_i32, %arg0 : i32, i32
  }
  func.func @transform_1(%arg0: i32) -> (i32, i32) {
    %c0_i32 = arith.constant 0 : i32
    %c0_i32_0 = arith.constant 0 : i32
    %c0_i32_1 = arith.constant 0 : i32
    return %c0_i32, %c0_i32_0 : i32, i32
  }
  func.func @transform_2(%arg0: i32) -> (i32, i32) {
    %c0_i32 = arith.constant 0 : i32
    %c0_i32_0 = arith.constant 0 : i32
    %c0_i32_1 = arith.constant 0 : i32
    return %c0_i32, %c0_i32_0 : i32, i32
  }
  func.func @transform_3(%arg0: i32) -> (i32, i32) {
    %c0_i32 = arith.constant 0 : i32
    %c0_i32_0 = arith.constant 0 : i32
    %c0_i32_1 = arith.constant 0 : i32
    return %c0_i32, %c0_i32_0 : i32, i32
  }
  func.func @transform_4(%arg0: i32) -> (i32, i32) {
    %c0_i32 = arith.constant 0 : i32
    %c0_i32_0 = arith.constant 0 : i32
    %c0_i32_1 = arith.constant 0 : i32
    return %c0_i32, %c0_i32_0 : i32, i32
  }
  func.func @transform_5(%arg0: i32) -> (i32, i32) {
    %c0_i32 = arith.constant 0 : i32
    %c0_i32_0 = arith.constant 0 : i32
    return %c0_i32, %arg0 : i32, i32
  }
}

module attributes {stable_mosaic.version = 11 : i64} {
  func.func @_conv_stats_kernel(%arg0: i32, %arg1: i32, %arg2: memref<128x128xbf16, #tpu.memory_space<vmem>>, %arg3: memref<16x128xbf16, #tpu.memory_space<vmem>>, %arg4: memref<16x128xbf16, #tpu.memory_space<vmem>>, %arg5: memref<1x1x16xf32, #tpu.memory_space<vmem>>, %arg6: memref<1x1x16xf32, #tpu.memory_space<vmem>>, %arg7: memref<16x128xf32, #tpu.memory_space<vmem>>) attributes {dimension_semantics = [#tpu.dimension_semantics<parallel>, #tpu.dimension_semantics<arbitrary>], iteration_bounds = array<i64: 1, 1>, scalar_prefetch = 0 : i64, scratch_operands = 1 : i64, tpu.core_type = #tpu.core_type<tc>, window_params = [{transform_indices = @transform_0, window_bounds = array<i64: 128, 128>}, {transform_indices = @transform_1, window_bounds = array<i64: 16, 128>}, {transform_indices = @transform_2, window_bounds = array<i64: 16, 128>}, {transform_indices = @transform_3, window_bounds = array<i64: 1, 1, 16>}, {transform_indices = @transform_4, window_bounds = array<i64: 1, 1, 16>}]} {
    %c0_i32 = arith.constant 0 : i32
    %0 = arith.cmpi eq, %arg1, %c0_i32 : i32
    %1 = arith.extui %0 : i1 to i32
    %c0_i32_0 = arith.constant 0 : i32
    %2 = arith.cmpi ne, %1, %c0_i32_0 : i32
    scf.if %2 {
      %cst_10 = arith.constant 0.000000e+00 : f32
      %12 = vector.broadcast %cst_10 : f32 to vector<16x128xf32>
      %c0_11 = arith.constant 0 : index
      %c0_12 = arith.constant 0 : index
      %13 = vector.load %arg7[%c0_11, %c0_12] : memref<16x128xf32, #tpu.memory_space<vmem>>, vector<16x128xf32>
      tpu.vector_store %arg7[%c0_11, %c0_12], %12 {strides = array<i32>} : memref<16x128xf32, #tpu.memory_space<vmem>>, vector<16x128xf32>,
    } else {
    }
    %c0 = arith.constant 0 : index
    %c0_1 = arith.constant 0 : index
    %3 = vector.load %arg7[%c0, %c0_1] : memref<16x128xf32, #tpu.memory_space<vmem>>, vector<16x128xf32>
    %c0_2 = arith.constant 0 : index
    %c0_3 = arith.constant 0 : index
    %4 = vector.load %arg3[%c0_2, %c0_3] : memref<16x128xbf16, #tpu.memory_space<vmem>>, vector<16x128xbf16>
    %c0_4 = arith.constant 0 : index
    %c0_5 = arith.constant 0 : index
    %5 = vector.load %arg2[%c0_4, %c0_5] : memref<128x128xbf16, #tpu.memory_space<vmem>>, vector<128x128xbf16>
    %cst = arith.constant dense<0.000000e+00> : vector<16x128xf32>
    %6 = tpu.matmul %4, %5, %cst {dimension_numbers = #tpu.dot_dimension_numbers<[1], [0], [0], [1], [0, 0, 1, 1], [], []>} : vector<16x128xbf16>, vector<128x128xbf16>, vector<16x128xf32> -> vector<16x128xf32>
    %7 = arith.addf %3, %6 : vector<16x128xf32>
    %c0_6 = arith.constant 0 : index
    %c0_7 = arith.constant 0 : index
    %8 = vector.load %arg7[%c0_6, %c0_7] : memref<16x128xf32, #tpu.memory_space<vmem>>, vector<16x128xf32>
    tpu.vector_store %arg7[%c0_6, %c0_7], %7 {strides = array<i32>} : memref<16x128xf32, #tpu.memory_space<vmem>>, vector<16x128xf32>,
    %c0_i32_8 = arith.constant 0 : i32
    %9 = arith.cmpi eq, %arg1, %c0_i32_8 : i32
    %10 = arith.extui %9 : i1 to i32
    %c0_i32_9 = arith.constant 0 : i32
    %11 = arith.cmpi ne, %10, %c0_i32_9 : i32
    scf.if %11 {
      %c0_10 = arith.constant 0 : index
      %c0_11 = arith.constant 0 : index
      %12 = vector.load %arg7[%c0_10, %c0_11] : memref<16x128xf32, #tpu.memory_space<vmem>>, vector<16x128xf32>
      %13 = arith.truncf %12 : vector<16x128xf32> to vector<16x128xbf16>
      %c0_12 = arith.constant 0 : index
      %c0_13 = arith.constant 0 : index
      %14 = vector.load %arg4[%c0_12, %c0_13] : memref<16x128xbf16, #tpu.memory_space<vmem>>, vector<16x128xbf16>
      tpu.vector_store %arg4[%c0_12, %c0_13], %13 {strides = array<i32>} : memref<16x128xbf16, #tpu.memory_space<vmem>>, vector<16x128xbf16>,
      %cst_14 = arith.constant dense<0.000000e+00> : vector<16xf32>
      %15 = vector.multi_reduction <add>, %12, %cst_14 [1] : vector<16x128xf32> to vector<16xf32>
      %16 = vector.shape_cast %15 : vector<16xf32> to vector<1x1x16xf32>
      %c0_15 = arith.constant 0 : index
      %c0_16 = arith.constant 0 : index
      %c0_17 = arith.constant 0 : index
      %17 = vector.load %arg5[%c0_15, %c0_16, %c0_17] : memref<1x1x16xf32, #tpu.memory_space<vmem>>, vector<1x1x16xf32>
      tpu.vector_store %arg5[%c0_15, %c0_16, %c0_17], %16 {strides = array<i32>} : memref<1x1x16xf32, #tpu.memory_space<vmem>>, vector<1x1x16xf32>,
      %18 = arith.mulf %12, %12 : vector<16x128xf32>
      %cst_18 = arith.constant dense<0.000000e+00> : vector<16xf32>
      %19 = vector.multi_reduction <add>, %18, %cst_18 [1] : vector<16x128xf32> to vector<16xf32>
      %20 = vector.shape_cast %19 : vector<16xf32> to vector<1x1x16xf32>
      %c0_19 = arith.constant 0 : index
      %c0_20 = arith.constant 0 : index
      %c0_21 = arith.constant 0 : index
      %21 = vector.load %arg6[%c0_19, %c0_20, %c0_21] : memref<1x1x16xf32, #tpu.memory_space<vmem>>, vector<1x1x16xf32>
      tpu.vector_store %arg6[%c0_19, %c0_20, %c0_21], %20 {strides = array<i32>} : memref<1x1x16xf32, #tpu.memory_space<vmem>>, vector<1x1x16xf32>,
    } else {
    }
    return
  }
  func.func @transform_0(%arg0: i32, %arg1: i32) -> (i32, i32) {
    %c0_i32 = arith.constant 0 : i32
    return %arg1, %arg0 : i32, i32
  }
  func.func @transform_1(%arg0: i32, %arg1: i32) -> (i32, i32) {
    %c0_i32 = arith.constant 0 : i32
    %c0_i32_0 = arith.constant 0 : i32
    return %c0_i32, %arg1 : i32, i32
  }
  func.func @transform_2(%arg0: i32, %arg1: i32) -> (i32, i32) {
    %c0_i32 = arith.constant 0 : i32
    %c0_i32_0 = arith.constant 0 : i32
    return %c0_i32, %arg0 : i32, i32
  }
  func.func @transform_3(%arg0: i32, %arg1: i32) -> (i32, i32, i32) {
    %c0_i32 = arith.constant 0 : i32
    %c0_i32_0 = arith.constant 0 : i32
    %c0_i32_1 = arith.constant 0 : i32
    return %arg0, %c0_i32, %c0_i32_0 : i32, i32, i32
  }
  func.func @transform_4(%arg0: i32, %arg1: i32) -> (i32, i32, i32) {
    %c0_i32 = arith.constant 0 : i32
    %c0_i32_0 = arith.constant 0 : i32
    %c0_i32_1 = arith.constant 0 : i32
    return %arg0, %c0_i32, %c0_i32_0 : i32, i32, i32
  }
}

module attributes {stable_mosaic.version = 11 : i64} {
  func.func @_bn_lrelu_kernel(%arg0: i32, %arg1: memref<16x128xbf16, #tpu.memory_space<vmem>>, %arg2: memref<16x1xf32, #tpu.memory_space<vmem>>, %arg3: memref<16x1xf32, #tpu.memory_space<vmem>>, %arg4: memref<16x1xf32, #tpu.memory_space<vmem>>, %arg5: memref<16x1xf32, #tpu.memory_space<vmem>>, %arg6: memref<16x128xbf16, #tpu.memory_space<vmem>>) attributes {dimension_semantics = [#tpu.dimension_semantics<parallel>], iteration_bounds = array<i64: 1>, scalar_prefetch = 0 : i64, scratch_operands = 0 : i64, tpu.core_type = #tpu.core_type<tc>, window_params = [{transform_indices = @transform_0, window_bounds = array<i64: 16, 128>}, {pipeline_mode = #tpu.pipeline_mode<synchronous>, transform_indices = @transform_1, window_bounds = array<i64: 16, 1>}, {pipeline_mode = #tpu.pipeline_mode<synchronous>, transform_indices = @transform_2, window_bounds = array<i64: 16, 1>}, {pipeline_mode = #tpu.pipeline_mode<synchronous>, transform_indices = @transform_3, window_bounds = array<i64: 16, 1>}, {pipeline_mode = #tpu.pipeline_mode<synchronous>, transform_indices = @transform_4, window_bounds = array<i64: 16, 1>}, {transform_indices = @transform_5, window_bounds = array<i64: 16, 128>}]} {
    %c0 = arith.constant 0 : index
    %c0_0 = arith.constant 0 : index
    %0 = vector.load %arg2[%c0, %c0_0] : memref<16x1xf32, #tpu.memory_space<vmem>>, vector<16x1xf32>
    %cst = arith.constant 7.812500e-03 : f32
    %1 = vector.broadcast %cst : f32 to vector<16x1xf32>
    %2 = arith.mulf %0, %1 : vector<16x1xf32>
    %c0_1 = arith.constant 0 : index
    %c0_2 = arith.constant 0 : index
    %3 = vector.load %arg3[%c0_1, %c0_2] : memref<16x1xf32, #tpu.memory_space<vmem>>, vector<16x1xf32>
    %cst_3 = arith.constant 7.812500e-03 : f32
    %4 = vector.broadcast %cst_3 : f32 to vector<16x1xf32>
    %5 = arith.mulf %3, %4 : vector<16x1xf32>
    %6 = arith.mulf %2, %2 : vector<16x1xf32>
    %7 = arith.subf %5, %6 : vector<16x1xf32>
    %c0_4 = arith.constant 0 : index
    %c0_5 = arith.constant 0 : index
    %8 = vector.load %arg4[%c0_4, %c0_5] : memref<16x1xf32, #tpu.memory_space<vmem>>, vector<16x1xf32>
    %cst_6 = arith.constant 9.99999974E-6 : f32
    %9 = vector.broadcast %cst_6 : f32 to vector<16x1xf32>
    %10 = arith.addf %7, %9 : vector<16x1xf32>
    %11 = math.rsqrt %10 : vector<16x1xf32>
    %12 = arith.mulf %8, %11 : vector<16x1xf32>
    %c0_7 = arith.constant 0 : index
    %c0_8 = arith.constant 0 : index
    %13 = vector.load %arg5[%c0_7, %c0_8] : memref<16x1xf32, #tpu.memory_space<vmem>>, vector<16x1xf32>
    %14 = arith.mulf %2, %12 : vector<16x1xf32>
    %15 = arith.subf %13, %14 : vector<16x1xf32>
    %c0_9 = arith.constant 0 : index
    %c0_10 = arith.constant 0 : index
    %16 = vector.load %arg1[%c0_9, %c0_10] : memref<16x128xbf16, #tpu.memory_space<vmem>>, vector<16x128xbf16>
    %17 = arith.extf %16 : vector<16x128xbf16> to vector<16x128xf32>
    %18 = vector.broadcast %12 : vector<16x1xf32> to vector<16x128xf32>
    %19 = arith.mulf %17, %18 : vector<16x128xf32>
    %20 = vector.broadcast %15 : vector<16x1xf32> to vector<16x128xf32>
    %21 = arith.addf %19, %20 : vector<16x128xf32>
    %cst_11 = arith.constant 0.000000e+00 : f32
    %22 = vector.broadcast %cst_11 : f32 to vector<16x128xf32>
    %23 = arith.cmpf ogt, %21, %22 : vector<16x128xf32>
    %cst_12 = arith.constant 2.000000e-01 : f32
    %24 = vector.broadcast %cst_12 : f32 to vector<16x128xf32>
    %25 = arith.mulf %24, %21 : vector<16x128xf32>
    %26 = arith.select %23, %21, %25 : vector<16x128xi1>, vector<16x128xf32>
    %27 = arith.truncf %26 : vector<16x128xf32> to vector<16x128xbf16>
    %c0_13 = arith.constant 0 : index
    %c0_14 = arith.constant 0 : index
    %28 = vector.load %arg6[%c0_13, %c0_14] : memref<16x128xbf16, #tpu.memory_space<vmem>>, vector<16x128xbf16>
    tpu.vector_store %arg6[%c0_13, %c0_14], %27 {strides = array<i32>} : memref<16x128xbf16, #tpu.memory_space<vmem>>, vector<16x128xbf16>,
    return
  }
  func.func @transform_0(%arg0: i32) -> (i32, i32) {
    %c0_i32 = arith.constant 0 : i32
    %c0_i32_0 = arith.constant 0 : i32
    return %c0_i32, %arg0 : i32, i32
  }
  func.func @transform_1(%arg0: i32) -> (i32, i32) {
    %c0_i32 = arith.constant 0 : i32
    %c0_i32_0 = arith.constant 0 : i32
    %c0_i32_1 = arith.constant 0 : i32
    return %c0_i32, %c0_i32_0 : i32, i32
  }
  func.func @transform_2(%arg0: i32) -> (i32, i32) {
    %c0_i32 = arith.constant 0 : i32
    %c0_i32_0 = arith.constant 0 : i32
    %c0_i32_1 = arith.constant 0 : i32
    return %c0_i32, %c0_i32_0 : i32, i32
  }
  func.func @transform_3(%arg0: i32) -> (i32, i32) {
    %c0_i32 = arith.constant 0 : i32
    %c0_i32_0 = arith.constant 0 : i32
    %c0_i32_1 = arith.constant 0 : i32
    return %c0_i32, %c0_i32_0 : i32, i32
  }
  func.func @transform_4(%arg0: i32) -> (i32, i32) {
    %c0_i32 = arith.constant 0 : i32
    %c0_i32_0 = arith.constant 0 : i32
    %c0_i32_1 = arith.constant 0 : i32
    return %c0_i32, %c0_i32_0 : i32, i32
  }
  func.func @transform_5(%arg0: i32) -> (i32, i32) {
    %c0_i32 = arith.constant 0 : i32
    %c0_i32_0 = arith.constant 0 : i32
    return %c0_i32, %arg0 : i32, i32
  }
}

module attributes {stable_mosaic.version = 11 : i64} {
  func.func @_conv_stats_kernel(%arg0: i32, %arg1: i32, %arg2: memref<256x32xbf16, #tpu.memory_space<vmem>>, %arg3: memref<32x256xbf16, #tpu.memory_space<vmem>>, %arg4: memref<32x32xbf16, #tpu.memory_space<vmem>>, %arg5: memref<1x1x32xf32, #tpu.memory_space<vmem>>, %arg6: memref<1x1x32xf32, #tpu.memory_space<vmem>>, %arg7: memref<32x32xf32, #tpu.memory_space<vmem>>) attributes {dimension_semantics = [#tpu.dimension_semantics<parallel>, #tpu.dimension_semantics<arbitrary>], iteration_bounds = array<i64: 1, 1>, scalar_prefetch = 0 : i64, scratch_operands = 1 : i64, tpu.core_type = #tpu.core_type<tc>, window_params = [{transform_indices = @transform_0, window_bounds = array<i64: 256, 32>}, {transform_indices = @transform_1, window_bounds = array<i64: 32, 256>}, {transform_indices = @transform_2, window_bounds = array<i64: 32, 32>}, {transform_indices = @transform_3, window_bounds = array<i64: 1, 1, 32>}, {transform_indices = @transform_4, window_bounds = array<i64: 1, 1, 32>}]} {
    %c0_i32 = arith.constant 0 : i32
    %0 = arith.cmpi eq, %arg1, %c0_i32 : i32
    %1 = arith.extui %0 : i1 to i32
    %c0_i32_0 = arith.constant 0 : i32
    %2 = arith.cmpi ne, %1, %c0_i32_0 : i32
    scf.if %2 {
      %cst_10 = arith.constant 0.000000e+00 : f32
      %12 = vector.broadcast %cst_10 : f32 to vector<32x32xf32>
      %c0_11 = arith.constant 0 : index
      %c0_12 = arith.constant 0 : index
      %13 = vector.load %arg7[%c0_11, %c0_12] : memref<32x32xf32, #tpu.memory_space<vmem>>, vector<32x32xf32>
      tpu.vector_store %arg7[%c0_11, %c0_12], %12 {strides = array<i32>} : memref<32x32xf32, #tpu.memory_space<vmem>>, vector<32x32xf32>,
    } else {
    }
    %c0 = arith.constant 0 : index
    %c0_1 = arith.constant 0 : index
    %3 = vector.load %arg7[%c0, %c0_1] : memref<32x32xf32, #tpu.memory_space<vmem>>, vector<32x32xf32>
    %c0_2 = arith.constant 0 : index
    %c0_3 = arith.constant 0 : index
    %4 = vector.load %arg3[%c0_2, %c0_3] : memref<32x256xbf16, #tpu.memory_space<vmem>>, vector<32x256xbf16>
    %c0_4 = arith.constant 0 : index
    %c0_5 = arith.constant 0 : index
    %5 = vector.load %arg2[%c0_4, %c0_5] : memref<256x32xbf16, #tpu.memory_space<vmem>>, vector<256x32xbf16>
    %cst = arith.constant dense<0.000000e+00> : vector<32x32xf32>
    %6 = tpu.matmul %4, %5, %cst {dimension_numbers = #tpu.dot_dimension_numbers<[1], [0], [0], [1], [0, 0, 1, 1], [], []>} : vector<32x256xbf16>, vector<256x32xbf16>, vector<32x32xf32> -> vector<32x32xf32>
    %7 = arith.addf %3, %6 : vector<32x32xf32>
    %c0_6 = arith.constant 0 : index
    %c0_7 = arith.constant 0 : index
    %8 = vector.load %arg7[%c0_6, %c0_7] : memref<32x32xf32, #tpu.memory_space<vmem>>, vector<32x32xf32>
    tpu.vector_store %arg7[%c0_6, %c0_7], %7 {strides = array<i32>} : memref<32x32xf32, #tpu.memory_space<vmem>>, vector<32x32xf32>,
    %c0_i32_8 = arith.constant 0 : i32
    %9 = arith.cmpi eq, %arg1, %c0_i32_8 : i32
    %10 = arith.extui %9 : i1 to i32
    %c0_i32_9 = arith.constant 0 : i32
    %11 = arith.cmpi ne, %10, %c0_i32_9 : i32
    scf.if %11 {
      %c0_10 = arith.constant 0 : index
      %c0_11 = arith.constant 0 : index
      %12 = vector.load %arg7[%c0_10, %c0_11] : memref<32x32xf32, #tpu.memory_space<vmem>>, vector<32x32xf32>
      %13 = arith.truncf %12 : vector<32x32xf32> to vector<32x32xbf16>
      %c0_12 = arith.constant 0 : index
      %c0_13 = arith.constant 0 : index
      %14 = vector.load %arg4[%c0_12, %c0_13] : memref<32x32xbf16, #tpu.memory_space<vmem>>, vector<32x32xbf16>
      tpu.vector_store %arg4[%c0_12, %c0_13], %13 {strides = array<i32>} : memref<32x32xbf16, #tpu.memory_space<vmem>>, vector<32x32xbf16>,
      %cst_14 = arith.constant dense<0.000000e+00> : vector<32xf32>
      %15 = vector.multi_reduction <add>, %12, %cst_14 [1] : vector<32x32xf32> to vector<32xf32>
      %16 = vector.shape_cast %15 : vector<32xf32> to vector<1x1x32xf32>
      %c0_15 = arith.constant 0 : index
      %c0_16 = arith.constant 0 : index
      %c0_17 = arith.constant 0 : index
      %17 = vector.load %arg5[%c0_15, %c0_16, %c0_17] : memref<1x1x32xf32, #tpu.memory_space<vmem>>, vector<1x1x32xf32>
      tpu.vector_store %arg5[%c0_15, %c0_16, %c0_17], %16 {strides = array<i32>} : memref<1x1x32xf32, #tpu.memory_space<vmem>>, vector<1x1x32xf32>,
      %18 = arith.mulf %12, %12 : vector<32x32xf32>
      %cst_18 = arith.constant dense<0.000000e+00> : vector<32xf32>
      %19 = vector.multi_reduction <add>, %18, %cst_18 [1] : vector<32x32xf32> to vector<32xf32>
      %20 = vector.shape_cast %19 : vector<32xf32> to vector<1x1x32xf32>
      %c0_19 = arith.constant 0 : index
      %c0_20 = arith.constant 0 : index
      %c0_21 = arith.constant 0 : index
      %21 = vector.load %arg6[%c0_19, %c0_20, %c0_21] : memref<1x1x32xf32, #tpu.memory_space<vmem>>, vector<1x1x32xf32>
      tpu.vector_store %arg6[%c0_19, %c0_20, %c0_21], %20 {strides = array<i32>} : memref<1x1x32xf32, #tpu.memory_space<vmem>>, vector<1x1x32xf32>,
    } else {
    }
    return
  }
  func.func @transform_0(%arg0: i32, %arg1: i32) -> (i32, i32) {
    %c0_i32 = arith.constant 0 : i32
    return %arg1, %arg0 : i32, i32
  }
  func.func @transform_1(%arg0: i32, %arg1: i32) -> (i32, i32) {
    %c0_i32 = arith.constant 0 : i32
    %c0_i32_0 = arith.constant 0 : i32
    return %c0_i32, %arg1 : i32, i32
  }
  func.func @transform_2(%arg0: i32, %arg1: i32) -> (i32, i32) {
    %c0_i32 = arith.constant 0 : i32
    %c0_i32_0 = arith.constant 0 : i32
    return %c0_i32, %arg0 : i32, i32
  }
  func.func @transform_3(%arg0: i32, %arg1: i32) -> (i32, i32, i32) {
    %c0_i32 = arith.constant 0 : i32
    %c0_i32_0 = arith.constant 0 : i32
    %c0_i32_1 = arith.constant 0 : i32
    return %arg0, %c0_i32, %c0_i32_0 : i32, i32, i32
  }
  func.func @transform_4(%arg0: i32, %arg1: i32) -> (i32, i32, i32) {
    %c0_i32 = arith.constant 0 : i32
    %c0_i32_0 = arith.constant 0 : i32
    %c0_i32_1 = arith.constant 0 : i32
    return %arg0, %c0_i32, %c0_i32_0 : i32, i32, i32
  }
}

module attributes {stable_mosaic.version = 11 : i64} {
  func.func @_bn_lrelu_kernel(%arg0: i32, %arg1: memref<32x32xbf16, #tpu.memory_space<vmem>>, %arg2: memref<32x1xf32, #tpu.memory_space<vmem>>, %arg3: memref<32x1xf32, #tpu.memory_space<vmem>>, %arg4: memref<32x1xf32, #tpu.memory_space<vmem>>, %arg5: memref<32x1xf32, #tpu.memory_space<vmem>>, %arg6: memref<32x32xbf16, #tpu.memory_space<vmem>>) attributes {dimension_semantics = [#tpu.dimension_semantics<parallel>], iteration_bounds = array<i64: 1>, scalar_prefetch = 0 : i64, scratch_operands = 0 : i64, tpu.core_type = #tpu.core_type<tc>, window_params = [{transform_indices = @transform_0, window_bounds = array<i64: 32, 32>}, {pipeline_mode = #tpu.pipeline_mode<synchronous>, transform_indices = @transform_1, window_bounds = array<i64: 32, 1>}, {pipeline_mode = #tpu.pipeline_mode<synchronous>, transform_indices = @transform_2, window_bounds = array<i64: 32, 1>}, {pipeline_mode = #tpu.pipeline_mode<synchronous>, transform_indices = @transform_3, window_bounds = array<i64: 32, 1>}, {pipeline_mode = #tpu.pipeline_mode<synchronous>, transform_indices = @transform_4, window_bounds = array<i64: 32, 1>}, {transform_indices = @transform_5, window_bounds = array<i64: 32, 32>}]} {
    %c0 = arith.constant 0 : index
    %c0_0 = arith.constant 0 : index
    %0 = vector.load %arg2[%c0, %c0_0] : memref<32x1xf32, #tpu.memory_space<vmem>>, vector<32x1xf32>
    %cst = arith.constant 3.125000e-02 : f32
    %1 = vector.broadcast %cst : f32 to vector<32x1xf32>
    %2 = arith.mulf %0, %1 : vector<32x1xf32>
    %c0_1 = arith.constant 0 : index
    %c0_2 = arith.constant 0 : index
    %3 = vector.load %arg3[%c0_1, %c0_2] : memref<32x1xf32, #tpu.memory_space<vmem>>, vector<32x1xf32>
    %cst_3 = arith.constant 3.125000e-02 : f32
    %4 = vector.broadcast %cst_3 : f32 to vector<32x1xf32>
    %5 = arith.mulf %3, %4 : vector<32x1xf32>
    %6 = arith.mulf %2, %2 : vector<32x1xf32>
    %7 = arith.subf %5, %6 : vector<32x1xf32>
    %c0_4 = arith.constant 0 : index
    %c0_5 = arith.constant 0 : index
    %8 = vector.load %arg4[%c0_4, %c0_5] : memref<32x1xf32, #tpu.memory_space<vmem>>, vector<32x1xf32>
    %cst_6 = arith.constant 9.99999974E-6 : f32
    %9 = vector.broadcast %cst_6 : f32 to vector<32x1xf32>
    %10 = arith.addf %7, %9 : vector<32x1xf32>
    %11 = math.rsqrt %10 : vector<32x1xf32>
    %12 = arith.mulf %8, %11 : vector<32x1xf32>
    %c0_7 = arith.constant 0 : index
    %c0_8 = arith.constant 0 : index
    %13 = vector.load %arg5[%c0_7, %c0_8] : memref<32x1xf32, #tpu.memory_space<vmem>>, vector<32x1xf32>
    %14 = arith.mulf %2, %12 : vector<32x1xf32>
    %15 = arith.subf %13, %14 : vector<32x1xf32>
    %c0_9 = arith.constant 0 : index
    %c0_10 = arith.constant 0 : index
    %16 = vector.load %arg1[%c0_9, %c0_10] : memref<32x32xbf16, #tpu.memory_space<vmem>>, vector<32x32xbf16>
    %17 = arith.extf %16 : vector<32x32xbf16> to vector<32x32xf32>
    %18 = vector.broadcast %12 : vector<32x1xf32> to vector<32x32xf32>
    %19 = arith.mulf %17, %18 : vector<32x32xf32>
    %20 = vector.broadcast %15 : vector<32x1xf32> to vector<32x32xf32>
    %21 = arith.addf %19, %20 : vector<32x32xf32>
    %cst_11 = arith.constant 0.000000e+00 : f32
    %22 = vector.broadcast %cst_11 : f32 to vector<32x32xf32>
    %23 = arith.cmpf ogt, %21, %22 : vector<32x32xf32>
    %cst_12 = arith.constant 2.000000e-01 : f32
    %24 = vector.broadcast %cst_12 : f32 to vector<32x32xf32>
    %25 = arith.mulf %24, %21 : vector<32x32xf32>
    %26 = arith.select %23, %21, %25 : vector<32x32xi1>, vector<32x32xf32>
    %27 = arith.truncf %26 : vector<32x32xf32> to vector<32x32xbf16>
    %c0_13 = arith.constant 0 : index
    %c0_14 = arith.constant 0 : index
    %28 = vector.load %arg6[%c0_13, %c0_14] : memref<32x32xbf16, #tpu.memory_space<vmem>>, vector<32x32xbf16>
    tpu.vector_store %arg6[%c0_13, %c0_14], %27 {strides = array<i32>} : memref<32x32xbf16, #tpu.memory_space<vmem>>, vector<32x32xbf16>,
    return
  }
  func.func @transform_0(%arg0: i32) -> (i32, i32) {
    %c0_i32 = arith.constant 0 : i32
    %c0_i32_0 = arith.constant 0 : i32
    return %c0_i32, %arg0 : i32, i32
  }
  func.func @transform_1(%arg0: i32) -> (i32, i32) {
    %c0_i32 = arith.constant 0 : i32
    %c0_i32_0 = arith.constant 0 : i32
    %c0_i32_1 = arith.constant 0 : i32
    return %c0_i32, %c0_i32_0 : i32, i32
  }
  func.func @transform_2(%arg0: i32) -> (i32, i32) {
    %c0_i32 = arith.constant 0 : i32
    %c0_i32_0 = arith.constant 0 : i32
    %c0_i32_1 = arith.constant 0 : i32
    return %c0_i32, %c0_i32_0 : i32, i32
  }
  func.func @transform_3(%arg0: i32) -> (i32, i32) {
    %c0_i32 = arith.constant 0 : i32
    %c0_i32_0 = arith.constant 0 : i32
    %c0_i32_1 = arith.constant 0 : i32
    return %c0_i32, %c0_i32_0 : i32, i32
  }
  func.func @transform_4(%arg0: i32) -> (i32, i32) {
    %c0_i32 = arith.constant 0 : i32
    %c0_i32_0 = arith.constant 0 : i32
    %c0_i32_1 = arith.constant 0 : i32
    return %c0_i32, %c0_i32_0 : i32, i32
  }
  func.func @transform_5(%arg0: i32) -> (i32, i32) {
    %c0_i32 = arith.constant 0 : i32
    %c0_i32_0 = arith.constant 0 : i32
    return %c0_i32, %arg0 : i32, i32
  }
}

module attributes {stable_mosaic.version = 11 : i64} {
  func.func @_head_mean_kernel(%arg0: memref<512x2xbf16, #tpu.memory_space<vmem>>, %arg1: memref<1x512xbf16, #tpu.memory_space<vmem>>, %arg2: memref<1x1xf32, #tpu.memory_space<vmem>>) attributes {dimension_semantics = [], scalar_prefetch = 0 : i64, scratch_operands = 0 : i64, tpu.core_type = #tpu.core_type<tc>} {
    %c0 = arith.constant 0 : index
    %c0_0 = arith.constant 0 : index
    %0 = vector.load %arg1[%c0, %c0_0] : memref<1x512xbf16, #tpu.memory_space<vmem>>, vector<1x512xbf16>
    %c0_1 = arith.constant 0 : index
    %c0_2 = arith.constant 0 : index
    %1 = vector.load %arg0[%c0_1, %c0_2] : memref<512x2xbf16, #tpu.memory_space<vmem>>, vector<512x2xbf16>
    %cst = arith.constant dense<0.000000e+00> : vector<1x2xf32>
    %2 = tpu.matmul %0, %1, %cst {dimension_numbers = #tpu.dot_dimension_numbers<[1], [0], [0], [1], [0, 0, 1, 1], [], []>} : vector<1x512xbf16>, vector<512x2xbf16>, vector<1x2xf32> -> vector<1x2xf32>
    %cst_3 = arith.constant dense<0.000000e+00> : vector<1xf32>
    %3 = vector.multi_reduction <add>, %2, %cst_3 [1] : vector<1x2xf32> to vector<1xf32>
    %4 = vector.shape_cast %3 : vector<1xf32> to vector<1x1xf32>
    %cst_4 = arith.constant 2.000000e+00 : f32
    %5 = vector.broadcast %cst_4 : f32 to vector<1x1xf32>
    %6 = arith.divf %4, %5 : vector<1x1xf32>
    %c0_5 = arith.constant 0 : index
    %c0_6 = arith.constant 0 : index
    %7 = vector.load %arg2[%c0_5, %c0_6] : memref<1x1xf32, #tpu.memory_space<vmem>>, vector<1x1xf32>
    tpu.vector_store %arg2[%c0_5, %c0_6], %6 {strides = array<i32>} : memref<1x1xf32, #tpu.memory_space<vmem>>, vector<1x1xf32>,
    return
  }
}

</mosaic_0001>

<llo_original>
// kernel: w_discriminator_forward.8
$region0: #{w_discriminator_forward.8}
  #allocation0 [shape = 'u32[]', space=smem, size = 0x4, offset = 0x4, fixed_abs, tag = 'smem constant byte address 0x4 - core index']
  #allocation1 [shape = 'u32[144,128]{1,0:T(1,128)}', space=vmem, size = 0x12000, scoped, tag = 'internal scratch']
  #allocation2 [shape = 'f32[4,1024]{1,0:T(4,128)}', space=vmem, size = 0x4000, scoped, tag = 'scratch operand']
  %s0 = inlined_call_operand.vmem [shape: bf16[48,2048], index: 0, kind: input, shape index: {}]
  %s1 = inlined_call_operand.vmem [shape: bf16[4,48], index: 1, kind: input, shape index: {}]
  %s2 = inlined_call_operand.vmem [shape: bf16[4,2048], index: 2, kind: output, shape index: {}]
  %s3 = sld [smem:[#allocation0]]
  $region72: #{w_discriminator_forward.8} parent=0
    _
  %s5 = ssub.s32 1, %s3
  %s6 = scalar_select 0, %s5, %s3
  $region1: #{w_discriminator_forward.8} parent=0
    #allocation3 [shape = 'u8[196608]{0}', space=vmem, size = 0x30000, scoped, tag = 'input window, operand 0']
    loop: start=0, step=1, limit=4
    $region2: #{w_discriminator_forward.8} parent=1 // loop_pre_header
      _
    $region3: #{w_discriminator_forward.8} parent=1 // loop_header
      %s8 = sphi 0, %s12
      %p9 = scmp.ge.s32.totalorder %s8, 4
      %s15 = sphi 0, %s27
      %s16 = sphi 0, %s23
      %s17 = sphi 0, %s15
      %s18 = sphi 0, %s16
      %s19 = sphi 0, %s17
      %s20 = sphi 0, %s18
      %s32 = sphi 0, %s34
      %s35 = sphi 0, %s32
      %s36 = sphi 0, %s35
      %s52 = sphi 0, %s36
      %s58 = sphi 0, %s60
      %s61 = sphi 0, %s58
      %s62 = sphi 0, %s61
      %s78 = sphi 0, %s62
      %s84 = sphi 0, %s86
      %s87 = sphi 0, %s84
      %s88 = sphi 0, %s87
      %s104 = sphi 0, %s88
    $region4: #{w_discriminator_forward.8} parent=1 // loop_header_branch
      %11 = sbr.rel (%p9) target = $region8
    $region5: #{w_discriminator_forward.8} parent=1 // loop_body
      %s13 = ssub.s32 %s8, 1
      %s14 = ssub.s32 %s8, 2
      %s21 = sadd.s32 1, %s16
      %p22 = scmp.ge.s32.totalorder %s21, 1
      %s23 = scalar_select %p22, 0, %s21
      %s24 = sadd.s32 1, %s15
      %s25 = scalar_select %p22, %s24, %s15
      %p26 = scmp.ge.s32.totalorder %s25, 2
      %s27 = scalar_select %p26, 0, %s25
      %s28 = ssub.s32 %s16, %s23
      %s29 = ssub.s32 %s15, %s27
      %s30 = sor.u32 %s28, %s29
      %p31 = scmp.eq.s32.totalorder %s30, 0
      %s33 = sadd.s32 %s32, 1
      %s34 = scalar_select %p31, %s32, %s33
      %p37 = pneg %p31
      %p38 = scmp.eq.s32.totalorder %s8, 1
      %p39 = por %p37, %p38
      %p40 = scmp.ne.s32.totalorder %s32, %s35
      %p41 = scmp.eq.s32.totalorder %s8, 0
      %p42 = por %p40, %p41
      %p43 = scmp.ne.s32.totalorder %s32, %s35
      %p44 = scmp.eq.s32.totalorder %s13, 1
      %p45 = por %p43, %p44
      %p46 = scmp.ne.s32.totalorder %s35, %s36
      %p47 = scmp.eq.s32.totalorder %s13, 0
      %p48 = por %p46, %p47
      %p49 = scmp.ne.s32.totalorder %s35, %s36
      %p50 = scmp.eq.s32.totalorder %s14, 1
      %p51 = por %p49, %p50
      %p53 = scmp.ne.s32.totalorder %s36, %s52
      %p54 = scmp.eq.s32.totalorder %s14, 0
      %p55 = por %p53, %p54
      %s56 = ssub.s32 %s16, %s23
      %p57 = scmp.eq.s32.totalorder %s56, 0
      %s59 = sadd.s32 %s58, 1
      %s60 = scalar_select %p57, %s58, %s59
      %p63 = pneg %p57
      %p64 = scmp.eq.s32.totalorder %s8, 1
      %p65 = por %p63, %p64
      %p66 = scmp.ne.s32.totalorder %s58, %s61
      %p67 = scmp.eq.s32.totalorder %s8, 0
      %p68 = por %p66, %p67
      %p69 = scmp.ne.s32.totalorder %s58, %s61
      %p70 = scmp.eq.s32.totalorder %s13, 1
      %p71 = por %p69, %p70
      %p72 = scmp.ne.s32.totalorder %s61, %s62
      %p73 = scmp.eq.s32.totalorder %s13, 0
      %p74 = por %p72, %p73
      %p75 = scmp.ne.s32.totalorder %s61, %s62
      %p76 = scmp.eq.s32.totalorder %s14, 1
      %p77 = por %p75, %p76
      %p79 = scmp.ne.s32.totalorder %s62, %s78
      %p80 = scmp.eq.s32.totalorder %s14, 0
      %p81 = por %p79, %p80
      %s82 = ssub.s32 %s15, %s27
      %p83 = scmp.eq.s32.totalorder %s82, 0
      %s85 = sadd.s32 %s84, 1
      %s86 = scalar_select %p83, %s84, %s85
      %p89 = pneg %p83
      %p90 = scmp.eq.s32.totalorder %s8, 1
      %p91 = por %p89, %p90
      %p92 = scmp.ne.s32.totalorder %s84, %s87
      %p93 = scmp.eq.s32.totalorder %s8, 0
      %p94 = por %p92, %p93
      %p95 = scmp.ne.s32.totalorder %s84, %s87
      %p96 = scmp.eq.s32.totalorder %s13, 1
      %p97 = por %p95, %p96
      %p98 = scmp.ne.s32.totalorder %s87, %s88
      %p99 = scmp.eq.s32.totalorder %s13, 0
      %p100 = por %p98, %p99
      %p101 = scmp.ne.s32.totalorder %s87, %s88
      %p102 = scmp.eq.s32.totalorder %s14, 1
      %p103 = por %p101, %p102
      %p105 = scmp.ne.s32.totalorder %s88, %s104
      %p106 = scmp.eq.s32.totalorder %s14, 0
      %p107 = por %p105, %p106
      %p108 = scmp.le.s32.totalorder 1, %s8
      %p109 = scmp.lt.s32.totalorder %s8, 3
      %p110 = pnand %p108, %p109
      %p111 = pneg %p110
      // Predicated region
      $region9: #{w_discriminator_forward.8} parent=5 // pred_check
        _
      $region10: #{w_discriminator_forward.8} parent=5 // pred_check_branch
        %113 = sbr.rel (%p110) target = $region12
      $region11: #{w_discriminator_forward.8} parent=5 // pred_region
        %s114 = ssub.s32 %s8, 1
        // Predicated region
        $region13: #{w_discriminator_forward.8} parent=11 // pred_check
          %p115 = pneg %p74
        $region14: #{w_discriminator_forward.8} parent=11 // pred_check_branch
          %117 = sbr.rel (%p115) target = $region16
        $region15: #{w_discriminator_forward.8} parent=11 // pred_region
          %p118 = scmp.lt.s32.totalorder %s18, 0
          %s119 = scalar_select %p118, %s18, 0
          %s120 = smul.addr %s119, 2
          %s121 = scalar_lea.vmem %s1, %s120
        $region16: #{w_discriminator_forward.8} parent=11 // pred_fallthru
          _
      $region12: #{w_discriminator_forward.8} parent=5 // pred_fallthru
        _
      %p122 = scmp.lt.s32.totalorder %s8, 2
      // Predicated region
      $region17: #{w_discriminator_forward.8} parent=5 // pred_check
        %p123 = pneg %p122
      $region18: #{w_discriminator_forward.8} parent=5 // pred_check_branch
        %125 = sbr.rel (%p123) target = $region20
      $region19: #{w_discriminator_forward.8} parent=5 // pred_region
        // Predicated region
        $region21: #{w_discriminator_forward.8} parent=19 // pred_check
          %p126 = pneg %p42
        $region22: #{w_discriminator_forward.8} parent=19 // pred_check_branch
          %128 = sbr.rel (%p126) target = $region24
        $region23: #{w_discriminator_forward.8} parent=19 // pred_region
          %s129 = sand.u32 %s32, 1
          %s130 = sand.u32 %s32, 1
          %s131 = smul.addr %s130, 192
          %s132 = scalar_lea.vmem [#allocation3], %s131
          %s133 = smul.u32 6, %s16
          %s134 = smul.u32 8, %s15
          %s135 = smul.addr %s133, 16
          %s136 = sadd.s32 %s134, %s135
          %s137 = smul.addr %s136, 4
          %s138 = scalar_lea.vmem %s0, %s137
          // Predicated region
          $region25: #{w_discriminator_forward.8} parent=23 // pred_check
            _
          $region26: #{w_discriminator_forward.8} parent=23 // pred_check_branch
            %140 = sbr.rel (0) target = $region28
          $region27: #{w_discriminator_forward.8} parent=23 // pred_region
            // Predicated region
            $region29: #{w_discriminator_forward.8} parent=27 // pred_check
              _
            $region30: #{w_discriminator_forward.8} parent=27 // pred_check_branch
              %142 = sbr.rel (0) target = $region32
            $region31: #{w_discriminator_forward.8} parent=27 // pred_region
              loop: start=0, step=1, limit=1
              $region33: #{w_discriminator_forward.8} parent=31 // loop_pre_header
                _
              $region34: #{w_discriminator_forward.8} parent=31 // loop_header
                %s144 = sphi 0, %s148
                %p145 = scmp.ge.s32.totalorder %s144, 1
                %s149 = sphi %s138, %s138
                %s150 = sphi %s132, %s132
              $region35: #{w_discriminator_forward.8} parent=31 // loop_header_branch
                %147 = sbr.rel (%p145) target = $region39
              $region36: #{w_discriminator_forward.8} parent=31 // loop_body
                %v151 = vld [vmem:[%s149] sm:$0xff]
                %152 = vst [vmem:[%s150] sm:$0xff] %v151
                %v153 = vld [vmem:[%s149 + $0x8] sm:$0xff]
                %154 = vst [vmem:[%s150 + $0x8] sm:$0xff] %v153
                %v155 = vld [vmem:[%s149 + $0x10] sm:$0xff]
                %156 = vst [vmem:[%s150 + $0x10] sm:$0xff] %v155
                %v157 = vld [vmem:[%s149 + $0x18] sm:$0xff]
                %158 = vst [vmem:[%s150 + $0x18] sm:$0xff] %v157
                %v159 = vld [vmem:[%s149 + $0x40] sm:$0xff]
                %160 = vst [vmem:[%s150 + $0x20] sm:$0xff] %v159
                %v161 = vld [vmem:[%s149 + $0x48] sm:$0xff]
                %162 = vst [vmem:[%s150 + $0x28] sm:$0xff] %v161
                %v163 = vld [vmem:[%s149 + $0x50] sm:$0xff]
                %164 = vst [vmem:[%s150 + $0x30] sm:$0xff] %v163
                %v165 = vld [vmem:[%s149 + $0x58] sm:$0xff]
                %166 = vst [vmem:[%s150 + $0x38] sm:$0xff] %v165
                %v167 = vld [vmem:[%s149 + $0x80] sm:$0xff]
                %168 = vst [vmem:[%s150 + $0x40] sm:$0xff] %v167
                %v169 = vld [vmem:[%s149 + $0x88] sm:$0xff]
                %170 = vst [vmem:[%s150 + $0x48] sm:$0xff] %v169
                %v171 = vld [vmem:[%s149 + $0x90] sm:$0xff]
                %172 = vst [vmem:[%s150 + $0x50] sm:$0xff] %v171
                %v173 = vld [vmem:[%s149 + $0x98] sm:$0xff]
                %174 = vst [vmem:[%s150 + $0x58] sm:$0xff] %v173
                %v175 = vld [vmem:[%s149 + $0xc0] sm:$0xff]
                %176 = vst [vmem:[%s150 + $0x60] sm:$0xff] %v175
                %v177 = vld [vmem:[%s149 + $0xc8] sm:$0xff]
                %178 = vst [vmem:[%s150 + $0x68] sm:$0xff] %v177
                %v179 = vld [vmem:[%s149 + $0xd0] sm:$0xff]
                %180 = vst [vmem:[%s150 + $0x70] sm:$0xff] %v179
                %v181 = vld [vmem:[%s149 + $0xd8] sm:$0xff]
                %182 = vst [vmem:[%s150 + $0x78] sm:$0xff] %v181
                %v183 = vld [vmem:[%s149 + $0x100] sm:$0xff]
                %184 = vst [vmem:[%s150 + $0x80] sm:$0xff] %v183
                %v185 = vld [vmem:[%s149 + $0x108] sm:$0xff]
                %186 = vst [vmem:[%s150 + $0x88] sm:$0xff] %v185
                %v187 = vld [vmem:[%s149 + $0x110] sm:$0xff]
                %188 = vst [vmem:[%s150 + $0x90] sm:$0xff] %v187
                %v189 = vld [vmem:[%s149 + $0x118] sm:$0xff]
                %190 = vst [vmem:[%s150 + $0x98] sm:$0xff] %v189
                %v191 = vld [vmem:[%s149 + $0x140] sm:$0xff]
                %192 = vst [vmem:[%s150 + $0xa0] sm:$0xff] %v191
                %v193 = vld [vmem:[%s149 + $0x148] sm:$0xff]
                %194 = vst [vmem:[%s150 + $0xa8] sm:$0xff] %v193
                %v195 = vld [vmem:[%s149 + $0x150] sm:$0xff]
                %196 = vst [vmem:[%s150 + $0xb0] sm:$0xff] %v195
                %v197 = vld [vmem:[%s149 + $0x158] sm:$0xff]
                %198 = vst [vmem:[%s150 + $0xb8] sm:$0xff] %v197
              $region37: #{w_discriminator_forward.8} parent=31 // loop_footer
                %s148 = sadd.s32 1, %s144
              $region38: #{w_discriminator_forward.8} parent=31 // loop_footer_branch
                %143 = sbr.rel target = $region34
              $region39: #{w_discriminator_forward.8} parent=31 // loop_exit
                _
            $region32: #{w_discriminator_forward.8} parent=27 // pred_fallthru
              _
            // Predicated region
            $region40: #{w_discriminator_forward.8} parent=27 // pred_check
              _
            $region41: #{w_discriminator_forward.8} parent=27 // pred_check_branch
              %200 = sbr.rel target = $region43
            $region42: #{w_discriminator_forward.8} parent=27 // pred_region
              _
            $region43: #{w_discriminator_forward.8} parent=27 // pred_fallthru
              _
          $region28: #{w_discriminator_forward.8} parent=23 // pred_fallthru
            _
          %201 = vnop
        $region24: #{w_discriminator_forward.8} parent=19 // pred_fallthru
          _
      $region20: #{w_discriminator_forward.8} parent=5 // pred_fallthru
        _
      %p202 = scmp.le.s32.totalorder 1, %s8
      %p203 = scmp.lt.s32.totalorder %s8, 3
      %p204 = pnand %p202, %p203
      %p205 = pneg %p204
      // Predicated region
      $region44: #{w_discriminator_forward.8} parent=5 // pred_check
        _
      $region45: #{w_discriminator_forward.8} parent=5 // pred_check_branch
        %207 = sbr.rel (%p204) target = $region47
      $region46: #{w_discriminator_forward.8} parent=5 // pred_region
        %s208 = ssub.s32 %s8, 1
        %s209 = sand.u32 %s35, 1
        %s210 = sand.u32 %s35, 1
        %s211 = smul.addr %s210, 192
        %s212 = scalar_lea.vmem [#allocation3], %s211
        // Predicated region
        $region48: #{w_discriminator_forward.8} parent=46 // pred_check
          %p213 = pneg %p48
        $region49: #{w_discriminator_forward.8} parent=46 // pred_check_branch
          %215 = sbr.rel (%p213) target = $region51
        $region50: #{w_discriminator_forward.8} parent=46 // pred_region
          _
        $region51: #{w_discriminator_forward.8} parent=46 // pred_fallthru
          _
        %s216 = sand.u32 %s35, 1
        %s217 = sand.u32 %s35, 1
        %s218 = smul.addr %s217, 192
        %s219 = scalar_lea.vmem [#allocation3], %s218
        %p220 = pneg %p48
        %p221 = pneg %p45
        %p222 = scmp.lt.s32.totalorder %s18, 0
        %s223 = scalar_select %p222, %s18, 0
        %s224 = smul.addr %s223, 2
        %s225 = scalar_lea.vmem %s1, %s224
        %p226 = pneg %p74
        %p227 = pneg %p71
        %p228 = pneg %p100
        %p229 = pneg %p97
        %s230 = smul.u32 8, %s17
        %p231 = scmp.lt.s32.totalorder %s230, 15
        %s232 = scalar_select %p231, %s230, 15
        %s233 = smul.addr %s232, 2
        %s234 = scalar_lea.vmem %s2, %s233
        %s235 = smul.u32 6, %s18
        %s236 = smul.u32 8, %s17
        %p237 = scmp.lt.s32.totalorder %s18, 0
        %s238 = scalar_select %p237, %s18, 0
        %s239 = smul.addr %s238, 2
        %s240 = scalar_lea.vmem %s1, %s239
        %s241 = smul.u32 8, %s17
        %p242 = scmp.lt.s32.totalorder %s241, 15
        %s243 = scalar_select %p242, %s241, 15
        %s244 = smul.addr %s243, 2
        %s245 = scalar_lea.vmem %s2, %s244
        %s246 = smul.u32 8, %s17
        %p248 = scmp.eq.s32.totalorder %s18, 0
        // Predicated region
        $region52: #{w_discriminator_forward.8} parent=46 // pred_check
          %p249 = pneg %p248
        $region53: #{w_discriminator_forward.8} parent=46 // pred_check_branch
          %251 = sbr.rel (%p249) target = $region55
        $region54: #{w_discriminator_forward.8} parent=46 // pred_region
          %252 = vst [vmem:[#allocation2] sm:$0xff] 0.0
          %253 = vst [vmem:[#allocation2 + $0x8] sm:$0xff] 0.0
          %254 = vst [vmem:[#allocation2 + $0x10] sm:$0xff] 0.0
          %255 = vst [vmem:[#allocation2 + $0x18] sm:$0xff] 0.0
        $region55: #{w_discriminator_forward.8} parent=46 // pred_fallthru
          _
        %v256 = vld [vmem:[#allocation2] sm:$0xff]
        %v257 = vld [vmem:[#allocation2 + $0x8] sm:$0xff]
        %v258 = vld [vmem:[#allocation2 + $0x10] sm:$0xff]
        %v259 = vld [vmem:[#allocation2 + $0x18] sm:$0xff]
        %v260 = vld [vmem:[%s240] sm:$0x3]
        %v261 = vld [vmem:[%s212] sm:$0xff]
        %v262 = vld [vmem:[%s212 + $0x8] sm:$0xff]
        %v263 = vld [vmem:[%s212 + $0x10] sm:$0xff]
        %v264 = vld [vmem:[%s212 + $0x18] sm:$0xff]
        %v265 = vld [vmem:[%s212 + $0x20] sm:$0xff]
        %v266 = vld [vmem:[%s212 + $0x28] sm:$0xff]
        %v267 = vld [vmem:[%s212 + $0x30] sm:$0xff]
        %v268 = vld [vmem:[%s212 + $0x38] sm:$0xff]
        %v269 = vld [vmem:[%s212 + $0x40] sm:$0xff]
        %v270 = vld [vmem:[%s212 + $0x48] sm:$0xff]
        %v271 = vld [vmem:[%s212 + $0x50] sm:$0xff]
        %v272 = vld [vmem:[%s212 + $0x58] sm:$0xff]
        %v273 = vld [vmem:[%s212 + $0x60] sm:$0xff]
        %v274 = vld [vmem:[%s212 + $0x68] sm:$0xff]
        %v275 = vld [vmem:[%s212 + $0x70] sm:$0xff]
        %v276 = vld [vmem:[%s212 + $0x78] sm:$0xff]
        %v277 = vld [vmem:[%s212 + $0x80] sm:$0xff]
        %v278 = vld [vmem:[%s212 + $0x88] sm:$0xff]
        %v279 = vld [vmem:[%s212 + $0x90] sm:$0xff]
        %v280 = vld [vmem:[%s212 + $0x98] sm:$0xff]
        %v281 = vld [vmem:[%s212 + $0xa0] sm:$0xff]
        %v282 = vld [vmem:[%s212 + $0xa8] sm:$0xff]
        %v283 = vld [vmem:[%s212 + $0xb0] sm:$0xff]
        %v284 = vld [vmem:[%s212 + $0xb8] sm:$0xff]
        %v309 = vunpack.c.l.b16 %v261
        %v310 = vunpack.c.h.b16 %v261
        %v311 = vunpack.c.l.b16 %v262
        %v312 = vunpack.c.h.b16 %v262
        %v313 = vunpack.c.l.b16 %v263
        %v314 = vunpack.c.h.b16 %v263
        %v315 = vunpack.c.l.b16 %v264
        %v316 = vunpack.c.h.b16 %v264
        %v317 = vunpack.c.l.b16 %v265
        %v318 = vunpack.c.h.b16 %v265
        %v319 = vunpack.c.l.b16 %v266
        %v320 = vunpack.c.h.b16 %v266
        %v321 = vunpack.c.l.b16 %v267
        %v322 = vunpack.c.h.b16 %v267
        %v323 = vunpack.c.l.b16 %v268
        %v324 = vunpack.c.h.b16 %v268
        %v325 = vunpack.c.l.b16 %v269
        %v326 = vunpack.c.h.b16 %v269
        %v327 = vunpack.c.l.b16 %v270
        %v328 = vunpack.c.h.b16 %v270
        %v329 = vunpack.c.l.b16 %v271
        %v330 = vunpack.c.h.b16 %v271
        %v331 = vunpack.c.l.b16 %v272
        %v332 = vunpack.c.h.b16 %v272
        %v333 = vunpack.c.l.b16 %v273
        %v334 = vunpack.c.h.b16 %v273
        %v335 = vunpack.c.l.b16 %v274
        %v336 = vunpack.c.h.b16 %v274
        %v337 = vunpack.c.l.b16 %v275
        %v338 = vunpack.c.h.b16 %v275
        %v339 = vunpack.c.l.b16 %v276
        %v340 = vunpack.c.h.b16 %v276
        %v341 = vunpack.c.l.b16 %v277
        %v342 = vunpack.c.h.b16 %v277
        %v343 = vunpack.c.l.b16 %v278
        %v344 = vunpack.c.h.b16 %v278
        %v345 = vunpack.c.l.b16 %v279
        %v346 = vunpack.c.h.b16 %v279
        %v347 = vunpack.c.l.b16 %v280
        %v348 = vunpack.c.h.b16 %v280
        %v349 = vunpack.c.l.b16 %v281
        %v350 = vunpack.c.h.b16 %v281
        %v351 = vunpack.c.l.b16 %v282
        %v352 = vunpack.c.h.b16 %v282
        %v353 = vunpack.c.l.b16 %v283
        %v354 = vunpack.c.h.b16 %v283
        %v355 = vunpack.c.l.b16 %v284
        %v356 = vunpack.c.h.b16 %v284
        %v357 = vpack.c.b16 %v317, %v309
        %v358 = vpack.c.b16 %v318, %v310
        %v359 = vpack.c.b16 %v319, %v311
        %v360 = vpack.c.b16 %v320, %v312
        %v361 = vpack.c.b16 %v321, %v313
        %v362 = vpack.c.b16 %v322, %v314
        %v363 = vpack.c.b16 %v323, %v315
        %v364 = vpack.c.b16 %v324, %v316
        %v365 = vpack.c.b16 %v333, %v325
        %v366 = vpack.c.b16 %v334, %v326
        %v367 = vpack.c.b16 %v335, %v327
        %v368 = vpack.c.b16 %v336, %v328
        %v369 = vpack.c.b16 %v337, %v329
        %v370 = vpack.c.b16 %v338, %v330
        %v371 = vpack.c.b16 %v339, %v331
        %v372 = vpack.c.b16 %v340, %v332
        %v373 = vpack.c.b16 %v349, %v341
        %v374 = vpack.c.b16 %v350, %v342
        %v375 = vpack.c.b16 %v351, %v343
        %v376 = vpack.c.b16 %v352, %v344
        %v377 = vpack.c.b16 %v353, %v345
        %v378 = vpack.c.b16 %v354, %v346
        %v379 = vpack.c.b16 %v355, %v347
        %v380 = vpack.c.b16 %v356, %v348
        %vm405 = vcmask 392192
        %v407 = vsel %vm405, %v260, 0
        %409 = vmatprep.subr.bf16.mxu0 0
        %410 = vmatpush1.bf16.msra.mxu0 0
        %411 = vmatprep.subr.bf16.mxu0 0
        %412 = vmatpush1.bf16.msra.mxu0 0
        %413 = vmatprep.subr.bf16.mxu0 0
        %414 = vmatpush1.bf16.msra.mxu0 0
        %415 = vmatprep.subr.bf16.mxu0 0
        %416 = vmatpush1.bf16.msra.mxu0 0
        %417 = vmatprep.subr.bf16.mxu0 0
        %418 = vmatpush1.bf16.msra.mxu0 0
        %419 = vmatprep.subr.bf16.mxu0 %v374
        %420 = vmatpush1.bf16.msra.mxu0 %v373
        %421 = vmatprep.subr.bf16.mxu0 %v366
        %422 = vmatpush1.bf16.msra.mxu0 %v365
        %423 = vmatprep.subr.bf16.mxu0 %v358
        %424 = vmatpush1.bf16.msra.mxu0 %v357
        %425 = vmatprep.subr.bf16.mxu0 0
        %426 = vmatpush2.bf16.msra.mxu0 0
        %427 = vmatprep.subr.bf16.mxu0 0
        %428 = vmatpush2.bf16.msra.mxu0 0
        %429 = vmatprep.subr.bf16.mxu0 0
        %430 = vmatpush2.bf16.msra.mxu0 0
        %431 = vmatprep.subr.bf16.mxu0 0
        %432 = vmatpush2.bf16.msra.mxu0 0
        %433 = vmatprep.subr.bf16.mxu0 0
        %434 = vmatpush2.bf16.msra.mxu0 0
        %435 = vmatprep.subr.bf16.mxu0 0
        %436 = vmatpush2.bf16.msra.mxu0 0
        %437 = vmatprep.subr.bf16.mxu0 0
        %438 = vmatpush2.bf16.msra.mxu0 0
        %439 = vmatprep.subr.bf16.mxu0 0
        %440 = vmatpush2.bf16.msra.mxu0 0
        %441 = vmatprep.mubr.bf16.mxu0 0
        %442 = vmatmul.mubr.bf16.gmra.mxu0 %v407
        %v443 = vpop.f32.mrf.mxu0
        %v444 = vadd.f32 0.0, %v443
        %v445 = vpop.f32.mrf.mxu0
        %v446 = vadd.f32 0.0, %v445
        %v447 = vpop.f32.mrf.mxu0
        %v448 = vpop.f32.mrf.mxu0
        %449 = vdwg.mxu0
        %450 = vmatprep.subr.bf16.mxu0 0
        %451 = vmatpush1.bf16.msra.mxu0 0
        %452 = vmatprep.subr.bf16.mxu0 0
        %453 = vmatpush1.bf16.msra.mxu0 0
        %454 = vmatprep.subr.bf16.mxu0 0
        %455 = vmatpush1.bf16.msra.mxu0 0
        %456 = vmatprep.subr.bf16.mxu0 0
        %457 = vmatpush1.bf16.msra.mxu0 0
        %458 = vmatprep.subr.bf16.mxu0 0
        %459 = vmatpush1.bf16.msra.mxu0 0
        %460 = vmatprep.subr.bf16.mxu0 %v376
        %461 = vmatpush1.bf16.msra.mxu0 %v375
        %462 = vmatprep.subr.bf16.mxu0 %v368
        %463 = vmatpush1.bf16.msra.mxu0 %v367
        %464 = vmatprep.subr.bf16.mxu0 %v360
        %465 = vmatpush1.bf16.msra.mxu0 %v359
        %466 = vmatprep.subr.bf16.mxu0 0
        %467 = vmatpush2.bf16.msra.mxu0 0
        %468 = vmatprep.subr.bf16.mxu0 0
        %469 = vmatpush2.bf16.msra.mxu0 0
        %470 = vmatprep.subr.bf16.mxu0 0
        %471 = vmatpush2.bf16.msra.mxu0 0
        %472 = vmatprep.subr.bf16.mxu0 0
        %473 = vmatpush2.bf16.msra.mxu0 0
        %474 = vmatprep.subr.bf16.mxu0 0
        %475 = vmatpush2.bf16.msra.mxu0 0
        %476 = vmatprep.subr.bf16.mxu0 0
        %477 = vmatpush2.bf16.msra.mxu0 0
        %478 = vmatprep.subr.bf16.mxu0 0
        %479 = vmatpush2.bf16.msra.mxu0 0
        %480 = vmatprep.subr.bf16.mxu0 0
        %481 = vmatpush2.bf16.msra.mxu0 0
        %482 = vmatprep.mubr.bf16.mxu0 0
        %483 = vmatmul.mubr.bf16.gmra.mxu0 %v407
        %v484 = vpop.f32.mrf.mxu0
        %v485 = vadd.f32 0.0, %v484
        %v486 = vpop.f32.mrf.mxu0
        %v487 = vadd.f32 0.0, %v486
        %v488 = vpop.f32.mrf.mxu0
        %v489 = vpop.f32.mrf.mxu0
        %490 = vdwg.mxu0
        %491 = vmatprep.subr.bf16.mxu0 0
        %492 = vmatpush1.bf16.msra.mxu0 0
        %493 = vmatprep.subr.bf16.mxu0 0
        %494 = vmatpush1.bf16.msra.mxu0 0
        %495 = vmatprep.subr.bf16.mxu0 0
        %496 = vmatpush1.bf16.msra.mxu0 0
        %497 = vmatprep.subr.bf16.mxu0 0
        %498 = vmatpush1.bf16.msra.mxu0 0
        %499 = vmatprep.subr.bf16.mxu0 0
        %500 = vmatpush1.bf16.msra.mxu0 0
        %501 = vmatprep.subr.bf16.mxu0 %v378
        %502 = vmatpush1.bf16.msra.mxu0 %v377
        %503 = vmatprep.subr.bf16.mxu0 %v370
        %504 = vmatpush1.bf16.msra.mxu0 %v369
        %505 = vmatprep.subr.bf16.mxu0 %v362
        %506 = vmatpush1.bf16.msra.mxu0 %v361
        %507 = vmatprep.subr.bf16.mxu0 0
        %508 = vmatpush2.bf16.msra.mxu0 0
        %509 = vmatprep.subr.bf16.mxu0 0
        %510 = vmatpush2.bf16.msra.mxu0 0
        %511 = vmatprep.subr.bf16.mxu0 0
        %512 = vmatpush2.bf16.msra.mxu0 0
        %513 = vmatprep.subr.bf16.mxu0 0
        %514 = vmatpush2.bf16.msra.mxu0 0
        %515 = vmatprep.subr.bf16.mxu0 0
        %516 = vmatpush2.bf16.msra.mxu0 0
        %517 = vmatprep.subr.bf16.mxu0 0
        %518 = vmatpush2.bf16.msra.mxu0 0
        %519 = vmatprep.subr.bf16.mxu0 0
        %520 = vmatpush2.bf16.msra.mxu0 0
        %521 = vmatprep.subr.bf16.mxu0 0
        %522 = vmatpush2.bf16.msra.mxu0 0
        %523 = vmatprep.mubr.bf16.mxu0 0
        %524 = vmatmul.mubr.bf16.gmra.mxu0 %v407
        %v525 = vpop.f32.mrf.mxu0
        %v526 = vadd.f32 0.0, %v525
        %v527 = vpop.f32.mrf.mxu0
        %v528 = vadd.f32 0.0, %v527
        %v529 = vpop.f32.mrf.mxu0
        %v530 = vpop.f32.mrf.mxu0
        %531 = vdwg.mxu0
        %532 = vmatprep.subr.bf16.mxu0 0
        %533 = vmatpush1.bf16.msra.mxu0 0
        %534 = vmatprep.subr.bf16.mxu0 0
        %535 = vmatpush1.bf16.msra.mxu0 0
        %536 = vmatprep.subr.bf16.mxu0 0
        %537 = vmatpush1.bf16.msra.mxu0 0
        %538 = vmatprep.subr.bf16.mxu0 0
        %539 = vmatpush1.bf16.msra.mxu0 0
        %540 = vmatprep.subr.bf16.mxu0 0
        %541 = vmatpush1.bf16.msra.mxu0 0
        %542 = vmatprep.subr.bf16.mxu0 %v380
        %543 = vmatpush1.bf16.msra.mxu0 %v379
        %544 = vmatprep.subr.bf16.mxu0 %v372
        %545 = vmatpush1.bf16.msra.mxu0 %v371
        %546 = vmatprep.subr.bf16.mxu0 %v364
        %547 = vmatpush1.bf16.msra.mxu0 %v363
        %548 = vmatprep.subr.bf16.mxu0 0
        %549 = vmatpush2.bf16.msra.mxu0 0
        %550 = vmatprep.subr.bf16.mxu0 0
        %551 = vmatpush2.bf16.msra.mxu0 0
        %552 = vmatprep.subr.bf16.mxu0 0
        %553 = vmatpush2.bf16.msra.mxu0 0
        %554 = vmatprep.subr.bf16.mxu0 0
        %555 = vmatpush2.bf16.msra.mxu0 0
        %556 = vmatprep.subr.bf16.mxu0 0
        %557 = vmatpush2.bf16.msra.mxu0 0
        %558 = vmatprep.subr.bf16.mxu0 0
        %559 = vmatpush2.bf16.msra.mxu0 0
        %560 = vmatprep.subr.bf16.mxu0 0
        %561 = vmatpush2.bf16.msra.mxu0 0
        %562 = vmatprep.subr.bf16.mxu0 0
        %563 = vmatpush2.bf16.msra.mxu0 0
        %564 = vmatprep.mubr.bf16.mxu0 0
        %565 = vmatmul.mubr.bf16.gmra.mxu0 %v407
        %v566 = vpop.f32.mrf.mxu0
        %v567 = vadd.f32 0.0, %v566
        %v568 = vpop.f32.mrf.mxu0
        %v569 = vadd.f32 0.0, %v568
        %v570 = vpop.f32.mrf.mxu0
        %v571 = vpop.f32.mrf.mxu0
        %572 = vdwg.mxu0
        %v581 = vcombine.low %v444, %v446
        %v582 = vcombine.low %v485, %v487
        %v583 = vcombine.low %v526, %v528
        %v584 = vcombine.low %v567, %v569
        %v589 = vadd.f32 %v256, %v581
        %v590 = vadd.f32 %v257, %v582
        %v591 = vadd.f32 %v258, %v583
        %v592 = vadd.f32 %v259, %v584
        %593 = vst [vmem:[#allocation2] sm:$0xff] %v589
        %594 = vst [vmem:[#allocation2 + $0x8] sm:$0xff] %v590
        %595 = vst [vmem:[#allocation2 + $0x10] sm:$0xff] %v591
        %596 = vst [vmem:[#allocation2 + $0x18] sm:$0xff] %v592
        // Predicated region
        $region56: #{w_discriminator_forward.8} parent=46 // pred_check
          %p597 = pneg %p248
        $region57: #{w_discriminator_forward.8} parent=46 // pred_check_branch
          %599 = sbr.rel (%p597) target = $region59
        $region58: #{w_discriminator_forward.8} parent=46 // pred_region
          %v600 = vld [vmem:[#allocation2] sm:$0xff]
          %v601 = vld [vmem:[#allocation2 + $0x8] sm:$0xff]
          %v602 = vld [vmem:[#allocation2 + $0x10] sm:$0xff]
          %v603 = vld [vmem:[#allocation2 + $0x18] sm:$0xff]
          %vm604 = vcmp.gt.f32.partialorder %v600, 0.0
          %vm605 = vcmp.gt.f32.partialorder %v601, 0.0
          %vm606 = vcmp.gt.f32.partialorder %v602, 0.0
          %vm607 = vcmp.gt.f32.partialorder %v603, 0.0
          %v608 = vmul.f32 %v600, 0.2
          %v609 = vmul.f32 %v601, 0.2
          %v610 = vmul.f32 %v602, 0.2
          %v611 = vmul.f32 %v603, 0.2
          %v612 = vsel %vm604, %v600, %v608
          %v613 = vsel %vm605, %v601, %v609
          %v614 = vsel %vm606, %v602, %v610
          %v615 = vsel %vm607, %v603, %v611
          %v620 = vcombine.high %v612, %v612
          %v621 = vcombine.high %v613, %v613
          %v622 = vcombine.high %v614, %v614
          %v623 = vcombine.high %v615, %v615
          %v628 = vpack.c.bf16 %v612, %v612
          %v629 = vpack.c.bf16 %v620, %v620
          %v630 = vpack.c.bf16 %v613, %v613
          %v631 = vpack.c.bf16 %v621, %v621
          %v632 = vpack.c.bf16 %v614, %v614
          %v633 = vpack.c.bf16 %v622, %v622
          %v634 = vpack.c.bf16 %v615, %v615
          %v635 = vpack.c.bf16 %v623, %v623
          %v644 = vcombine.low %v628, %v629
          %v645 = vcombine.low %v630, %v631
          %v647 = vunpack.c.l.s4 1983009808
          %v648 = vunpack.c.0.s8 %v647
          %v649 = vlaneseq
          %v650 = vshrl.u32 %v649, 7
          %v651 = vsub.s32 %v648, %v650
          %v652 = vrot.slane %v644, %v651
          %v654 = vunpack.c.l.s4 1983009808
          %v655 = vunpack.c.0.s8 %v654
          %v656 = vlaneseq
          %v657 = vshrl.u32 %v656, 7
          %v658 = vsub.s32 %v655, %v657
          %v659 = vrot.slane %v645, %v658
          %v660 = vcombine.low %v652, %v659
          %v661 = vcombine.low %v632, %v633
          %v662 = vcombine.low %v634, %v635
          %v664 = vunpack.c.l.s4 1983009808
          %v665 = vunpack.c.0.s8 %v664
          %v666 = vlaneseq
          %v667 = vshrl.u32 %v666, 7
          %v668 = vsub.s32 %v665, %v667
          %v669 = vrot.slane %v661, %v668
          %v671 = vunpack.c.l.s4 1983009808
          %v672 = vunpack.c.0.s8 %v671
          %v673 = vlaneseq
          %v674 = vshrl.u32 %v673, 7
          %v675 = vsub.s32 %v672, %v674
          %v676 = vrot.slane %v662, %v675
          %v677 = vcombine.low %v669, %v676
          %680 = vst [vmem:[%s245] sm:$0xff] %v660
          %681 = vst [vmem:[%s245 + $0x8] sm:$0xff] %v677
        $region59: #{w_discriminator_forward.8} parent=46 // pred_fallthru
          _
        %s682 = smul.u32 8, %s17
        %p683 = scmp.lt.s32.totalorder %s682, 15
        %s684 = scalar_select %p683, %s682, 15
        %s685 = smul.addr %s684, 2
        %s686 = scalar_lea.vmem %s2, %s685
        // Predicated region
        $region60: #{w_discriminator_forward.8} parent=46 // pred_check
          %p687 = pneg %p97
        $region61: #{w_discriminator_forward.8} parent=46 // pred_check_branch
          %689 = sbr.rel (%p687) target = $region63
        $region62: #{w_discriminator_forward.8} parent=46 // pred_region
          %s690 = smul.u32 8, %s17
        $region63: #{w_discriminator_forward.8} parent=46 // pred_fallthru
          _
      $region47: #{w_discriminator_forward.8} parent=5 // pred_fallthru
        _
      %p691 = scmp.le.s32.totalorder 2, %s8
      // Predicated region
      $region64: #{w_discriminator_forward.8} parent=5 // pred_check
        %p692 = pneg %p691
      $region65: #{w_discriminator_forward.8} parent=5 // pred_check_branch
        %694 = sbr.rel (%p692) target = $region67
      $region66: #{w_discriminator_forward.8} parent=5 // pred_region
        %s695 = ssub.s32 %s8, 2
        // Predicated region
        $region68: #{w_discriminator_forward.8} parent=66 // pred_check
          %p696 = pneg %p103
        $region69: #{w_discriminator_forward.8} parent=66 // pred_check_branch
          %698 = sbr.rel (%p696) target = $region71
        $region70: #{w_discriminator_forward.8} parent=66 // pred_region
          %s699 = smul.u32 8, %s19
          %p700 = scmp.lt.s32.totalorder %s699, 15
          %s701 = scalar_select %p700, %s699, 15
          %s702 = smul.addr %s701, 2
          %s703 = scalar_lea.vmem %s2, %s702
        $region71: #{w_discriminator_forward.8} parent=66 // pred_fallthru
          _
      $region67: #{w_discriminator_forward.8} parent=5 // pred_fallthru
        _
    $region6: #{w_discriminator_forward.8} parent=1 // loop_footer
      %s12 = sadd.s32 1, %s8
    $region7: #{w_discriminator_forward.8} parent=1 // loop_footer_branch
      %7 = sbr.rel target = $region3
    $region8: #{w_discriminator_forward.8} parent=1 // loop_exit
      _

// kernel: w_discriminator_forward.9
$region0: #{w_discriminator_forward.9}
  #allocation0 [shape = 'u32[]', space=smem, size = 0x4, offset = 0x4, fixed_abs, tag = 'smem constant byte address 0x4 - core index']
  #allocation1 [shape = 'u32[144,128]{1,0:T(1,128)}', space=vmem, size = 0x12000, scoped, tag = 'internal scratch']
  #allocation2 [shape = 'f32[8,256]{1,0:T(8,128)}', space=vmem, size = 0x2000, scoped, tag = 'scratch operand']
  %s0 = inlined_call_operand.vmem [shape: bf16[64,512], index: 0, kind: input, shape index: {}]
  %s1 = inlined_call_operand.vmem [shape: bf16[8,64], index: 1, kind: input, shape index: {}]
  %s2 = inlined_call_operand.vmem [shape: bf16[8,512], index: 2, kind: output, shape index: {0}]
  %s3 = inlined_call_operand.vmem [shape: f32[2,1,8], index: 3, kind: output, shape index: {1}]
  %s4 = inlined_call_operand.vmem [shape: f32[2,1,8], index: 4, kind: output, shape index: {2}]
  %5 = xla_tuple %s2, %s3, %s4
  %s6 = sld [smem:[#allocation0]]
  $region103: #{w_discriminator_forward.9} parent=0
    _
  %s8 = ssub.s32 1, %s6
  %s9 = scalar_select 0, %s8, %s6
  $region1: #{w_discriminator_forward.9} parent=0
    #allocation3 [shape = 'u8[65536]{0}', space=vmem, size = 0x10000, scoped, tag = 'input window, operand 0']
    loop: start=0, step=1, limit=4
    $region2: #{w_discriminator_forward.9} parent=1 // loop_pre_header
      _
    $region3: #{w_discriminator_forward.9} parent=1 // loop_header
      %s11 = sphi 0, %s15
      %p12 = scmp.ge.s32.totalorder %s11, 4
      %s18 = sphi 0, %s30
      %s19 = sphi 0, %s26
      %s20 = sphi 0, %s18
      %s21 = sphi 0, %s19
      %s22 = sphi 0, %s20
      %s23 = sphi 0, %s21
      %s35 = sphi 0, %s37
      %s38 = sphi 0, %s35
      %s39 = sphi 0, %s38
      %s55 = sphi 0, %s39
      %s61 = sphi 0, %s63
      %s64 = sphi 0, %s61
      %s65 = sphi 0, %s64
      %s81 = sphi 0, %s65
      %s87 = sphi 0, %s89
      %s90 = sphi 0, %s87
      %s91 = sphi 0, %s90
      %s107 = sphi 0, %s91
      %s113 = sphi 0, %s115
      %s116 = sphi 0, %s113
      %s117 = sphi 0, %s116
      %s133 = sphi 0, %s117
      %s139 = sphi 0, %s141
      %s142 = sphi 0, %s139
      %s143 = sphi 0, %s142
      %s159 = sphi 0, %s143
    $region4: #{w_discriminator_forward.9} parent=1 // loop_header_branch
      %14 = sbr.rel (%p12) target = $region8
    $region5: #{w_discriminator_forward.9} parent=1 // loop_body
      %s16 = ssub.s32 %s11, 1
      %s17 = ssub.s32 %s11, 2
      %s24 = sadd.s32 1, %s19
      %p25 = scmp.ge.s32.totalorder %s24, 1
      %s26 = scalar_select %p25, 0, %s24
      %s27 = sadd.s32 1, %s18
      %s28 = scalar_select %p25, %s27, %s18
      %p29 = scmp.ge.s32.totalorder %s28, 2
      %s30 = scalar_select %p29, 0, %s28
      %s31 = ssub.s32 %s19, %s26
      %s32 = ssub.s32 %s18, %s30
      %s33 = sor.u32 %s31, %s32
      %p34 = scmp.eq.s32.totalorder %s33, 0
      %s36 = sadd.s32 %s35, 1
      %s37 = scalar_select %p34, %s35, %s36
      %p40 = pneg %p34
      %p41 = scmp.eq.s32.totalorder %s11, 1
      %p42 = por %p40, %p41
      %p43 = scmp.ne.s32.totalorder %s35, %s38
      %p44 = scmp.eq.s32.totalorder %s11, 0
      %p45 = por %p43, %p44
      %p46 = scmp.ne.s32.totalorder %s35, %s38
      %p47 = scmp.eq.s32.totalorder %s16, 1
      %p48 = por %p46, %p47
      %p49 = scmp.ne.s32.totalorder %s38, %s39
      %p50 = scmp.eq.s32.totalorder %s16, 0
      %p51 = por %p49, %p50
      %p52 = scmp.ne.s32.totalorder %s38, %s39
      %p53 = scmp.eq.s32.totalorder %s17, 1
      %p54 = por %p52, %p53
      %p56 = scmp.ne.s32.totalorder %s39, %s55
      %p57 = scmp.eq.s32.totalorder %s17, 0
      %p58 = por %p56, %p57
      %s59 = ssub.s32 %s19, %s26
      %p60 = scmp.eq.s32.totalorder %s59, 0
      %s62 = sadd.s32 %s61, 1
      %s63 = scalar_select %p60, %s61, %s62
      %p66 = pneg %p60
      %p67 = scmp.eq.s32.totalorder %s11, 1
      %p68 = por %p66, %p67
      %p69 = scmp.ne.s32.totalorder %s61, %s64
      %p70 = scmp.eq.s32.totalorder %s11, 0
      %p71 = por %p69, %p70
      %p72 = scmp.ne.s32.totalorder %s61, %s64
      %p73 = scmp.eq.s32.totalorder %s16, 1
      %p74 = por %p72, %p73
      %p75 = scmp.ne.s32.totalorder %s64, %s65
      %p76 = scmp.eq.s32.totalorder %s16, 0
      %p77 = por %p75, %p76
      %p78 = scmp.ne.s32.totalorder %s64, %s65
      %p79 = scmp.eq.s32.totalorder %s17, 1
      %p80 = por %p78, %p79
      %p82 = scmp.ne.s32.totalorder %s65, %s81
      %p83 = scmp.eq.s32.totalorder %s17, 0
      %p84 = por %p82, %p83
      %s85 = ssub.s32 %s18, %s30
      %p86 = scmp.eq.s32.totalorder %s85, 0
      %s88 = sadd.s32 %s87, 1
      %s89 = scalar_select %p86, %s87, %s88
      %p92 = pneg %p86
      %p93 = scmp.eq.s32.totalorder %s11, 1
      %p94 = por %p92, %p93
      %p95 = scmp.ne.s32.totalorder %s87, %s90
      %p96 = scmp.eq.s32.totalorder %s11, 0
      %p97 = por %p95, %p96
      %p98 = scmp.ne.s32.totalorder %s87, %s90
      %p99 = scmp.eq.s32.totalorder %s16, 1
      %p100 = por %p98, %p99
      %p101 = scmp.ne.s32.totalorder %s90, %s91
      %p102 = scmp.eq.s32.totalorder %s16, 0
      %p103 = por %p101, %p102
      %p104 = scmp.ne.s32.totalorder %s90, %s91
      %p105 = scmp.eq.s32.totalorder %s17, 1
      %p106 = por %p104, %p105
      %p108 = scmp.ne.s32.totalorder %s91, %s107
      %p109 = scmp.eq.s32.totalorder %s17, 0
      %p110 = por %p108, %p109
      %s111 = ssub.s32 %s18, %s30
      %p112 = scmp.eq.s32.totalorder %s111, 0
      %s114 = sadd.s32 %s113, 1
      %s115 = scalar_select %p112, %s113, %s114
      %p118 = pneg %p112
      %p119 = scmp.eq.s32.totalorder %s11, 1
      %p120 = por %p118, %p119
      %p121 = scmp.ne.s32.totalorder %s113, %s116
      %p122 = scmp.eq.s32.totalorder %s11, 0
      %p123 = por %p121, %p122
      %p124 = scmp.ne.s32.totalorder %s113, %s116
      %p125 = scmp.eq.s32.totalorder %s16, 1
      %p126 = por %p124, %p125
      %p127 = scmp.ne.s32.totalorder %s116, %s117
      %p128 = scmp.eq.s32.totalorder %s16, 0
      %p129 = por %p127, %p128
      %p130 = scmp.ne.s32.totalorder %s116, %s117
      %p131 = scmp.eq.s32.totalorder %s17, 1
      %p132 = por %p130, %p131
      %p134 = scmp.ne.s32.totalorder %s117, %s133
      %p135 = scmp.eq.s32.totalorder %s17, 0
      %p136 = por %p134, %p135
      %s137 = ssub.s32 %s18, %s30
      %p138 = scmp.eq.s32.totalorder %s137, 0
      %s140 = sadd.s32 %s139, 1
      %s141 = scalar_select %p138, %s139, %s140
      %p144 = pneg %p138
      %p145 = scmp.eq.s32.totalorder %s11, 1
      %p146 = por %p144, %p145
      %p147 = scmp.ne.s32.totalorder %s139, %s142
      %p148 = scmp.eq.s32.totalorder %s11, 0
      %p149 = por %p147, %p148
      %p150 = scmp.ne.s32.totalorder %s139, %s142
      %p151 = scmp.eq.s32.totalorder %s16, 1
      %p152 = por %p150, %p151
      %p153 = scmp.ne.s32.totalorder %s142, %s143
      %p154 = scmp.eq.s32.totalorder %s16, 0
      %p155 = por %p153, %p154
      %p156 = scmp.ne.s32.totalorder %s142, %s143
      %p157 = scmp.eq.s32.totalorder %s17, 1
      %p158 = por %p156, %p157
      %p160 = scmp.ne.s32.totalorder %s143, %s159
      %p161 = scmp.eq.s32.totalorder %s17, 0
      %p162 = por %p160, %p161
      %p163 = scmp.le.s32.totalorder 1, %s11
      %p164 = scmp.lt.s32.totalorder %s11, 3
      %p165 = pnand %p163, %p164
      %p166 = pneg %p165
      // Predicated region
      $region9: #{w_discriminator_forward.9} parent=5 // pred_check
        _
      $region10: #{w_discriminator_forward.9} parent=5 // pred_check_branch
        %168 = sbr.rel (%p165) target = $region12
      $region11: #{w_discriminator_forward.9} parent=5 // pred_region
        %s169 = ssub.s32 %s11, 1
        // Predicated region
        $region13: #{w_discriminator_forward.9} parent=11 // pred_check
          %p170 = pneg %p77
        $region14: #{w_discriminator_forward.9} parent=11 // pred_check_branch
          %172 = sbr.rel (%p170) target = $region16
        $region15: #{w_discriminator_forward.9} parent=11 // pred_region
          %p173 = scmp.lt.s32.totalorder %s21, 0
          %s174 = scalar_select %p173, %s21, 0
          %s175 = smul.addr %s174, 4
          %s176 = scalar_lea.vmem %s1, %s175
        $region16: #{w_discriminator_forward.9} parent=11 // pred_fallthru
          _
      $region12: #{w_discriminator_forward.9} parent=5 // pred_fallthru
        _
      %p177 = scmp.lt.s32.totalorder %s11, 2
      // Predicated region
      $region17: #{w_discriminator_forward.9} parent=5 // pred_check
        %p178 = pneg %p177
      $region18: #{w_discriminator_forward.9} parent=5 // pred_check_branch
        %180 = sbr.rel (%p178) target = $region20
      $region19: #{w_discriminator_forward.9} parent=5 // pred_region
        // Predicated region
        $region21: #{w_discriminator_forward.9} parent=19 // pred_check
          %p181 = pneg %p45
        $region22: #{w_discriminator_forward.9} parent=19 // pred_check_branch
          %183 = sbr.rel (%p181) target = $region24
        $region23: #{w_discriminator_forward.9} parent=19 // pred_region
          %s184 = sand.u32 %s35, 1
          %s185 = sand.u32 %s35, 1
          %s186 = smul.addr %s185, 64
          %s187 = scalar_lea.vmem [#allocation3], %s186
          %s188 = smul.u32 8, %s19
          %s189 = smul.u32 2, %s18
          %s190 = smul.addr %s188, 4
          %s191 = sadd.s32 %s189, %s190
          %s192 = smul.addr %s191, 4
          %s193 = scalar_lea.vmem %s0, %s192
          // Predicated region
          $region25: #{w_discriminator_forward.9} parent=23 // pred_check
            _
          $region26: #{w_discriminator_forward.9} parent=23 // pred_check_branch
            %195 = sbr.rel (0) target = $region28
          $region27: #{w_discriminator_forward.9} parent=23 // pred_region
            // Predicated region
            $region29: #{w_discriminator_forward.9} parent=27 // pred_check
              _
            $region30: #{w_discriminator_forward.9} parent=27 // pred_check_branch
              %197 = sbr.rel (0) target = $region32
            $region31: #{w_discriminator_forward.9} parent=27 // pred_region
              // Predicated region
              $region44: #{w_discriminator_forward.9} parent=31 // pred_check
                _
              $region45: #{w_discriminator_forward.9} parent=31 // pred_check_branch
                %227 = sbr.rel (0) target = $region47
              $region46: #{w_discriminator_forward.9} parent=31 // pred_region
                loop: start=0, step=1, limit=1
                $region48: #{w_discriminator_forward.9} parent=46 // loop_pre_header
                  _
                $region49: #{w_discriminator_forward.9} parent=46 // loop_header
                  %s229 = sphi 0, %s233
                  %p230 = scmp.ge.s32.totalorder %s229, 1
                  %s234 = sphi %s193, %s193
                  %s235 = sphi %s187, %s187
                $region50: #{w_discriminator_forward.9} parent=46 // loop_header_branch
                  %232 = sbr.rel (%p230) target = $region54
                $region51: #{w_discriminator_forward.9} parent=46 // loop_body
                  %v236 = vld [vmem:[%s234] sm:$0xff]
                  %237 = vst [vmem:[%s235] sm:$0xff] %v236
                  %v238 = vld [vmem:[%s234 + $0x10] sm:$0xff]
                  %239 = vst [vmem:[%s235 + $0x8] sm:$0xff] %v238
                  %v240 = vld [vmem:[%s234 + $0x20] sm:$0xff]
                  %241 = vst [vmem:[%s235 + $0x10] sm:$0xff] %v240
                  %v242 = vld [vmem:[%s234 + $0x30] sm:$0xff]
                  %243 = vst [vmem:[%s235 + $0x18] sm:$0xff] %v242
                  %v244 = vld [vmem:[%s234 + $0x40] sm:$0xff]
                  %245 = vst [vmem:[%s235 + $0x20] sm:$0xff] %v244
                  %v246 = vld [vmem:[%s234 + $0x50] sm:$0xff]
                  %247 = vst [vmem:[%s235 + $0x28] sm:$0xff] %v246
                  %v248 = vld [vmem:[%s234 + $0x60] sm:$0xff]
                  %249 = vst [vmem:[%s235 + $0x30] sm:$0xff] %v248
                  %v250 = vld [vmem:[%s234 + $0x70] sm:$0xff]
                  %251 = vst [vmem:[%s235 + $0x38] sm:$0xff] %v250
                $region52: #{w_discriminator_forward.9} parent=46 // loop_footer
                  %s233 = sadd.s32 1, %s229
                $region53: #{w_discriminator_forward.9} parent=46 // loop_footer_branch
                  %228 = sbr.rel target = $region49
                $region54: #{w_discriminator_forward.9} parent=46 // loop_exit
                  _
              $region47: #{w_discriminator_forward.9} parent=31 // pred_fallthru
                _
              // Predicated region
              $region55: #{w_discriminator_forward.9} parent=31 // pred_check
                _
              $region56: #{w_discriminator_forward.9} parent=31 // pred_check_branch
                %253 = sbr.rel target = $region58
              $region57: #{w_discriminator_forward.9} parent=31 // pred_region
                _
              $region58: #{w_discriminator_forward.9} parent=31 // pred_fallthru
                _
            $region32: #{w_discriminator_forward.9} parent=27 // pred_fallthru
              _
            // Predicated region
            $region33: #{w_discriminator_forward.9} parent=27 // pred_check
              _
            $region34: #{w_discriminator_forward.9} parent=27 // pred_check_branch
              %199 = sbr.rel target = $region36
            $region35: #{w_discriminator_forward.9} parent=27 // pred_region
              %s201 = ssub.s32 256, 1
              loop: start=0, step=1, limit=1
              $region37: #{w_discriminator_forward.9} parent=35 // loop_pre_header
                _
              $region38: #{w_discriminator_forward.9} parent=35 // loop_header
                %s203 = sphi 0, %s207
                %p204 = scmp.ge.s32.totalorder %s203, 1
                %s208 = sphi %s193, %s193
                %s209 = sphi %s187, %s187
              $region39: #{w_discriminator_forward.9} parent=35 // loop_header_branch
                %206 = sbr.rel (%p204) target = $region43
              $region40: #{w_discriminator_forward.9} parent=35 // loop_body
                %v210 = vld [vmem:[%s208] sm:%s201]
                %211 = vst [vmem:[%s209] sm:%s201] %v210
                %v212 = vld [vmem:[%s208 + $0x10] sm:%s201]
                %213 = vst [vmem:[%s209 + $0x8] sm:%s201] %v212
                %v214 = vld [vmem:[%s208 + $0x20] sm:%s201]
                %215 = vst [vmem:[%s209 + $0x10] sm:%s201] %v214
                %v216 = vld [vmem:[%s208 + $0x30] sm:%s201]
                %217 = vst [vmem:[%s209 + $0x18] sm:%s201] %v216
                %v218 = vld [vmem:[%s208 + $0x40] sm:%s201]
                %219 = vst [vmem:[%s209 + $0x20] sm:%s201] %v218
                %v220 = vld [vmem:[%s208 + $0x50] sm:%s201]
                %221 = vst [vmem:[%s209 + $0x28] sm:%s201] %v220
                %v222 = vld [vmem:[%s208 + $0x60] sm:%s201]
                %223 = vst [vmem:[%s209 + $0x30] sm:%s201] %v222
                %v224 = vld [vmem:[%s208 + $0x70] sm:%s201]
                %225 = vst [vmem:[%s209 + $0x38] sm:%s201] %v224
              $region41: #{w_discriminator_forward.9} parent=35 // loop_footer
                %s207 = sadd.s32 1, %s203
              $region42: #{w_discriminator_forward.9} parent=35 // loop_footer_branch
                %202 = sbr.rel target = $region38
              $region43: #{w_discriminator_forward.9} parent=35 // loop_exit
                _
            $region36: #{w_discriminator_forward.9} parent=27 // pred_fallthru
              _
          $region28: #{w_discriminator_forward.9} parent=23 // pred_fallthru
            _
          %254 = vnop
        $region24: #{w_discriminator_forward.9} parent=19 // pred_fallthru
          _
      $region20: #{w_discriminator_forward.9} parent=5 // pred_fallthru
        _
      %p255 = scmp.le.s32.totalorder 1, %s11
      %p256 = scmp.lt.s32.totalorder %s11, 3
      %p257 = pnand %p255, %p256
      %p258 = pneg %p257
      // Predicated region
      $region59: #{w_discriminator_forward.9} parent=5 // pred_check
        _
      $region60: #{w_discriminator_forward.9} parent=5 // pred_check_branch
        %260 = sbr.rel (%p257) target = $region62
      $region61: #{w_discriminator_forward.9} parent=5 // pred_region
        %s261 = ssub.s32 %s11, 1
        %s262 = sand.u32 %s38, 1
        %s263 = sand.u32 %s38, 1
        %s264 = smul.addr %s263, 64
        %s265 = scalar_lea.vmem [#allocation3], %s264
        // Predicated region
        $region63: #{w_discriminator_forward.9} parent=61 // pred_check
          %p266 = pneg %p51
        $region64: #{w_discriminator_forward.9} parent=61 // pred_check_branch
          %268 = sbr.rel (%p266) target = $region66
        $region65: #{w_discriminator_forward.9} parent=61 // pred_region
          _
        $region66: #{w_discriminator_forward.9} parent=61 // pred_fallthru
          _
        %s269 = sand.u32 %s38, 1
        %s270 = sand.u32 %s38, 1
        %s271 = smul.addr %s270, 64
        %s272 = scalar_lea.vmem [#allocation3], %s271
        %p273 = pneg %p51
        %p274 = pneg %p48
        %p275 = scmp.lt.s32.totalorder %s21, 0
        %s276 = scalar_select %p275, %s21, 0
        %s277 = smul.addr %s276, 4
        %s278 = scalar_lea.vmem %s1, %s277
        %p279 = pneg %p77
        %p280 = pneg %p74
        %p281 = pneg %p103
        %p282 = pneg %p100
        %s283 = smul.u32 2, %s20
        %p284 = scmp.lt.s32.totalorder %s283, 3
        %s285 = scalar_select %p284, %s283, 3
        %s286 = smul.addr %s285, 4
        %s287 = scalar_lea.vmem %s2, %s286
        %p288 = pneg %p129
        %p289 = pneg %p126
        %p290 = scmp.lt.s32.totalorder %s20, 1
        %s291 = scalar_select %p290, %s20, 1
        %s292 = scalar_lea.vmem %s3, %s291
        %p293 = pneg %p155
        %p294 = pneg %p152
        %p295 = scmp.lt.s32.totalorder %s20, 1
        %s296 = scalar_select %p295, %s20, 1
        %s297 = scalar_lea.vmem %s4, %s296
        %s298 = smul.u32 8, %s21
        %s299 = smul.u32 2, %s20
        %p300 = scmp.lt.s32.totalorder %s21, 0
        %s301 = scalar_select %p300, %s21, 0
        %s302 = smul.addr %s301, 4
        %s303 = scalar_lea.vmem %s1, %s302
        %s304 = smul.u32 2, %s20
        %p305 = scmp.lt.s32.totalorder %s304, 3
        %s306 = scalar_select %p305, %s304, 3
        %s307 = smul.addr %s306, 4
        %s308 = scalar_lea.vmem %s2, %s307
        %s309 = smul.u32 2, %s20
        %p310 = scmp.lt.s32.totalorder %s20, 1
        %s311 = scalar_select %p310, %s20, 1
        %s312 = scalar_lea.vmem %s3, %s311
        %p313 = scmp.lt.s32.totalorder %s20, 1
        %s314 = scalar_select %p313, %s20, 1
        %s315 = scalar_lea.vmem %s4, %s314
        %p317 = scmp.eq.s32.totalorder %s21, 0
        // Predicated region
        $region67: #{w_discriminator_forward.9} parent=61 // pred_check
          %p318 = pneg %p317
        $region68: #{w_discriminator_forward.9} parent=61 // pred_check_branch
          %320 = sbr.rel (%p318) target = $region70
        $region69: #{w_discriminator_forward.9} parent=61 // pred_region
          %321 = vst [vmem:[#allocation2] sm:$0xff] 0.0
          %322 = vst [vmem:[#allocation2 + $0x8] sm:$0xff] 0.0
        $region70: #{w_discriminator_forward.9} parent=61 // pred_fallthru
          _
        %v323 = vld [vmem:[#allocation2] sm:$0xff]
        %v324 = vld [vmem:[#allocation2 + $0x8] sm:$0xff]
        %v325 = vld [vmem:[%s303] sm:$0xf]
        %v326 = vld [vmem:[%s265] sm:$0xff]
        %v327 = vld [vmem:[%s265 + $0x8] sm:$0xff]
        %v328 = vld [vmem:[%s265 + $0x10] sm:$0xff]
        %v329 = vld [vmem:[%s265 + $0x18] sm:$0xff]
        %v330 = vld [vmem:[%s265 + $0x20] sm:$0xff]
        %v331 = vld [vmem:[%s265 + $0x28] sm:$0xff]
        %v332 = vld [vmem:[%s265 + $0x30] sm:$0xff]
        %v333 = vld [vmem:[%s265 + $0x38] sm:$0xff]
        %v342 = vunpack.c.l.b16 %v326
        %v343 = vunpack.c.h.b16 %v326
        %v344 = vunpack.c.l.b16 %v327
        %v345 = vunpack.c.h.b16 %v327
        %v346 = vunpack.c.l.b16 %v328
        %v347 = vunpack.c.h.b16 %v328
        %v348 = vunpack.c.l.b16 %v329
        %v349 = vunpack.c.h.b16 %v329
        %v350 = vunpack.c.l.b16 %v330
        %v351 = vunpack.c.h.b16 %v330
        %v352 = vunpack.c.l.b16 %v331
        %v353 = vunpack.c.h.b16 %v331
        %v354 = vunpack.c.l.b16 %v332
        %v355 = vunpack.c.h.b16 %v332
        %v356 = vunpack.c.l.b16 %v333
        %v357 = vunpack.c.h.b16 %v333
        %v358 = vpack.c.b16 %v344, %v342
        %v359 = vpack.c.b16 %v345, %v343
        %v360 = vpack.c.b16 %v348, %v346
        %v361 = vpack.c.b16 %v349, %v347
        %v362 = vpack.c.b16 %v352, %v350
        %v363 = vpack.c.b16 %v353, %v351
        %v364 = vpack.c.b16 %v356, %v354
        %v365 = vpack.c.b16 %v357, %v355
        %vm374 = vcmask 523264
        %v376 = vsel %vm374, %v325, 0
        %378 = vmatprep.subr.bf16.mxu0 0
        %379 = vmatpush1.bf16.msra.mxu0 0
        %380 = vmatprep.subr.bf16.mxu0 0
        %381 = vmatpush1.bf16.msra.mxu0 0
        %382 = vmatprep.subr.bf16.mxu0 0
        %383 = vmatpush1.bf16.msra.mxu0 0
        %384 = vmatprep.subr.bf16.mxu0 0
        %385 = vmatpush1.bf16.msra.mxu0 0
        %386 = vmatprep.subr.bf16.mxu0 %v365
        %387 = vmatpush1.bf16.msra.mxu0 %v364
        %388 = vmatprep.subr.bf16.mxu0 %v363
        %389 = vmatpush1.bf16.msra.mxu0 %v362
        %390 = vmatprep.subr.bf16.mxu0 %v361
        %391 = vmatpush1.bf16.msra.mxu0 %v360
        %392 = vmatprep.subr.bf16.mxu0 %v359
        %393 = vmatpush1.bf16.msra.mxu0 %v358
        %394 = vmatprep.subr.bf16.mxu0 0
        %395 = vmatpush2.bf16.msra.mxu0 0
        %396 = vmatprep.subr.bf16.mxu0 0
        %397 = vmatpush2.bf16.msra.mxu0 0
        %398 = vmatprep.subr.bf16.mxu0 0
        %399 = vmatpush2.bf16.msra.mxu0 0
        %400 = vmatprep.subr.bf16.mxu0 0
        %401 = vmatpush2.bf16.msra.mxu0 0
        %402 = vmatprep.subr.bf16.mxu0 0
        %403 = vmatpush2.bf16.msra.mxu0 0
        %404 = vmatprep.subr.bf16.mxu0 0
        %405 = vmatpush2.bf16.msra.mxu0 0
        %406 = vmatprep.subr.bf16.mxu0 0
        %407 = vmatpush2.bf16.msra.mxu0 0
        %408 = vmatprep.subr.bf16.mxu0 0
        %409 = vmatpush2.bf16.msra.mxu0 0
        %410 = vmatprep.mubr.bf16.mxu0 0
        %411 = vmatmul.mubr.bf16.gmra.mxu0 %v376
        %v412 = vpop.f32.mrf.mxu0
        %v413 = vadd.f32 0.0, %v412
        %v414 = vpop.f32.mrf.mxu0
        %v415 = vadd.f32 0.0, %v414
        %v416 = vpop.f32.mrf.mxu0
        %v417 = vpop.f32.mrf.mxu0
        %418 = vdwg.mxu0
        %v419 = vadd.f32 %v323, %v413
        %v420 = vadd.f32 %v324, %v415
        %421 = vst [vmem:[#allocation2] sm:$0xff] %v419
        %422 = vst [vmem:[#allocation2 + $0x8] sm:$0xff] %v420
        // Predicated region
        $region71: #{w_discriminator_forward.9} parent=61 // pred_check
          %p423 = pneg %p317
        $region72: #{w_discriminator_forward.9} parent=61 // pred_check_branch
          %425 = sbr.rel (%p423) target = $region74
        $region73: #{w_discriminator_forward.9} parent=61 // pred_region
          %v426 = vld [vmem:[#allocation2] sm:$0xff]
          %v427 = vld [vmem:[#allocation2 + $0x8] sm:$0xff]
          %v428 = vpack.c.bf16 %v426, %v426
          %v429 = vpack.c.bf16 %v427, %v427
          %v432 = vunpack.c.l.b16 %v428
          %v433 = vunpack.c.l.b16 %v429
          %v434 = vpack.c.b16 %v433, %v432
          %436 = vst [vmem:[%s308] sm:$0xff] %v434
          %v437 = vadd.f32 %v426, %v427
          %438 = vadd.xlane.f32.xlu0 %v437
          %v439 = vpop.xlane.xlu0 %438
          %v441 = vlaneseq
          %v442 = vand.u32 %v441, 127
          %v443 = vlaneseq
          %v444 = vshrl.u32 %v443, 7
          %v445 = vsub.s32 %v442, %v444
          %v446 = vrot.slane %v439, %v445
          %vm448 = vcmask 57344
          %449 = vst.msk [vmem:[%s312] sm:$0x1] %vm448, %v446
          %v450 = vmul.f32 %v426, %v426
          %v451 = vmul.f32 %v427, %v427
          %v452 = vadd.f32 %v450, %v451
          %453 = vadd.xlane.f32.xlu0 %v452
          %v454 = vpop.xlane.xlu0 %453
          %v456 = vlaneseq
          %v457 = vshrl.u32 %v456, 7
          %v458 = vsub.s32 %v442, %v457
          %v459 = vrot.slane %v454, %v458
          %461 = vst.msk [vmem:[%s315] sm:$0x1] %vm448, %v459
        $region74: #{w_discriminator_forward.9} parent=61 // pred_fallthru
          _
        %s462 = smul.u32 2, %s20
        %p463 = scmp.lt.s32.totalorder %s462, 3
        %s464 = scalar_select %p463, %s462, 3
        %s465 = smul.addr %s464, 4
        %s466 = scalar_lea.vmem %s2, %s465
        %p467 = scmp.lt.s32.totalorder %s20, 1
        %s468 = scalar_select %p467, %s20, 1
        %s469 = scalar_lea.vmem %s3, %s468
        %p470 = scmp.lt.s32.totalorder %s20, 1
        %s471 = scalar_select %p470, %s20, 1
        %s472 = scalar_lea.vmem %s4, %s471
        // Predicated region
        $region75: #{w_discriminator_forward.9} parent=61 // pred_check
          %p473 = pneg %p100
        $region76: #{w_discriminator_forward.9} parent=61 // pred_check_branch
          %475 = sbr.rel (%p473) target = $region78
        $region77: #{w_discriminator_forward.9} parent=61 // pred_region
          %s476 = smul.u32 2, %s20
        $region78: #{w_discriminator_forward.9} parent=61 // pred_fallthru
          _
        // Predicated region
        $region79: #{w_discriminator_forward.9} parent=61 // pred_check
          %p477 = pneg %p126
        $region80: #{w_discriminator_forward.9} parent=61 // pred_check_branch
          %479 = sbr.rel (%p477) target = $region82
        $region81: #{w_discriminator_forward.9} parent=61 // pred_region
          _
        $region82: #{w_discriminator_forward.9} parent=61 // pred_fallthru
          _
        // Predicated region
        $region83: #{w_discriminator_forward.9} parent=61 // pred_check
          %p480 = pneg %p152
        $region84: #{w_discriminator_forward.9} parent=61 // pred_check_branch
          %482 = sbr.rel (%p480) target = $region86
        $region85: #{w_discriminator_forward.9} parent=61 // pred_region
          _
        $region86: #{w_discriminator_forward.9} parent=61 // pred_fallthru
          _
      $region62: #{w_discriminator_forward.9} parent=5 // pred_fallthru
        _
      %p483 = scmp.le.s32.totalorder 2, %s11
      // Predicated region
      $region87: #{w_discriminator_forward.9} parent=5 // pred_check
        %p484 = pneg %p483
      $region88: #{w_discriminator_forward.9} parent=5 // pred_check_branch
        %486 = sbr.rel (%p484) target = $region90
      $region89: #{w_discriminator_forward.9} parent=5 // pred_region
        %s487 = ssub.s32 %s11, 2
        // Predicated region
        $region91: #{w_discriminator_forward.9} parent=89 // pred_check
          %p488 = pneg %p106
        $region92: #{w_discriminator_forward.9} parent=89 // pred_check_branch
          %490 = sbr.rel (%p488) target = $region94
        $region93: #{w_discriminator_forward.9} parent=89 // pred_region
          %s491 = smul.u32 2, %s22
          %p492 = scmp.lt.s32.totalorder %s491, 3
          %s493 = scalar_select %p492, %s491, 3
          %s494 = smul.addr %s493, 4
          %s495 = scalar_lea.vmem %s2, %s494
        $region94: #{w_discriminator_forward.9} parent=89 // pred_fallthru
          _
        // Predicated region
        $region95: #{w_discriminator_forward.9} parent=89 // pred_check
          %p496 = pneg %p132
        $region96: #{w_discriminator_forward.9} parent=89 // pred_check_branch
          %498 = sbr.rel (%p496) target = $region98
        $region97: #{w_discriminator_forward.9} parent=89 // pred_region
          %p499 = scmp.lt.s32.totalorder %s22, 1
          %s500 = scalar_select %p499, %s22, 1
          %s501 = scalar_lea.vmem %s3, %s500
        $region98: #{w_discriminator_forward.9} parent=89 // pred_fallthru
          _
        // Predicated region
        $region99: #{w_discriminator_forward.9} parent=89 // pred_check
          %p502 = pneg %p158
        $region100: #{w_discriminator_forward.9} parent=89 // pred_check_branch
          %504 = sbr.rel (%p502) target = $region102
        $region101: #{w_discriminator_forward.9} parent=89 // pred_region
          %p505 = scmp.lt.s32.totalorder %s22, 1
          %s506 = scalar_select %p505, %s22, 1
          %s507 = scalar_lea.vmem %s4, %s506
        $region102: #{w_discriminator_forward.9} parent=89 // pred_fallthru
          _
      $region90: #{w_discriminator_forward.9} parent=5 // pred_fallthru
        _
    $region6: #{w_discriminator_forward.9} parent=1 // loop_footer
      %s15 = sadd.s32 1, %s11
    $region7: #{w_discriminator_forward.9} parent=1 // loop_footer_branch
      %10 = sbr.rel target = $region3
    $region8: #{w_discriminator_forward.9} parent=1 // loop_exit
      _

// kernel: w_discriminator_forward.10
$region0: #{w_discriminator_forward.10}
  #allocation0 [shape = 'u32[]', space=smem, size = 0x4, offset = 0x4, fixed_abs, tag = 'smem constant byte address 0x4 - core index']
  #allocation1 [shape = 'u32[144,128]{1,0:T(1,128)}', space=vmem, size = 0x12000, scoped, tag = 'internal scratch']
  %s0 = inlined_call_operand.vmem [shape: bf16[8,512], index: 0, kind: input, shape index: {}]
  %s1 = inlined_call_operand.vmem [shape: f32[8,1], index: 1, kind: input, shape index: {}]
  %s2 = inlined_call_operand.vmem [shape: f32[8,1], index: 2, kind: input, shape index: {}]
  %s3 = inlined_call_operand.vmem [shape: f32[8,1], index: 3, kind: input, shape index: {}]
  %s4 = inlined_call_operand.vmem [shape: f32[8,1], index: 4, kind: input, shape index: {}]
  %s5 = inlined_call_operand.vmem [shape: bf16[8,512], index: 5, kind: output, shape index: {}]
  %s6 = sld [smem:[#allocation0]]
  $region53: #{w_discriminator_forward.10} parent=0
    _
  %s8 = ssub.s32 1, %s6
  %s9 = scalar_select 0, %s8, %s6
  loop: start=0, step=1, limit=4
  $region2: #{w_discriminator_forward.10} parent=0 // loop_pre_header
    _
  $region3: #{w_discriminator_forward.10} parent=0 // loop_header
    %s11 = sphi 0, %s15
    %p12 = scmp.ge.s32.totalorder %s11, 4
    %s21 = sphi 0, %s23
    %s24 = sphi 0, %s21
    %s25 = sphi 0, %s24
    %s41 = sphi 0, %s25
    %s45 = sphi 0, %s45
    %s47 = sphi 0, %s45
    %s48 = sphi 0, %s47
    %s62 = sphi 0, %s48
    %s66 = sphi 0, %s66
    %s68 = sphi 0, %s66
    %s69 = sphi 0, %s68
    %s83 = sphi 0, %s69
    %s87 = sphi 0, %s87
    %s89 = sphi 0, %s87
    %s90 = sphi 0, %s89
    %s104 = sphi 0, %s90
    %s108 = sphi 0, %s108
    %s110 = sphi 0, %s108
    %s111 = sphi 0, %s110
    %s125 = sphi 0, %s111
    %s131 = sphi 0, %s133
    %s134 = sphi 0, %s131
    %s135 = sphi 0, %s134
    %s151 = sphi 0, %s135
  $region4: #{w_discriminator_forward.10} parent=0 // loop_header_branch
    %14 = sbr.rel (%p12) target = $region8
  $region5: #{w_discriminator_forward.10} parent=0 // loop_body
    %s16 = ssub.s32 %s11, 1
    %s17 = ssub.s32 %s11, 2
    %s18 = sadd.s32 %s11, 1
    %s19 = ssub.s32 %s11, %s18
    %p20 = scmp.eq.s32.totalorder %s19, 0
    %s22 = sadd.s32 %s21, 1
    %s23 = scalar_select %p20, %s21, %s22
    %p26 = pneg %p20
    %p27 = scmp.eq.s32.totalorder %s11, 1
    %p28 = por %p26, %p27
    %p29 = scmp.ne.s32.totalorder %s21, %s24
    %p30 = scmp.eq.s32.totalorder %s11, 0
    %p31 = por %p29, %p30
    %p32 = scmp.ne.s32.totalorder %s21, %s24
    %p33 = scmp.eq.s32.totalorder %s16, 1
    %p34 = por %p32, %p33
    %p35 = scmp.ne.s32.totalorder %s24, %s25
    %p36 = scmp.eq.s32.totalorder %s16, 0
    %p37 = por %p35, %p36
    %p38 = scmp.ne.s32.totalorder %s24, %s25
    %p39 = scmp.eq.s32.totalorder %s17, 1
    %p40 = por %p38, %p39
    %p42 = scmp.ne.s32.totalorder %s25, %s41
    %p43 = scmp.eq.s32.totalorder %s17, 0
    %p44 = por %p42, %p43
    %s46 = sadd.s32 %s45, 1
    %p49 = scmp.eq.s32.totalorder %s11, 1
    %p50 = scmp.ne.s32.totalorder %s45, %s47
    %p51 = scmp.eq.s32.totalorder %s11, 0
    %p52 = por %p50, %p51
    %p53 = scmp.ne.s32.totalorder %s45, %s47
    %p54 = scmp.eq.s32.totalorder %s16, 1
    %p55 = por %p53, %p54
    %p56 = scmp.ne.s32.totalorder %s47, %s48
    %p57 = scmp.eq.s32.totalorder %s16, 0
    %p58 = por %p56, %p57
    %p59 = scmp.ne.s32.totalorder %s47, %s48
    %p60 = scmp.eq.s32.totalorder %s17, 1
    %p61 = por %p59, %p60
    %p63 = scmp.ne.s32.totalorder %s48, %s62
    %p64 = scmp.eq.s32.totalorder %s17, 0
    %p65 = por %p63, %p64
    %s67 = sadd.s32 %s66, 1
    %p70 = scmp.eq.s32.totalorder %s11, 1
    %p71 = scmp.ne.s32.totalorder %s66, %s68
    %p72 = scmp.eq.s32.totalorder %s11, 0
    %p73 = por %p71, %p72
    %p74 = scmp.ne.s32.totalorder %s66, %s68
    %p75 = scmp.eq.s32.totalorder %s16, 1
    %p76 = por %p74, %p75
    %p77 = scmp.ne.s32.totalorder %s68, %s69
    %p78 = scmp.eq.s32.totalorder %s16, 0
    %p79 = por %p77, %p78
    %p80 = scmp.ne.s32.totalorder %s68, %s69
    %p81 = scmp.eq.s32.totalorder %s17, 1
    %p82 = por %p80, %p81
    %p84 = scmp.ne.s32.totalorder %s69, %s83
    %p85 = scmp.eq.s32.totalorder %s17, 0
    %p86 = por %p84, %p85
    %s88 = sadd.s32 %s87, 1
    %p91 = scmp.eq.s32.totalorder %s11, 1
    %p92 = scmp.ne.s32.totalorder %s87, %s89
    %p93 = scmp.eq.s32.totalorder %s11, 0
    %p94 = por %p92, %p93
    %p95 = scmp.ne.s32.totalorder %s87, %s89
    %p96 = scmp.eq.s32.totalorder %s16, 1
    %p97 = por %p95, %p96
    %p98 = scmp.ne.s32.totalorder %s89, %s90
    %p99 = scmp.eq.s32.totalorder %s16, 0
    %p100 = por %p98, %p99
    %p101 = scmp.ne.s32.totalorder %s89, %s90
    %p102 = scmp.eq.s32.totalorder %s17, 1
    %p103 = por %p101, %p102
    %p105 = scmp.ne.s32.totalorder %s90, %s104
    %p106 = scmp.eq.s32.totalorder %s17, 0
    %p107 = por %p105, %p106
    %s109 = sadd.s32 %s108, 1
    %p112 = scmp.eq.s32.totalorder %s11, 1
    %p113 = scmp.ne.s32.totalorder %s108, %s110
    %p114 = scmp.eq.s32.totalorder %s11, 0
    %p115 = por %p113, %p114
    %p116 = scmp.ne.s32.totalorder %s108, %s110
    %p117 = scmp.eq.s32.totalorder %s16, 1
    %p118 = por %p116, %p117
    %p119 = scmp.ne.s32.totalorder %s110, %s111
    %p120 = scmp.eq.s32.totalorder %s16, 0
    %p121 = por %p119, %p120
    %p122 = scmp.ne.s32.totalorder %s110, %s111
    %p123 = scmp.eq.s32.totalorder %s17, 1
    %p124 = por %p122, %p123
    %p126 = scmp.ne.s32.totalorder %s111, %s125
    %p127 = scmp.eq.s32.totalorder %s17, 0
    %p128 = por %p126, %p127
    %s129 = ssub.s32 %s11, %s18
    %p130 = scmp.eq.s32.totalorder %s129, 0
    %s132 = sadd.s32 %s131, 1
    %s133 = scalar_select %p130, %s131, %s132
    %p136 = pneg %p130
    %p137 = scmp.eq.s32.totalorder %s11, 1
    %p138 = por %p136, %p137
    %p139 = scmp.ne.s32.totalorder %s131, %s134
    %p140 = scmp.eq.s32.totalorder %s11, 0
    %p141 = por %p139, %p140
    %p142 = scmp.ne.s32.totalorder %s131, %s134
    %p143 = scmp.eq.s32.totalorder %s16, 1
    %p144 = por %p142, %p143
    %p145 = scmp.ne.s32.totalorder %s134, %s135
    %p146 = scmp.eq.s32.totalorder %s16, 0
    %p147 = por %p145, %p146
    %p148 = scmp.ne.s32.totalorder %s134, %s135
    %p149 = scmp.eq.s32.totalorder %s17, 1
    %p150 = por %p148, %p149
    %p152 = scmp.ne.s32.totalorder %s135, %s151
    %p153 = scmp.eq.s32.totalorder %s17, 0
    %p154 = por %p152, %p153
    %p155 = scmp.le.s32.totalorder 1, %s11
    %p156 = scmp.lt.s32.totalorder %s11, 3
    %p157 = pnand %p155, %p156
    %p158 = pneg %p157
    // Predicated region
    $region9: #{w_discriminator_forward.10} parent=5 // pred_check
      _
    $region10: #{w_discriminator_forward.10} parent=5 // pred_check_branch
      %160 = sbr.rel (%p157) target = $region12
    $region11: #{w_discriminator_forward.10} parent=5 // pred_region
      %s161 = ssub.s32 %s11, 1
      // Predicated region
      $region13: #{w_discriminator_forward.10} parent=11 // pred_check
        %p162 = pneg %p58
      $region14: #{w_discriminator_forward.10} parent=11 // pred_check_branch
        %164 = sbr.rel (%p162) target = $region16
      $region15: #{w_discriminator_forward.10} parent=11 // pred_region
        _
      $region16: #{w_discriminator_forward.10} parent=11 // pred_fallthru
        _
      // Predicated region
      $region17: #{w_discriminator_forward.10} parent=11 // pred_check
        %p165 = pneg %p79
      $region18: #{w_discriminator_forward.10} parent=11 // pred_check_branch
        %167 = sbr.rel (%p165) target = $region20
      $region19: #{w_discriminator_forward.10} parent=11 // pred_region
        _
      $region20: #{w_discriminator_forward.10} parent=11 // pred_fallthru
        _
      // Predicated region
      $region21: #{w_discriminator_forward.10} parent=11 // pred_check
        %p168 = pneg %p100
      $region22: #{w_discriminator_forward.10} parent=11 // pred_check_branch
        %170 = sbr.rel (%p168) target = $region24
      $region23: #{w_discriminator_forward.10} parent=11 // pred_region
        _
      $region24: #{w_discriminator_forward.10} parent=11 // pred_fallthru
        _
      // Predicated region
      $region25: #{w_discriminator_forward.10} parent=11 // pred_check
        %p171 = pneg %p121
      $region26: #{w_discriminator_forward.10} parent=11 // pred_check_branch
        %173 = sbr.rel (%p171) target = $region28
      $region27: #{w_discriminator_forward.10} parent=11 // pred_region
        _
      $region28: #{w_discriminator_forward.10} parent=11 // pred_fallthru
        _
    $region12: #{w_discriminator_forward.10} parent=5 // pred_fallthru
      _
    %p174 = scmp.lt.s32.totalorder %s11, 2
    // Predicated region
    $region29: #{w_discriminator_forward.10} parent=5 // pred_check
      %p175 = pneg %p174
    $region30: #{w_discriminator_forward.10} parent=5 // pred_check_branch
      %177 = sbr.rel (%p175) target = $region32
    $region31: #{w_discriminator_forward.10} parent=5 // pred_region
      // Predicated region
      $region33: #{w_discriminator_forward.10} parent=31 // pred_check
        %p178 = pneg %p31
      $region34: #{w_discriminator_forward.10} parent=31 // pred_check_branch
        %180 = sbr.rel (%p178) target = $region36
      $region35: #{w_discriminator_forward.10} parent=31 // pred_region
        %s181 = smul.u32 2, %s11
        %p182 = scmp.lt.s32.totalorder %s181, 3
        %s183 = scalar_select %p182, %s181, 3
        %s184 = smul.addr %s183, 4
        %s185 = scalar_lea.vmem %s0, %s184
        %s186 = smul.u32 2, %s11
      $region36: #{w_discriminator_forward.10} parent=31 // pred_fallthru
        _
    $region32: #{w_discriminator_forward.10} parent=5 // pred_fallthru
      _
    %p187 = scmp.le.s32.totalorder 1, %s11
    %p188 = scmp.lt.s32.totalorder %s11, 3
    %p189 = pnand %p187, %p188
    %p190 = pneg %p189
    // Predicated region
    $region37: #{w_discriminator_forward.10} parent=5 // pred_check
      _
    $region38: #{w_discriminator_forward.10} parent=5 // pred_check_branch
      %192 = sbr.rel (%p189) target = $region40
    $region39: #{w_discriminator_forward.10} parent=5 // pred_region
      %s193 = ssub.s32 %s11, 1
      %s194 = smul.u32 2, %s16
      %p195 = scmp.lt.s32.totalorder %s194, 3
      %s196 = scalar_select %p195, %s194, 3
      %s197 = smul.addr %s196, 4
      %s198 = scalar_lea.vmem %s0, %s197
      %p199 = pneg %p37
      %p200 = pneg %p34
      %p201 = pneg %p58
      %p202 = pneg %p55
      %p203 = pneg %p79
      %p204 = pneg %p76
      %p205 = pneg %p100
      %p206 = pneg %p97
      %p207 = pneg %p121
      %p208 = pneg %p118
      %p209 = pneg %p147
      %p210 = pneg %p144
      %s211 = smul.u32 2, %s16
      %p212 = scmp.lt.s32.totalorder %s211, 3
      %s213 = scalar_select %p212, %s211, 3
      %s214 = smul.addr %s213, 4
      %s215 = scalar_lea.vmem %s5, %s214
      %s216 = smul.u32 2, %s16
      %p217 = scmp.lt.s32.totalorder %s216, 3
      %s218 = scalar_select %p217, %s216, 3
      %s219 = smul.addr %s218, 4
      %s220 = scalar_lea.vmem %s0, %s219
      %s221 = smul.u32 2, %s16
      %s222 = smul.u32 2, %s16
      %p223 = scmp.lt.s32.totalorder %s222, 3
      %s224 = scalar_select %p223, %s222, 3
      %s225 = smul.addr %s224, 4
      %s226 = scalar_lea.vmem %s5, %s225
      %s227 = smul.u32 2, %s16
      %v228 = vld [vmem:[%s1] sm:$0xff]
      %v229 = vmul.f32 %v228, 0.001953125
      %v230 = vld [vmem:[%s2] sm:$0xff]
      %v231 = vmul.f32 %v230, 0.001953125
      %v232 = vmul.f32 %v229, %v229
      %v233 = vsub.f32 %v231, %v232
      %v234 = vld [vmem:[%s3] sm:$0xff]
      %v235 = vadd.f32 %v233, 1e-05
      %v236 = vrsqrt.pop %v235
      %v237 = vmul.f32 %v234, %v236
      %v238 = vld [vmem:[%s4] sm:$0xff]
      %v239 = vmul.f32 %v229, %v237
      %v240 = vsub.f32 %v238, %v239
      %v241 = vld [vmem:[%s220] sm:$0xff]
      %v242 = vunpack.c.l.bf16 %v241
      %v243 = vunpack.c.h.bf16 %v241
      %245 = vset.pattern.permute.xlu0 0
      %246 = vperm.xlu0 %245, %v237
      %v247 = vpop.permute.xlu0 %246
      %v249 = vmul.f32 %v242, %v247
      %v250 = vmul.f32 %v243, %v247
      %252 = vset.pattern.permute.xlu0 0
      %253 = vperm.xlu0 %252, %v240
      %v254 = vpop.permute.xlu0 %253
      %v256 = vadd.f32 %v249, %v254
      %v257 = vadd.f32 %v250, %v254
      %vm258 = vcmp.gt.f32.partialorder %v256, 0.0
      %vm259 = vcmp.gt.f32.partialorder %v257, 0.0
      %v260 = vmul.f32 %v256, 0.2
      %v261 = vmul.f32 %v257, 0.2
      %v262 = vsel %vm258, %v256, %v260
      %v263 = vsel %vm259, %v257, %v261
      %v264 = vpack.c.bf16 %v262, %v262
      %v265 = vpack.c.bf16 %v263, %v263
      %v268 = vunpack.c.l.b16 %v264
      %v269 = vunpack.c.l.b16 %v265
      %v270 = vpack.c.b16 %v269, %v268
      %272 = vst [vmem:[%s226] sm:$0xff] %v270
      %s273 = smul.u32 2, %s16
      %p274 = scmp.lt.s32.totalorder %s273, 3
      %s275 = scalar_select %p274, %s273, 3
      %s276 = smul.addr %s275, 4
      %s277 = scalar_lea.vmem %s5, %s276
      // Predicated region
      $region41: #{w_discriminator_forward.10} parent=39 // pred_check
        %p278 = pneg %p144
      $region42: #{w_discriminator_forward.10} parent=39 // pred_check_branch
        %280 = sbr.rel (%p278) target = $region44
      $region43: #{w_discriminator_forward.10} parent=39 // pred_region
        %s281 = smul.u32 2, %s16
      $region44: #{w_discriminator_forward.10} parent=39 // pred_fallthru
        _
    $region40: #{w_discriminator_forward.10} parent=5 // pred_fallthru
      _
    %p282 = scmp.le.s32.totalorder 2, %s11
    // Predicated region
    $region45: #{w_discriminator_forward.10} parent=5 // pred_check
      %p283 = pneg %p282
    $region46: #{w_discriminator_forward.10} parent=5 // pred_check_branch
      %285 = sbr.rel (%p283) target = $region48
    $region47: #{w_discriminator_forward.10} parent=5 // pred_region
      %s286 = ssub.s32 %s11, 2
      // Predicated region
      $region49: #{w_discriminator_forward.10} parent=47 // pred_check
        %p287 = pneg %p150
      $region50: #{w_discriminator_forward.10} parent=47 // pred_check_branch
        %289 = sbr.rel (%p287) target = $region52
      $region51: #{w_discriminator_forward.10} parent=47 // pred_region
        %s290 = smul.u32 2, %s17
        %p291 = scmp.lt.s32.totalorder %s290, 3
        %s292 = scalar_select %p291, %s290, 3
        %s293 = smul.addr %s292, 4
        %s294 = scalar_lea.vmem %s5, %s293
      $region52: #{w_discriminator_forward.10} parent=47 // pred_fallthru
        _
    $region48: #{w_discriminator_forward.10} parent=5 // pred_fallthru
      _
  $region6: #{w_discriminator_forward.10} parent=0 // loop_footer
    %s15 = sadd.s32 1, %s11
  $region7: #{w_discriminator_forward.10} parent=0 // loop_footer_branch
    %10 = sbr.rel target = $region3
  $region8: #{w_discriminator_forward.10} parent=0 // loop_exit
    _

// kernel: w_discriminator_forward.11
$region0: #{w_discriminator_forward.11}
  #allocation0 [shape = 'u32[]', space=smem, size = 0x4, offset = 0x4, fixed_abs, tag = 'smem constant byte address 0x4 - core index']
  #allocation1 [shape = 'u32[144,128]{1,0:T(1,128)}', space=vmem, size = 0x12000, scoped, tag = 'internal scratch']
  #allocation2 [shape = 'f32[16,128]{1,0:T(8,128)}', space=vmem, size = 0x2000, scoped, tag = 'scratch operand']
  %s0 = inlined_call_operand.vmem [shape: bf16[128,128], index: 0, kind: input, shape index: {}]
  %s1 = inlined_call_operand.vmem [shape: bf16[16,128], index: 1, kind: input, shape index: {}]
  %s2 = inlined_call_operand.vmem [shape: bf16[16,128], index: 2, kind: output, shape index: {0}]
  %s3 = inlined_call_operand.vmem [shape: f32[1,1,16], index: 3, kind: output, shape index: {1}]
  %s4 = inlined_call_operand.vmem [shape: f32[1,1,16], index: 4, kind: output, shape index: {2}]
  %5 = xla_tuple %s2, %s3, %s4
  %s6 = sld [smem:[#allocation0]]
  $region42: #{w_discriminator_forward.11} parent=0
    _
  %s8 = ssub.s32 1, %s6
  %s9 = scalar_select 0, %s8, %s6
  // Predicated region
  $region2: #{w_discriminator_forward.11} parent=0 // pred_check
    _
  $region3: #{w_discriminator_forward.11} parent=0 // pred_check_branch
    %11 = sbr.rel (0) target = $region5
  $region4: #{w_discriminator_forward.11} parent=0 // pred_region
    _
  $region5: #{w_discriminator_forward.11} parent=0 // pred_fallthru
    _
  // Predicated region
  $region6: #{w_discriminator_forward.11} parent=0 // pred_check
    _
  $region7: #{w_discriminator_forward.11} parent=0 // pred_check_branch
    %13 = sbr.rel (0) target = $region9
  $region8: #{w_discriminator_forward.11} parent=0 // pred_region
    _
  $region9: #{w_discriminator_forward.11} parent=0 // pred_fallthru
    _
  %p15 = scmp.eq.s32.totalorder 0, 0
  // Predicated region
  $region10: #{w_discriminator_forward.11} parent=0 // pred_check
    %p16 = pneg %p15
  $region11: #{w_discriminator_forward.11} parent=0 // pred_check_branch
    %18 = sbr.rel (%p16) target = $region13
  $region12: #{w_discriminator_forward.11} parent=0 // pred_region
    %19 = vst [vmem:[#allocation2] sm:$0xff] 0.0
    %20 = vst [vmem:[#allocation2 + $0x8] sm:$0xff] 0.0
  $region13: #{w_discriminator_forward.11} parent=0 // pred_fallthru
    _
  %v21 = vld [vmem:[#allocation2] sm:$0xff]
  %v22 = vld [vmem:[#allocation2 + $0x8] sm:$0xff]
  %v23 = vld [vmem:[%s1] sm:$0xf]
  %v24 = vld [vmem:[%s1 + $0x4] sm:$0xf]
  %v25 = vld [vmem:[%s0] sm:$0xf]
  %v26 = vld [vmem:[%s0 + $0x4] sm:$0xf]
  %v27 = vld [vmem:[%s0 + $0x8] sm:$0xf]
  %v28 = vld [vmem:[%s0 + $0xc] sm:$0xf]
  %v29 = vld [vmem:[%s0 + $0x10] sm:$0xf]
  %v30 = vld [vmem:[%s0 + $0x14] sm:$0xf]
  %v31 = vld [vmem:[%s0 + $0x18] sm:$0xf]
  %v32 = vld [vmem:[%s0 + $0x1c] sm:$0xf]
  %v33 = vld [vmem:[%s0 + $0x20] sm:$0xf]
  %v34 = vld [vmem:[%s0 + $0x24] sm:$0xf]
  %v35 = vld [vmem:[%s0 + $0x28] sm:$0xf]
  %v36 = vld [vmem:[%s0 + $0x2c] sm:$0xf]
  %v37 = vld [vmem:[%s0 + $0x30] sm:$0xf]
  %v38 = vld [vmem:[%s0 + $0x34] sm:$0xf]
  %v39 = vld [vmem:[%s0 + $0x38] sm:$0xf]
  %v40 = vld [vmem:[%s0 + $0x3c] sm:$0xf]
  %v43 = vunpack.c.l.b16 %v23
  %v44 = vunpack.c.l.b16 %v24
  %v45 = vpack.c.b16 %v44, %v43
  %v63 = vunpack.c.l.b16 %v25
  %v64 = vunpack.c.l.b16 %v26
  %v65 = vunpack.c.l.b16 %v27
  %v66 = vunpack.c.l.b16 %v28
  %v67 = vunpack.c.l.b16 %v29
  %v68 = vunpack.c.l.b16 %v30
  %v69 = vunpack.c.l.b16 %v31
  %v70 = vunpack.c.l.b16 %v32
  %v71 = vunpack.c.l.b16 %v33
  %v72 = vunpack.c.l.b16 %v34
  %v73 = vunpack.c.l.b16 %v35
  %v74 = vunpack.c.l.b16 %v36
  %v75 = vunpack.c.l.b16 %v37
  %v76 = vunpack.c.l.b16 %v38
  %v77 = vunpack.c.l.b16 %v39
  %v78 = vunpack.c.l.b16 %v40
  %v79 = vpack.c.b16 %v64, %v63
  %v80 = vpack.c.b16 %v66, %v65
  %v81 = vpack.c.b16 %v68, %v67
  %v82 = vpack.c.b16 %v70, %v69
  %v83 = vpack.c.b16 %v72, %v71
  %v84 = vpack.c.b16 %v74, %v73
  %v85 = vpack.c.b16 %v76, %v75
  %v86 = vpack.c.b16 %v78, %v77
  %95 = vmatprep.subr.bf16.mxu0 0
  %96 = vmatpush1.bf16.msra.mxu0 %v86
  %97 = vmatprep.subr.bf16.mxu0 0
  %98 = vmatpush1.bf16.msra.mxu0 %v85
  %99 = vmatprep.subr.bf16.mxu0 0
  %100 = vmatpush1.bf16.msra.mxu0 %v84
  %101 = vmatprep.subr.bf16.mxu0 0
  %102 = vmatpush1.bf16.msra.mxu0 %v83
  %103 = vmatprep.subr.bf16.mxu0 0
  %104 = vmatpush1.bf16.msra.mxu0 %v82
  %105 = vmatprep.subr.bf16.mxu0 0
  %106 = vmatpush1.bf16.msra.mxu0 %v81
  %107 = vmatprep.subr.bf16.mxu0 0
  %108 = vmatpush1.bf16.msra.mxu0 %v80
  %109 = vmatprep.subr.bf16.mxu0 0
  %110 = vmatpush1.bf16.msra.mxu0 %v79
  %111 = vmatprep.subr.bf16.mxu0 0
  %112 = vmatpush2.bf16.msra.mxu0 0
  %113 = vmatprep.subr.bf16.mxu0 0
  %114 = vmatpush2.bf16.msra.mxu0 0
  %115 = vmatprep.subr.bf16.mxu0 0
  %116 = vmatpush2.bf16.msra.mxu0 0
  %117 = vmatprep.subr.bf16.mxu0 0
  %118 = vmatpush2.bf16.msra.mxu0 0
  %119 = vmatprep.subr.bf16.mxu0 0
  %120 = vmatpush2.bf16.msra.mxu0 0
  %121 = vmatprep.subr.bf16.mxu0 0
  %122 = vmatpush2.bf16.msra.mxu0 0
  %123 = vmatprep.subr.bf16.mxu0 0
  %124 = vmatpush2.bf16.msra.mxu0 0
  %125 = vmatprep.subr.bf16.mxu0 0
  %126 = vmatpush2.bf16.msra.mxu0 0
  %127 = vmatprep.mubr.bf16.mxu0 0
  %128 = vmatmul.mubr.bf16.gmra.mxu0 %v45
  %v129 = vpop.f32.mrf.mxu0
  %v130 = vadd.f32 0.0, %v129
  %v131 = vpop.f32.mrf.mxu0
  %v132 = vpop.f32.mrf.mxu0
  %v133 = vadd.f32 0.0, %v132
  %v134 = vpop.f32.mrf.mxu0
  %135 = vdwg.mxu0
  %v136 = vadd.f32 %v21, %v130
  %v137 = vadd.f32 %v22, %v133
  %138 = vst [vmem:[#allocation2] sm:$0xff] %v136
  %139 = vst [vmem:[#allocation2 + $0x8] sm:$0xff] %v137
  // Predicated region
  $region14: #{w_discriminator_forward.11} parent=0 // pred_check
    %p140 = pneg %p15
  $region15: #{w_discriminator_forward.11} parent=0 // pred_check_branch
    %142 = sbr.rel (%p140) target = $region17
  $region16: #{w_discriminator_forward.11} parent=0 // pred_region
    %v143 = vld [vmem:[#allocation2] sm:$0xff]
    %v144 = vld [vmem:[#allocation2 + $0x8] sm:$0xff]
    %v145 = vpack.c.bf16 %v144, %v143
    %v147 = vunpack.c.l.b16 %v145
    %v148 = vunpack.c.h.b16 %v145
    %v149 = vpack.c.b16 %v147, %v147
    %v150 = vpack.c.b16 %v148, %v148
    %153 = vst [vmem:[%s2] sm:$0xf] %v149
    %154 = vst [vmem:[%s2 + $0x4] sm:$0xf] %v150
    %155 = vadd.xlane.f32.xlu0 %v143
    %v156 = vpop.xlane.xlu0 %155
    %157 = vadd.xlane.f32.xlu0 %v144
    %v158 = vpop.xlane.xlu0 %157
    %v161 = vlaneseq
    %v162 = vand.u32 %v161, 127
    %v163 = vlaneseq
    %v164 = vshrl.u32 %v163, 7
    %v165 = vsub.s32 %v162, %v164
    %v166 = vrot.slane %v156, %v165
    %v167 = vadd.s32 %v162, 4294967288
    %v168 = vlaneseq
    %v169 = vshrl.u32 %v168, 7
    %v170 = vsub.s32 %v167, %v169
    %v171 = vrot.slane %v158, %v170
    %vm172 = vcmask 130112
    %v173 = vsel %vm172, %v171, %v166
    %vm175 = vcmask 122880
    %176 = vst.msk [vmem:[%s3] sm:$0x1] %vm175, %v173
    %v177 = vmul.f32 %v143, %v143
    %v178 = vmul.f32 %v144, %v144
    %179 = vadd.xlane.f32.xlu0 %v177
    %v180 = vpop.xlane.xlu0 %179
    %181 = vadd.xlane.f32.xlu0 %v178
    %v182 = vpop.xlane.xlu0 %181
    %v185 = vlaneseq
    %v186 = vshrl.u32 %v185, 7
    %v187 = vsub.s32 %v162, %v186
    %v188 = vrot.slane %v180, %v187
    %v189 = vlaneseq
    %v190 = vshrl.u32 %v189, 7
    %v191 = vsub.s32 %v167, %v190
    %v192 = vrot.slane %v182, %v191
    %v193 = vsel %vm172, %v192, %v188
    %195 = vst.msk [vmem:[%s4] sm:$0x1] %vm175, %v193
  $region17: #{w_discriminator_forward.11} parent=0 // pred_fallthru
    _
  // Predicated region
  $region18: #{w_discriminator_forward.11} parent=0 // pred_check
    _
  $region19: #{w_discriminator_forward.11} parent=0 // pred_check_branch
    %197 = sbr.rel (0) target = $region21
  $region20: #{w_discriminator_forward.11} parent=0 // pred_region
    _
  $region21: #{w_discriminator_forward.11} parent=0 // pred_fallthru
    _
  // Predicated region
  $region22: #{w_discriminator_forward.11} parent=0 // pred_check
    _
  $region23: #{w_discriminator_forward.11} parent=0 // pred_check_branch
    %199 = sbr.rel (0) target = $region25
  $region24: #{w_discriminator_forward.11} parent=0 // pred_region
    _
  $region25: #{w_discriminator_forward.11} parent=0 // pred_fallthru
    _
  // Predicated region
  $region26: #{w_discriminator_forward.11} parent=0 // pred_check
    _
  $region27: #{w_discriminator_forward.11} parent=0 // pred_check_branch
    %201 = sbr.rel (0) target = $region29
  $region28: #{w_discriminator_forward.11} parent=0 // pred_region
    _
  $region29: #{w_discriminator_forward.11} parent=0 // pred_fallthru
    _
  // Predicated region
  $region30: #{w_discriminator_forward.11} parent=0 // pred_check
    _
  $region31: #{w_discriminator_forward.11} parent=0 // pred_check_branch
    %203 = sbr.rel (0) target = $region33
  $region32: #{w_discriminator_forward.11} parent=0 // pred_region
    _
  $region33: #{w_discriminator_forward.11} parent=0 // pred_fallthru
    _
  // Predicated region
  $region34: #{w_discriminator_forward.11} parent=0 // pred_check
    _
  $region35: #{w_discriminator_forward.11} parent=0 // pred_check_branch
    %205 = sbr.rel (0) target = $region37
  $region36: #{w_discriminator_forward.11} parent=0 // pred_region
    _
  $region37: #{w_discriminator_forward.11} parent=0 // pred_fallthru
    _
  // Predicated region
  $region38: #{w_discriminator_forward.11} parent=0 // pred_check
    _
  $region39: #{w_discriminator_forward.11} parent=0 // pred_check_branch
    %207 = sbr.rel (0) target = $region41
  $region40: #{w_discriminator_forward.11} parent=0 // pred_region
    _
  $region41: #{w_discriminator_forward.11} parent=0 // pred_fallthru
    _

// kernel: w_discriminator_forward.12
$region0: #{w_discriminator_forward.12}
  #allocation0 [shape = 'u32[]', space=smem, size = 0x4, offset = 0x4, fixed_abs, tag = 'smem constant byte address 0x4 - core index']
  #allocation1 [shape = 'u32[144,128]{1,0:T(1,128)}', space=vmem, size = 0x12000, scoped, tag = 'internal scratch']
  %s0 = inlined_call_operand.vmem [shape: bf16[16,128], index: 0, kind: input, shape index: {}]
  %s1 = inlined_call_operand.vmem [shape: f32[16,1], index: 1, kind: input, shape index: {}]
  %s2 = inlined_call_operand.vmem [shape: f32[16,1], index: 2, kind: input, shape index: {}]
  %s3 = inlined_call_operand.vmem [shape: f32[16,1], index: 3, kind: input, shape index: {}]
  %s4 = inlined_call_operand.vmem [shape: f32[16,1], index: 4, kind: input, shape index: {}]
  %s5 = inlined_call_operand.vmem [shape: bf16[16,128], index: 5, kind: output, shape index: {}]
  %s6 = sld [smem:[#allocation0]]
  $region30: #{w_discriminator_forward.12} parent=0
    _
  %s8 = ssub.s32 1, %s6
  %s9 = scalar_select 0, %s8, %s6
  // Predicated region
  $region2: #{w_discriminator_forward.12} parent=0 // pred_check
    _
  $region3: #{w_discriminator_forward.12} parent=0 // pred_check_branch
    %11 = sbr.rel (0) target = $region5
  $region4: #{w_discriminator_forward.12} parent=0 // pred_region
    _
  $region5: #{w_discriminator_forward.12} parent=0 // pred_fallthru
    _
  // Predicated region
  $region6: #{w_discriminator_forward.12} parent=0 // pred_check
    _
  $region7: #{w_discriminator_forward.12} parent=0 // pred_check_branch
    %13 = sbr.rel (0) target = $region9
  $region8: #{w_discriminator_forward.12} parent=0 // pred_region
    _
  $region9: #{w_discriminator_forward.12} parent=0 // pred_fallthru
    _
  // Predicated region
  $region10: #{w_discriminator_forward.12} parent=0 // pred_check
    _
  $region11: #{w_discriminator_forward.12} parent=0 // pred_check_branch
    %15 = sbr.rel (0) target = $region13
  $region12: #{w_discriminator_forward.12} parent=0 // pred_region
    _
  $region13: #{w_discriminator_forward.12} parent=0 // pred_fallthru
    _
  // Predicated region
  $region14: #{w_discriminator_forward.12} parent=0 // pred_check
    _
  $region15: #{w_discriminator_forward.12} parent=0 // pred_check_branch
    %17 = sbr.rel (0) target = $region17
  $region16: #{w_discriminator_forward.12} parent=0 // pred_region
    _
  $region17: #{w_discriminator_forward.12} parent=0 // pred_fallthru
    _
  // Predicated region
  $region18: #{w_discriminator_forward.12} parent=0 // pred_check
    _
  $region19: #{w_discriminator_forward.12} parent=0 // pred_check_branch
    %19 = sbr.rel (0) target = $region21
  $region20: #{w_discriminator_forward.12} parent=0 // pred_region
    _
  $region21: #{w_discriminator_forward.12} parent=0 // pred_fallthru
    _
  %v20 = vld [vmem:[%s1] sm:$0xff]
  %v21 = vld [vmem:[%s1 + $0x8] sm:$0xff]
  %v22 = vmul.f32 %v20, 0.0078125
  %v23 = vmul.f32 %v21, 0.0078125
  %v24 = vld [vmem:[%s2] sm:$0xff]
  %v25 = vld [vmem:[%s2 + $0x8] sm:$0xff]
  %v26 = vmul.f32 %v24, 0.0078125
  %v27 = vmul.f32 %v25, 0.0078125
  %v28 = vmul.f32 %v22, %v22
  %v29 = vmul.f32 %v23, %v23
  %v30 = vsub.f32 %v26, %v28
  %v31 = vsub.f32 %v27, %v29
  %v32 = vld [vmem:[%s3] sm:$0xff]
  %v33 = vld [vmem:[%s3 + $0x8] sm:$0xff]
  %v34 = vadd.f32 %v30, 1e-05
  %v35 = vadd.f32 %v31, 1e-05
  %v36 = vrsqrt.pop %v34
  %v37 = vrsqrt.pop %v35
  %v38 = vmul.f32 %v32, %v36
  %v39 = vmul.f32 %v33, %v37
  %v40 = vld [vmem:[%s4] sm:$0xff]
  %v41 = vld [vmem:[%s4 + $0x8] sm:$0xff]
  %v42 = vmul.f32 %v22, %v38
  %v43 = vmul.f32 %v23, %v39
  %v44 = vsub.f32 %v40, %v42
  %v45 = vsub.f32 %v41, %v43
  %v46 = vld [vmem:[%s0] sm:$0xf]
  %v47 = vld [vmem:[%s0 + $0x4] sm:$0xf]
  %v48 = vunpack.c.l.bf16 %v46
  %v49 = vunpack.c.l.bf16 %v47
  %51 = vset.pattern.permute.xlu0 0
  %52 = vperm.xlu0 %51, %v38
  %v53 = vpop.permute.xlu0 %52
  %56 = vset.pattern.permute.xlu0 0
  %57 = vperm.xlu0 %56, %v39
  %v58 = vpop.permute.xlu0 %57
  %v60 = vmul.f32 %v48, %v53
  %v61 = vmul.f32 %v49, %v58
  %63 = vset.pattern.permute.xlu0 0
  %64 = vperm.xlu0 %63, %v44
  %v65 = vpop.permute.xlu0 %64
  %68 = vset.pattern.permute.xlu0 0
  %69 = vperm.xlu0 %68, %v45
  %v70 = vpop.permute.xlu0 %69
  %v72 = vadd.f32 %v60, %v65
  %v73 = vadd.f32 %v61, %v70
  %vm74 = vcmp.gt.f32.partialorder %v72, 0.0
  %vm75 = vcmp.gt.f32.partialorder %v73, 0.0
  %v76 = vmul.f32 %v72, 0.2
  %v77 = vmul.f32 %v73, 0.2
  %v78 = vsel %vm74, %v72, %v76
  %v79 = vsel %vm75, %v73, %v77
  %v80 = vpack.c.bf16 %v79, %v78
  %v82 = vunpack.c.l.b16 %v80
  %v83 = vunpack.c.h.b16 %v80
  %v84 = vpack.c.b16 %v82, %v82
  %v85 = vpack.c.b16 %v83, %v83
  %88 = vst [vmem:[%s5] sm:$0xf] %v84
  %89 = vst [vmem:[%s5 + $0x4] sm:$0xf] %v85
  // Predicated region
  $region22: #{w_discriminator_forward.12} parent=0 // pred_check
    _
  $region23: #{w_discriminator_forward.12} parent=0 // pred_check_branch
    %91 = sbr.rel (0) target = $region25
  $region24: #{w_discriminator_forward.12} parent=0 // pred_region
    _
  $region25: #{w_discriminator_forward.12} parent=0 // pred_fallthru
    _
  // Predicated region
  $region26: #{w_discriminator_forward.12} parent=0 // pred_check
    _
  $region27: #{w_discriminator_forward.12} parent=0 // pred_check_branch
    %93 = sbr.rel (0) target = $region29
  $region28: #{w_discriminator_forward.12} parent=0 // pred_region
    _
  $region29: #{w_discriminator_forward.12} parent=0 // pred_fallthru
    _

// kernel: w_discriminator_forward.13
$region0: #{w_discriminator_forward.13}
  #allocation0 [shape = 'u32[]', space=smem, size = 0x4, offset = 0x4, fixed_abs, tag = 'smem constant byte address 0x4 - core index']
  #allocation1 [shape = 'u32[144,128]{1,0:T(1,128)}', space=vmem, size = 0x12000, scoped, tag = 'internal scratch']
  #allocation2 [shape = 'f32[32,32]{1,0:T(8,128)}', space=vmem, size = 0x4000, scoped, tag = 'scratch operand']
  %s0 = inlined_call_operand.vmem [shape: bf16[256,32], index: 0, kind: input, shape index: {}]
  %s1 = inlined_call_operand.vmem [shape: bf16[32,256], index: 1, kind: input, shape index: {}]
  %s2 = inlined_call_operand.vmem [shape: bf16[32,32], index: 2, kind: output, shape index: {0}]
  %s3 = inlined_call_operand.vmem [shape: f32[1,1,32], index: 3, kind: output, shape index: {1}]
  %s4 = inlined_call_operand.vmem [shape: f32[1,1,32], index: 4, kind: output, shape index: {2}]
  %5 = xla_tuple %s2, %s3, %s4
  %s6 = sld [smem:[#allocation0]]
  $region42: #{w_discriminator_forward.13} parent=0
    _
  %s8 = ssub.s32 1, %s6
  %s9 = scalar_select 0, %s8, %s6
  // Predicated region
  $region2: #{w_discriminator_forward.13} parent=0 // pred_check
    _
  $region3: #{w_discriminator_forward.13} parent=0 // pred_check_branch
    %11 = sbr.rel (0) target = $region5
  $region4: #{w_discriminator_forward.13} parent=0 // pred_region
    _
  $region5: #{w_discriminator_forward.13} parent=0 // pred_fallthru
    _
  // Predicated region
  $region6: #{w_discriminator_forward.13} parent=0 // pred_check
    _
  $region7: #{w_discriminator_forward.13} parent=0 // pred_check_branch
    %13 = sbr.rel (0) target = $region9
  $region8: #{w_discriminator_forward.13} parent=0 // pred_region
    _
  $region9: #{w_discriminator_forward.13} parent=0 // pred_fallthru
    _
  %p15 = scmp.eq.s32.totalorder 0, 0
  // Predicated region
  $region10: #{w_discriminator_forward.13} parent=0 // pred_check
    %p16 = pneg %p15
  $region11: #{w_discriminator_forward.13} parent=0 // pred_check_branch
    %18 = sbr.rel (%p16) target = $region13
  $region12: #{w_discriminator_forward.13} parent=0 // pred_region
    %vm19 = vcmask 261120
    %20 = vst.msk [vmem:[#allocation2] sm:$0xff] %vm19, 0.0
    %21 = vst.msk [vmem:[#allocation2 + $0x8] sm:$0xff] %vm19, 0.0
    %22 = vst.msk [vmem:[#allocation2 + $0x10] sm:$0xff] %vm19, 0.0
    %23 = vst.msk [vmem:[#allocation2 + $0x18] sm:$0xff] %vm19, 0.0
  $region13: #{w_discriminator_forward.13} parent=0 // pred_fallthru
    _
  %v24 = vld [vmem:[#allocation2] sm:$0xff]
  %v25 = vld [vmem:[#allocation2 + $0x8] sm:$0xff]
  %v26 = vld [vmem:[#allocation2 + $0x10] sm:$0xff]
  %v27 = vld [vmem:[#allocation2 + $0x18] sm:$0xff]
  %v28 = vld [vmem:[%s1] sm:$0xff]
  %v29 = vld [vmem:[%s1 + $0x8] sm:$0xff]
  %v30 = vld [vmem:[%s1 + $0x10] sm:$0xff]
  %v31 = vld [vmem:[%s1 + $0x18] sm:$0xff]
  %v32 = vld [vmem:[%s0] sm:$0xf]
  %v33 = vld [vmem:[%s0 + $0x4] sm:$0xf]
  %v34 = vld [vmem:[%s0 + $0x8] sm:$0xf]
  %v35 = vld [vmem:[%s0 + $0xc] sm:$0xf]
  %v36 = vld [vmem:[%s0 + $0x10] sm:$0xf]
  %v37 = vld [vmem:[%s0 + $0x14] sm:$0xf]
  %v38 = vld [vmem:[%s0 + $0x18] sm:$0xf]
  %v39 = vld [vmem:[%s0 + $0x1c] sm:$0xf]
  %v40 = vld [vmem:[%s0 + $0x20] sm:$0xf]
  %v41 = vld [vmem:[%s0 + $0x24] sm:$0xf]
  %v42 = vld [vmem:[%s0 + $0x28] sm:$0xf]
  %v43 = vld [vmem:[%s0 + $0x2c] sm:$0xf]
  %v44 = vld [vmem:[%s0 + $0x30] sm:$0xf]
  %v45 = vld [vmem:[%s0 + $0x34] sm:$0xf]
  %v46 = vld [vmem:[%s0 + $0x38] sm:$0xf]
  %v47 = vld [vmem:[%s0 + $0x3c] sm:$0xf]
  %v48 = vld [vmem:[%s0 + $0x40] sm:$0xf]
  %v49 = vld [vmem:[%s0 + $0x44] sm:$0xf]
  %v50 = vld [vmem:[%s0 + $0x48] sm:$0xf]
  %v51 = vld [vmem:[%s0 + $0x4c] sm:$0xf]
  %v52 = vld [vmem:[%s0 + $0x50] sm:$0xf]
  %v53 = vld [vmem:[%s0 + $0x54] sm:$0xf]
  %v54 = vld [vmem:[%s0 + $0x58] sm:$0xf]
  %v55 = vld [vmem:[%s0 + $0x5c] sm:$0xf]
  %v56 = vld [vmem:[%s0 + $0x60] sm:$0xf]
  %v57 = vld [vmem:[%s0 + $0x64] sm:$0xf]
  %v58 = vld [vmem:[%s0 + $0x68] sm:$0xf]
  %v59 = vld [vmem:[%s0 + $0x6c] sm:$0xf]
  %v60 = vld [vmem:[%s0 + $0x70] sm:$0xf]
  %v61 = vld [vmem:[%s0 + $0x74] sm:$0xf]
  %v62 = vld [vmem:[%s0 + $0x78] sm:$0xf]
  %v63 = vld [vmem:[%s0 + $0x7c] sm:$0xf]
  %v68 = vunpack.c.l.b16 %v28
  %v69 = vunpack.c.h.b16 %v28
  %v70 = vunpack.c.l.b16 %v29
  %v71 = vunpack.c.h.b16 %v29
  %v72 = vunpack.c.l.b16 %v30
  %v73 = vunpack.c.h.b16 %v30
  %v74 = vunpack.c.l.b16 %v31
  %v75 = vunpack.c.h.b16 %v31
  %v76 = vpack.c.b16 %v70, %v68
  %v77 = vpack.c.b16 %v71, %v69
  %v78 = vpack.c.b16 %v74, %v72
  %v79 = vpack.c.b16 %v75, %v73
  %v116 = vunpack.c.l.b16 %v32
  %v117 = vunpack.c.l.b16 %v33
  %v118 = vunpack.c.l.b16 %v34
  %v119 = vunpack.c.l.b16 %v35
  %v120 = vunpack.c.l.b16 %v36
  %v121 = vunpack.c.l.b16 %v37
  %v122 = vunpack.c.l.b16 %v38
  %v123 = vunpack.c.l.b16 %v39
  %v124 = vunpack.c.l.b16 %v40
  %v125 = vunpack.c.l.b16 %v41
  %v126 = vunpack.c.l.b16 %v42
  %v127 = vunpack.c.l.b16 %v43
  %v128 = vunpack.c.l.b16 %v44
  %v129 = vunpack.c.l.b16 %v45
  %v130 = vunpack.c.l.b16 %v46
  %v131 = vunpack.c.l.b16 %v47
  %v132 = vunpack.c.l.b16 %v48
  %v133 = vunpack.c.l.b16 %v49
  %v134 = vunpack.c.l.b16 %v50
  %v135 = vunpack.c.l.b16 %v51
  %v136 = vunpack.c.l.b16 %v52
  %v137 = vunpack.c.l.b16 %v53
  %v138 = vunpack.c.l.b16 %v54
  %v139 = vunpack.c.l.b16 %v55
  %v140 = vunpack.c.l.b16 %v56
  %v141 = vunpack.c.l.b16 %v57
  %v142 = vunpack.c.l.b16 %v58
  %v143 = vunpack.c.l.b16 %v59
  %v144 = vunpack.c.l.b16 %v60
  %v145 = vunpack.c.l.b16 %v61
  %v146 = vunpack.c.l.b16 %v62
  %v147 = vunpack.c.l.b16 %v63
  %v148 = vpack.c.b16 %v117, %v116
  %v149 = vpack.c.b16 %v119, %v118
  %v150 = vpack.c.b16 %v121, %v120
  %v151 = vpack.c.b16 %v123, %v122
  %v152 = vpack.c.b16 %v125, %v124
  %v153 = vpack.c.b16 %v127, %v126
  %v154 = vpack.c.b16 %v129, %v128
  %v155 = vpack.c.b16 %v131, %v130
  %v156 = vpack.c.b16 %v133, %v132
  %v157 = vpack.c.b16 %v135, %v134
  %v158 = vpack.c.b16 %v137, %v136
  %v159 = vpack.c.b16 %v139, %v138
  %v160 = vpack.c.b16 %v141, %v140
  %v161 = vpack.c.b16 %v143, %v142
  %v162 = vpack.c.b16 %v145, %v144
  %v163 = vpack.c.b16 %v147, %v146
  %180 = vmatprep.subr.bf16.mxu0 0
  %181 = vmatpush1.bf16.msra.mxu0 %v155
  %182 = vmatprep.subr.bf16.mxu0 0
  %183 = vmatpush1.bf16.msra.mxu0 %v154
  %184 = vmatprep.subr.bf16.mxu0 0
  %185 = vmatpush1.bf16.msra.mxu0 %v153
  %186 = vmatprep.subr.bf16.mxu0 0
  %187 = vmatpush1.bf16.msra.mxu0 %v152
  %188 = vmatprep.subr.bf16.mxu0 0
  %189 = vmatpush1.bf16.msra.mxu0 %v151
  %190 = vmatprep.subr.bf16.mxu0 0
  %191 = vmatpush1.bf16.msra.mxu0 %v150
  %192 = vmatprep.subr.bf16.mxu0 0
  %193 = vmatpush1.bf16.msra.mxu0 %v149
  %194 = vmatprep.subr.bf16.mxu0 0
  %195 = vmatpush1.bf16.msra.mxu0 %v148
  %196 = vmatprep.subr.bf16.mxu0 0
  %197 = vmatpush2.bf16.msra.mxu0 %v163
  %198 = vmatprep.subr.bf16.mxu0 0
  %199 = vmatpush2.bf16.msra.mxu0 %v162
  %200 = vmatprep.subr.bf16.mxu0 0
  %201 = vmatpush2.bf16.msra.mxu0 %v161
  %202 = vmatprep.subr.bf16.mxu0 0
  %203 = vmatpush2.bf16.msra.mxu0 %v160
  %204 = vmatprep.subr.bf16.mxu0 0
  %205 = vmatpush2.bf16.msra.mxu0 %v159
  %206 = vmatprep.subr.bf16.mxu0 0
  %207 = vmatpush2.bf16.msra.mxu0 %v158
  %208 = vmatprep.subr.bf16.mxu0 0
  %209 = vmatpush2.bf16.msra.mxu0 %v157
  %210 = vmatprep.subr.bf16.mxu0 0
  %211 = vmatpush2.bf16.msra.mxu0 %v156
  %212 = vmatprep.mubr.bf16.mxu0 %v77
  %213 = vmatmul.mubr.bf16.gmra.mxu0 %v76
  %v214 = vpop.f32.mrf.mxu0
  %v215 = vadd.f32 0.0, %v214
  %v216 = vpop.f32.mrf.mxu0
  %v217 = vpop.f32.mrf.mxu0
  %v218 = vadd.f32 0.0, %v217
  %v219 = vpop.f32.mrf.mxu0
  %220 = vmatprep.mubr.bf16.mxu0 %v79
  %221 = vmatmul.mubr.bf16.gmra.mxu0 %v78
  %v222 = vpop.f32.mrf.mxu0
  %v223 = vadd.f32 0.0, %v222
  %v224 = vpop.f32.mrf.mxu0
  %v225 = vpop.f32.mrf.mxu0
  %v226 = vadd.f32 0.0, %v225
  %v227 = vpop.f32.mrf.mxu0
  %228 = vdwg.mxu0
  %v229 = vadd.f32 %v24, %v215
  %v230 = vadd.f32 %v25, %v218
  %v231 = vadd.f32 %v26, %v223
  %v232 = vadd.f32 %v27, %v226
  %vm233 = vcmask 261120
  %234 = vst.msk [vmem:[#allocation2] sm:$0xff] %vm233, %v229
  %235 = vst.msk [vmem:[#allocation2 + $0x8] sm:$0xff] %vm233, %v230
  %236 = vst.msk [vmem:[#allocation2 + $0x10] sm:$0xff] %vm233, %v231
  %237 = vst.msk [vmem:[#allocation2 + $0x18] sm:$0xff] %vm233, %v232
  // Predicated region
  $region14: #{w_discriminator_forward.13} parent=0 // pred_check
    %p238 = pneg %p15
  $region15: #{w_discriminator_forward.13} parent=0 // pred_check_branch
    %240 = sbr.rel (%p238) target = $region17
  $region16: #{w_discriminator_forward.13} parent=0 // pred_region
    %v241 = vld [vmem:[#allocation2] sm:$0xff]
    %v242 = vld [vmem:[#allocation2 + $0x8] sm:$0xff]
    %v243 = vld [vmem:[#allocation2 + $0x10] sm:$0xff]
    %v244 = vld [vmem:[#allocation2 + $0x18] sm:$0xff]
    %v245 = vpack.c.bf16 %v242, %v241
    %v246 = vpack.c.bf16 %v244, %v243
    %v249 = vunpack.c.l.b16 %v245
    %v250 = vunpack.c.h.b16 %v245
    %v251 = vunpack.c.l.b16 %v246
    %v252 = vunpack.c.h.b16 %v246
    %v253 = vpack.c.b16 %v249, %v249
    %v254 = vpack.c.b16 %v250, %v250
    %v255 = vpack.c.b16 %v251, %v251
    %v256 = vpack.c.b16 %v252, %v252
    %vm261 = vcmask 257024
    %262 = vst.msk [vmem:[%s2] sm:$0xf] %vm261, %v253
    %263 = vst.msk [vmem:[%s2 + $0x4] sm:$0xf] %vm261, %v254
    %264 = vst.msk [vmem:[%s2 + $0x8] sm:$0xf] %vm261, %v255
    %265 = vst.msk [vmem:[%s2 + $0xc] sm:$0xf] %vm261, %v256
    %v266 = vsel %vm233, %v241, 0.0
    %267 = vadd.xlane.f32.xlu0 %v266
    %v268 = vpop.xlane.xlu0 %267
    %v269 = vsel %vm233, %v242, 0.0
    %270 = vadd.xlane.f32.xlu0 %v269
    %v271 = vpop.xlane.xlu0 %270
    %v272 = vsel %vm233, %v243, 0.0
    %273 = vadd.xlane.f32.xlu0 %v272
    %v274 = vpop.xlane.xlu0 %273
    %v275 = vsel %vm233, %v244, 0.0
    %276 = vadd.xlane.f32.xlu0 %v275
    %v277 = vpop.xlane.xlu0 %276
    %v282 = vlaneseq
    %v283 = vand.u32 %v282, 127
    %v284 = vlaneseq
    %v285 = vshrl.u32 %v284, 7
    %v286 = vsub.s32 %v283, %v285
    %v287 = vrot.slane %v268, %v286
    %v288 = vadd.s32 %v283, 4294967288
    %v289 = vlaneseq
    %v290 = vshrl.u32 %v289, 7
    %v291 = vsub.s32 %v288, %v290
    %v292 = vrot.slane %v271, %v291
    %vm293 = vcmask 130112
    %v294 = vsel %vm293, %v292, %v287
    %v295 = vadd.s32 %v283, 4294967280
    %v296 = vlaneseq
    %v297 = vshrl.u32 %v296, 7
    %v298 = vsub.s32 %v295, %v297
    %v299 = vrot.slane %v274, %v298
    %vm300 = vcmask 195712
    %v301 = vsel %vm300, %v299, %v294
    %v302 = vadd.s32 %v283, 4294967272
    %v303 = vlaneseq
    %v304 = vshrl.u32 %v303, 7
    %v305 = vsub.s32 %v302, %v304
    %v306 = vrot.slane %v277, %v305
    %vm307 = vcmask 261312
    %v308 = vsel %vm307, %v306, %v301
    %vm310 = vcmask 253952
    %311 = vst.msk [vmem:[%s3] sm:$0x1] %vm310, %v308
    %v312 = vmul.f32 %v241, %v241
    %v313 = vmul.f32 %v242, %v242
    %v314 = vmul.f32 %v243, %v243
    %v315 = vmul.f32 %v244, %v244
    %v316 = vsel %vm233, %v312, 0.0
    %317 = vadd.xlane.f32.xlu0 %v316
    %v318 = vpop.xlane.xlu0 %317
    %v319 = vsel %vm233, %v313, 0.0
    %320 = vadd.xlane.f32.xlu0 %v319
    %v321 = vpop.xlane.xlu0 %320
    %v322 = vsel %vm233, %v314, 0.0
    %323 = vadd.xlane.f32.xlu0 %v322
    %v324 = vpop.xlane.xlu0 %323
    %v325 = vsel %vm233, %v315, 0.0
    %326 = vadd.xlane.f32.xlu0 %v325
    %v327 = vpop.xlane.xlu0 %326
    %v332 = vlaneseq
    %v333 = vshrl.u32 %v332, 7
    %v334 = vsub.s32 %v283, %v333
    %v335 = vrot.slane %v318, %v334
    %v336 = vlaneseq
    %v337 = vshrl.u32 %v336, 7
    %v338 = vsub.s32 %v288, %v337
    %v339 = vrot.slane %v321, %v338
    %v340 = vsel %vm293, %v339, %v335
    %v341 = vlaneseq
    %v342 = vshrl.u32 %v341, 7
    %v343 = vsub.s32 %v295, %v342
    %v344 = vrot.slane %v324, %v343
    %v345 = vsel %vm300, %v344, %v340
    %v346 = vlaneseq
    %v347 = vshrl.u32 %v346, 7
    %v348 = vsub.s32 %v302, %v347
    %v349 = vrot.slane %v327, %v348
    %v350 = vsel %vm307, %v349, %v345
    %352 = vst.msk [vmem:[%s4] sm:$0x1] %vm310, %v350
  $region17: #{w_discriminator_forward.13} parent=0 // pred_fallthru
    _
  // Predicated region
  $region18: #{w_discriminator_forward.13} parent=0 // pred_check
    _
  $region19: #{w_discriminator_forward.13} parent=0 // pred_check_branch
    %354 = sbr.rel (0) target = $region21
  $region20: #{w_discriminator_forward.13} parent=0 // pred_region
    _
  $region21: #{w_discriminator_forward.13} parent=0 // pred_fallthru
    _
  // Predicated region
  $region22: #{w_discriminator_forward.13} parent=0 // pred_check
    _
  $region23: #{w_discriminator_forward.13} parent=0 // pred_check_branch
    %356 = sbr.rel (0) target = $region25
  $region24: #{w_discriminator_forward.13} parent=0 // pred_region
    _
  $region25: #{w_discriminator_forward.13} parent=0 // pred_fallthru
    _
  // Predicated region
  $region26: #{w_discriminator_forward.13} parent=0 // pred_check
    _
  $region27: #{w_discriminator_forward.13} parent=0 // pred_check_branch
    %358 = sbr.rel (0) target = $region29
  $region28: #{w_discriminator_forward.13} parent=0 // pred_region
    _
  $region29: #{w_discriminator_forward.13} parent=0 // pred_fallthru
    _
  // Predicated region
  $region30: #{w_discriminator_forward.13} parent=0 // pred_check
    _
  $region31: #{w_discriminator_forward.13} parent=0 // pred_check_branch
    %360 = sbr.rel (0) target = $region33
  $region32: #{w_discriminator_forward.13} parent=0 // pred_region
    _
  $region33: #{w_discriminator_forward.13} parent=0 // pred_fallthru
    _
  // Predicated region
  $region34: #{w_discriminator_forward.13} parent=0 // pred_check
    _
  $region35: #{w_discriminator_forward.13} parent=0 // pred_check_branch
    %362 = sbr.rel (0) target = $region37
  $region36: #{w_discriminator_forward.13} parent=0 // pred_region
    _
  $region37: #{w_discriminator_forward.13} parent=0 // pred_fallthru
    _
  // Predicated region
  $region38: #{w_discriminator_forward.13} parent=0 // pred_check
    _
  $region39: #{w_discriminator_forward.13} parent=0 // pred_check_branch
    %364 = sbr.rel (0) target = $region41
  $region40: #{w_discriminator_forward.13} parent=0 // pred_region
    _
  $region41: #{w_discriminator_forward.13} parent=0 // pred_fallthru
    _

// kernel: w_discriminator_forward.14
$region0: #{w_discriminator_forward.14}
  #allocation0 [shape = 'u32[]', space=smem, size = 0x4, offset = 0x4, fixed_abs, tag = 'smem constant byte address 0x4 - core index']
  #allocation1 [shape = 'u32[144,128]{1,0:T(1,128)}', space=vmem, size = 0x12000, scoped, tag = 'internal scratch']
  %s0 = inlined_call_operand.vmem [shape: bf16[32,32], index: 0, kind: input, shape index: {}]
  %s1 = inlined_call_operand.vmem [shape: f32[32,1], index: 1, kind: input, shape index: {}]
  %s2 = inlined_call_operand.vmem [shape: f32[32,1], index: 2, kind: input, shape index: {}]
  %s3 = inlined_call_operand.vmem [shape: f32[32,1], index: 3, kind: input, shape index: {}]
  %s4 = inlined_call_operand.vmem [shape: f32[32,1], index: 4, kind: input, shape index: {}]
  %s5 = inlined_call_operand.vmem [shape: bf16[32,32], index: 5, kind: output, shape index: {}]
  %s6 = sld [smem:[#allocation0]]
  $region30: #{w_discriminator_forward.14} parent=0
    _
  %s8 = ssub.s32 1, %s6
  %s9 = scalar_select 0, %s8, %s6
  // Predicated region
  $region2: #{w_discriminator_forward.14} parent=0 // pred_check
    _
  $region3: #{w_discriminator_forward.14} parent=0 // pred_check_branch
    %11 = sbr.rel (0) target = $region5
  $region4: #{w_discriminator_forward.14} parent=0 // pred_region
    _
  $region5: #{w_discriminator_forward.14} parent=0 // pred_fallthru
    _
  // Predicated region
  $region6: #{w_discriminator_forward.14} parent=0 // pred_check
    _
  $region7: #{w_discriminator_forward.14} parent=0 // pred_check_branch
    %13 = sbr.rel (0) target = $region9
  $region8: #{w_discriminator_forward.14} parent=0 // pred_region
    _
  $region9: #{w_discriminator_forward.14} parent=0 // pred_fallthru
    _
  // Predicated region
  $region10: #{w_discriminator_forward.14} parent=0 // pred_check
    _
  $region11: #{w_discriminator_forward.14} parent=0 // pred_check_branch
    %15 = sbr.rel (0) target = $region13
  $region12: #{w_discriminator_forward.14} parent=0 // pred_region
    _
  $region13: #{w_discriminator_forward.14} parent=0 // pred_fallthru
    _
  // Predicated region
  $region14: #{w_discriminator_forward.14} parent=0 // pred_check
    _
  $region15: #{w_discriminator_forward.14} parent=0 // pred_check_branch
    %17 = sbr.rel (0) target = $region17
  $region16: #{w_discriminator_forward.14} parent=0 // pred_region
    _
  $region17: #{w_discriminator_forward.14} parent=0 // pred_fallthru
    _
  // Predicated region
  $region18: #{w_discriminator_forward.14} parent=0 // pred_check
    _
  $region19: #{w_discriminator_forward.14} parent=0 // pred_check_branch
    %19 = sbr.rel (0) target = $region21
  $region20: #{w_discriminator_forward.14} parent=0 // pred_region
    _
  $region21: #{w_discriminator_forward.14} parent=0 // pred_fallthru
    _
  %v20 = vld [vmem:[%s1] sm:$0xff]
  %v21 = vld [vmem:[%s1 + $0x8] sm:$0xff]
  %v22 = vld [vmem:[%s1 + $0x10] sm:$0xff]
  %v23 = vld [vmem:[%s1 + $0x18] sm:$0xff]
  %v24 = vmul.f32 %v20, 0.03125
  %v25 = vmul.f32 %v21, 0.03125
  %v26 = vmul.f32 %v22, 0.03125
  %v27 = vmul.f32 %v23, 0.03125
  %v28 = vld [vmem:[%s2] sm:$0xff]
  %v29 = vld [vmem:[%s2 + $0x8] sm:$0xff]
  %v30 = vld [vmem:[%s2 + $0x10] sm:$0xff]
  %v31 = vld [vmem:[%s2 + $0x18] sm:$0xff]
  %v32 = vmul.f32 %v28, 0.03125
  %v33 = vmul.f32 %v29, 0.03125
  %v34 = vmul.f32 %v30, 0.03125
  %v35 = vmul.f32 %v31, 0.03125
  %v36 = vmul.f32 %v24, %v24
  %v37 = vmul.f32 %v25, %v25
  %v38 = vmul.f32 %v26, %v26
  %v39 = vmul.f32 %v27, %v27
  %v40 = vsub.f32 %v32, %v36
  %v41 = vsub.f32 %v33, %v37
  %v42 = vsub.f32 %v34, %v38
  %v43 = vsub.f32 %v35, %v39
  %v44 = vld [vmem:[%s3] sm:$0xff]
  %v45 = vld [vmem:[%s3 + $0x8] sm:$0xff]
  %v46 = vld [vmem:[%s3 + $0x10] sm:$0xff]
  %v47 = vld [vmem:[%s3 + $0x18] sm:$0xff]
  %v48 = vadd.f32 %v40, 1e-05
  %v49 = vadd.f32 %v41, 1e-05
  %v50 = vadd.f32 %v42, 1e-05
  %v51 = vadd.f32 %v43, 1e-05
  %v52 = vrsqrt.pop %v48
  %v53 = vrsqrt.pop %v49
  %v54 = vrsqrt.pop %v50
  %v55 = vrsqrt.pop %v51
  %v56 = vmul.f32 %v44, %v52
  %v57 = vmul.f32 %v45, %v53
  %v58 = vmul.f32 %v46, %v54
  %v59 = vmul.f32 %v47, %v55
  %v60 = vld [vmem:[%s4] sm:$0xff]
  %v61 = vld [vmem:[%s4 + $0x8] sm:$0xff]
  %v62 = vld [vmem:[%s4 + $0x10] sm:$0xff]
  %v63 = vld [vmem:[%s4 + $0x18] sm:$0xff]
  %v64 = vmul.f32 %v24, %v56
  %v65 = vmul.f32 %v25, %v57
  %v66 = vmul.f32 %v26, %v58
  %v67 = vmul.f32 %v27, %v59
  %v68 = vsub.f32 %v60, %v64
  %v69 = vsub.f32 %v61, %v65
  %v70 = vsub.f32 %v62, %v66
  %v71 = vsub.f32 %v63, %v67
  %v72 = vld [vmem:[%s0] sm:$0xf]
  %v73 = vld [vmem:[%s0 + $0x4] sm:$0xf]
  %v74 = vld [vmem:[%s0 + $0x8] sm:$0xf]
  %v75 = vld [vmem:[%s0 + $0xc] sm:$0xf]
  %v76 = vunpack.c.l.bf16 %v72
  %v77 = vunpack.c.l.bf16 %v73
  %v78 = vunpack.c.l.bf16 %v74
  %v79 = vunpack.c.l.bf16 %v75
  %81 = vset.pattern.permute.xlu0 0
  %82 = vperm.xlu0 %81, %v56
  %v83 = vpop.permute.xlu0 %82
  %86 = vset.pattern.permute.xlu0 0
  %87 = vperm.xlu0 %86, %v57
  %v88 = vpop.permute.xlu0 %87
  %91 = vset.pattern.permute.xlu0 0
  %92 = vperm.xlu0 %91, %v58
  %v93 = vpop.permute.xlu0 %92
  %96 = vset.pattern.permute.xlu0 0
  %97 = vperm.xlu0 %96, %v59
  %v98 = vpop.permute.xlu0 %97
  %v100 = vmul.f32 %v76, %v83
  %v101 = vmul.f32 %v77, %v88
  %v102 = vmul.f32 %v78, %v93
  %v103 = vmul.f32 %v79, %v98
  %105 = vset.pattern.permute.xlu0 0
  %106 = vperm.xlu0 %105, %v68
  %v107 = vpop.permute.xlu0 %106
  %110 = vset.pattern.permute.xlu0 0
  %111 = vperm.xlu0 %110, %v69
  %v112 = vpop.permute.xlu0 %111
  %115 = vset.pattern.permute.xlu0 0
  %116 = vperm.xlu0 %115, %v70
  %v117 = vpop.permute.xlu0 %116
  %120 = vset.pattern.permute.xlu0 0
  %121 = vperm.xlu0 %120, %v71
  %v122 = vpop.permute.xlu0 %121
  %v124 = vadd.f32 %v100, %v107
  %v125 = vadd.f32 %v101, %v112
  %v126 = vadd.f32 %v102, %v117
  %v127 = vadd.f32 %v103, %v122
  %vm128 = vcmp.gt.f32.partialorder %v124, 0.0
  %vm129 = vcmp.gt.f32.partialorder %v125, 0.0
  %vm130 = vcmp.gt.f32.partialorder %v126, 0.0
  %vm131 = vcmp.gt.f32.partialorder %v127, 0.0
  %v132 = vmul.f32 %v124, 0.2
  %v133 = vmul.f32 %v125, 0.2
  %v134 = vmul.f32 %v126, 0.2
  %v135 = vmul.f32 %v127, 0.2
  %v136 = vsel %vm128, %v124, %v132
  %v137 = vsel %vm129, %v125, %v133
  %v138 = vsel %vm130, %v126, %v134
  %v139 = vsel %vm131, %v127, %v135
  %v140 = vpack.c.bf16 %v137, %v136
  %v141 = vpack.c.bf16 %v139, %v138
  %v144 = vunpack.c.l.b16 %v140
  %v145 = vunpack.c.h.b16 %v140
  %v146 = vunpack.c.l.b16 %v141
  %v147 = vunpack.c.h.b16 %v141
  %v148 = vpack.c.b16 %v144, %v144
  %v149 = vpack.c.b16 %v145, %v145
  %v150 = vpack.c.b16 %v146, %v146
  %v151 = vpack.c.b16 %v147, %v147
  %vm156 = vcmask 257024
  %157 = vst.msk [vmem:[%s5] sm:$0xf] %vm156, %v148
  %158 = vst.msk [vmem:[%s5 + $0x4] sm:$0xf] %vm156, %v149
  %159 = vst.msk [vmem:[%s5 + $0x8] sm:$0xf] %vm156, %v150
  %160 = vst.msk [vmem:[%s5 + $0xc] sm:$0xf] %vm156, %v151
  // Predicated region
  $region22: #{w_discriminator_forward.14} parent=0 // pred_check
    _
  $region23: #{w_discriminator_forward.14} parent=0 // pred_check_branch
    %162 = sbr.rel (0) target = $region25
  $region24: #{w_discriminator_forward.14} parent=0 // pred_region
    _
  $region25: #{w_discriminator_forward.14} parent=0 // pred_fallthru
    _
  // Predicated region
  $region26: #{w_discriminator_forward.14} parent=0 // pred_check
    _
  $region27: #{w_discriminator_forward.14} parent=0 // pred_check_branch
    %164 = sbr.rel (0) target = $region29
  $region28: #{w_discriminator_forward.14} parent=0 // pred_region
    _
  $region29: #{w_discriminator_forward.14} parent=0 // pred_fallthru
    _

// kernel: w_discriminator_forward.15
$region0: #{w_discriminator_forward.15}
  #allocation0 [shape = 'u32[]', space=smem, size = 0x4, offset = 0x4, fixed_abs, tag = 'smem constant byte address 0x4 - core index']
  #allocation1 [shape = 'u32[144,128]{1,0:T(1,128)}', space=vmem, size = 0x12000, scoped, tag = 'internal scratch']
  %s0 = inlined_call_operand.vmem [shape: bf16[512,2], index: 0, kind: input, shape index: {}]
  %s1 = inlined_call_operand.vmem [shape: bf16[1,512], index: 1, kind: input, shape index: {}]
  %s2 = inlined_call_operand.hbm [shape: f32[1,1], index: 2, kind: output, shape index: {}]
  %s3 = sld [smem:[#allocation0]]
  $region18: #{w_discriminator_forward.15} parent=0
    _
  %s5 = ssub.s32 1, %s3
  %s6 = scalar_select 0, %s5, %s3
  $region1: #{w_discriminator_forward.15} parent=0
    #allocation2 [shape = 'u8[512]{0}', space=vmem, size = 0x400, scoped, tag = 'output window, operand 0, single buffered']
    #allocation3 [shape = 's32[1]{0}', space=sflag, size = 0x4, scoped, tag = 'scoped memory for w_discriminator_forward.15']
    %7 = vsyncpa [#allocation3], 0
    // Predicated region
    $region2: #{w_discriminator_forward.15} parent=1 // pred_check
      _
    $region3: #{w_discriminator_forward.15} parent=1 // pred_check_branch
      %9 = sbr.rel (0) target = $region5
    $region4: #{w_discriminator_forward.15} parent=1 // pred_region
      _
    $region5: #{w_discriminator_forward.15} parent=1 // pred_fallthru
      _
    // Predicated region
    $region6: #{w_discriminator_forward.15} parent=1 // pred_check
      _
    $region7: #{w_discriminator_forward.15} parent=1 // pred_check_branch
      %11 = sbr.rel (0) target = $region9
    $region8: #{w_discriminator_forward.15} parent=1 // pred_region
      _
    $region9: #{w_discriminator_forward.15} parent=1 // pred_fallthru
      _
    %v13 = vld [vmem:[%s1] sm:$0xf]
    %v14 = vld [vmem:[%s0] sm:$0xf]
    %v15 = vld [vmem:[%s0 + $0x4] sm:$0xf]
    %v16 = vld [vmem:[%s0 + $0x8] sm:$0xf]
    %v17 = vld [vmem:[%s0 + $0xc] sm:$0xf]
    %v18 = vld [vmem:[%s0 + $0x10] sm:$0xf]
    %v19 = vld [vmem:[%s0 + $0x14] sm:$0xf]
    %v20 = vld [vmem:[%s0 + $0x18] sm:$0xf]
    %v21 = vld [vmem:[%s0 + $0x1c] sm:$0xf]
    %v22 = vld [vmem:[%s0 + $0x20] sm:$0xf]
    %v23 = vld [vmem:[%s0 + $0x24] sm:$0xf]
    %v24 = vld [vmem:[%s0 + $0x28] sm:$0xf]
    %v25 = vld [vmem:[%s0 + $0x2c] sm:$0xf]
    %v26 = vld [vmem:[%s0 + $0x30] sm:$0xf]
    %v27 = vld [vmem:[%s0 + $0x34] sm:$0xf]
    %v28 = vld [vmem:[%s0 + $0x38] sm:$0xf]
    %v29 = vld [vmem:[%s0 + $0x3c] sm:$0xf]
    %v30 = vld [vmem:[%s0 + $0x40] sm:$0xf]
    %v31 = vld [vmem:[%s0 + $0x44] sm:$0xf]
    %v32 = vld [vmem:[%s0 + $0x48] sm:$0xf]
    %v33 = vld [vmem:[%s0 + $0x4c] sm:$0xf]
    %v34 = vld [vmem:[%s0 + $0x50] sm:$0xf]
    %v35 = vld [vmem:[%s0 + $0x54] sm:$0xf]
    %v36 = vld [vmem:[%s0 + $0x58] sm:$0xf]
    %v37 = vld [vmem:[%s0 + $0x5c] sm:$0xf]
    %v38 = vld [vmem:[%s0 + $0x60] sm:$0xf]
    %v39 = vld [vmem:[%s0 + $0x64] sm:$0xf]
    %v40 = vld [vmem:[%s0 + $0x68] sm:$0xf]
    %v41 = vld [vmem:[%s0 + $0x6c] sm:$0xf]
    %v42 = vld [vmem:[%s0 + $0x70] sm:$0xf]
    %v43 = vld [vmem:[%s0 + $0x74] sm:$0xf]
    %v44 = vld [vmem:[%s0 + $0x78] sm:$0xf]
    %v45 = vld [vmem:[%s0 + $0x7c] sm:$0xf]
    %v46 = vld [vmem:[%s0 + $0x80] sm:$0xf]
    %v47 = vld [vmem:[%s0 + $0x84] sm:$0xf]
    %v48 = vld [vmem:[%s0 + $0x88] sm:$0xf]
    %v49 = vld [vmem:[%s0 + $0x8c] sm:$0xf]
    %v50 = vld [vmem:[%s0 + $0x90] sm:$0xf]
    %v51 = vld [vmem:[%s0 + $0x94] sm:$0xf]
    %v52 = vld [vmem:[%s0 + $0x98] sm:$0xf]
    %v53 = vld [vmem:[%s0 + $0x9c] sm:$0xf]
    %v54 = vld [vmem:[%s0 + $0xa0] sm:$0xf]
    %v55 = vld [vmem:[%s0 + $0xa4] sm:$0xf]
    %v56 = vld [vmem:[%s0 + $0xa8] sm:$0xf]
    %v57 = vld [vmem:[%s0 + $0xac] sm:$0xf]
    %v58 = vld [vmem:[%s0 + $0xb0] sm:$0xf]
    %v59 = vld [vmem:[%s0 + $0xb4] sm:$0xf]
    %v60 = vld [vmem:[%s0 + $0xb8] sm:$0xf]
    %v61 = vld [vmem:[%s0 + $0xbc] sm:$0xf]
    %v62 = vld [vmem:[%s0 + $0xc0] sm:$0xf]
    %v63 = vld [vmem:[%s0 + $0xc4] sm:$0xf]
    %v64 = vld [vmem:[%s0 + $0xc8] sm:$0xf]
    %v65 = vld [vmem:[%s0 + $0xcc] sm:$0xf]
    %v66 = vld [vmem:[%s0 + $0xd0] sm:$0xf]
    %v67 = vld [vmem:[%s0 + $0xd4] sm:$0xf]
    %v68 = vld [vmem:[%s0 + $0xd8] sm:$0xf]
    %v69 = vld [vmem:[%s0 + $0xdc] sm:$0xf]
    %v70 = vld [vmem:[%s0 + $0xe0] sm:$0xf]
    %v71 = vld [vmem:[%s0 + $0xe4] sm:$0xf]
    %v72 = vld [vmem:[%s0 + $0xe8] sm:$0xf]
    %v73 = vld [vmem:[%s0 + $0xec] sm:$0xf]
    %v74 = vld [vmem:[%s0 + $0xf0] sm:$0xf]
    %v75 = vld [vmem:[%s0 + $0xf4] sm:$0xf]
    %v76 = vld [vmem:[%s0 + $0xf8] sm:$0xf]
    %v77 = vld [vmem:[%s0 + $0xfc] sm:$0xf]
    %v80 = vunpack.c.l.s4 1966171168
    %v81 = vunpack.c.0.s8 %v80
    %v82 = vlaneseq
    %v83 = vshrl.u32 %v82, 7
    %v84 = vsub.s32 %v81, %v83
    %v85 = vrot.slane %v13, %v84
    %v86 = vcombine.high %v85, %v85
    %v88 = vunpack.c.l.s4 1966171168
    %v89 = vunpack.c.0.s8 %v88
    %v90 = vlaneseq
    %v91 = vshrl.u32 %v90, 7
    %v92 = vsub.s32 %v89, %v91
    %v93 = vrot.slane %v85, %v92
    %v95 = vunpack.c.l.s4 1966171168
    %v96 = vunpack.c.0.s8 %v95
    %v97 = vlaneseq
    %v98 = vshrl.u32 %v97, 7
    %v99 = vsub.s32 %v96, %v98
    %v100 = vrot.slane %v86, %v99
    %v101 = vcombine.high %v93, %v93
    %v102 = vcombine.high %v100, %v100
    %v171 = vunpack.c.l.b16 %v14
    %v172 = vunpack.c.l.b16 %v15
    %v173 = vunpack.c.l.b16 %v16
    %v174 = vunpack.c.l.b16 %v17
    %v175 = vunpack.c.l.b16 %v18
    %v176 = vunpack.c.l.b16 %v19
    %v177 = vunpack.c.l.b16 %v20
    %v178 = vunpack.c.l.b16 %v21
    %v179 = vunpack.c.l.b16 %v22
    %v180 = vunpack.c.l.b16 %v23
    %v181 = vunpack.c.l.b16 %v24
    %v182 = vunpack.c.l.b16 %v25
    %v183 = vunpack.c.l.b16 %v26
    %v184 = vunpack.c.l.b16 %v27
    %v185 = vunpack.c.l.b16 %v28
    %v186 = vunpack.c.l.b16 %v29
    %v187 = vunpack.c.l.b16 %v30
    %v188 = vunpack.c.l.b16 %v31
    %v189 = vunpack.c.l.b16 %v32
    %v190 = vunpack.c.l.b16 %v33
    %v191 = vunpack.c.l.b16 %v34
    %v192 = vunpack.c.l.b16 %v35
    %v193 = vunpack.c.l.b16 %v36
    %v194 = vunpack.c.l.b16 %v37
    %v195 = vunpack.c.l.b16 %v38
    %v196 = vunpack.c.l.b16 %v39
    %v197 = vunpack.c.l.b16 %v40
    %v198 = vunpack.c.l.b16 %v41
    %v199 = vunpack.c.l.b16 %v42
    %v200 = vunpack.c.l.b16 %v43
    %v201 = vunpack.c.l.b16 %v44
    %v202 = vunpack.c.l.b16 %v45
    %v203 = vunpack.c.l.b16 %v46
    %v204 = vunpack.c.l.b16 %v47
    %v205 = vunpack.c.l.b16 %v48
    %v206 = vunpack.c.l.b16 %v49
    %v207 = vunpack.c.l.b16 %v50
    %v208 = vunpack.c.l.b16 %v51
    %v209 = vunpack.c.l.b16 %v52
    %v210 = vunpack.c.l.b16 %v53
    %v211 = vunpack.c.l.b16 %v54
    %v212 = vunpack.c.l.b16 %v55
    %v213 = vunpack.c.l.b16 %v56
    %v214 = vunpack.c.l.b16 %v57
    %v215 = vunpack.c.l.b16 %v58
    %v216 = vunpack.c.l.b16 %v59
    %v217 = vunpack.c.l.b16 %v60
    %v218 = vunpack.c.l.b16 %v61
    %v219 = vunpack.c.l.b16 %v62
    %v220 = vunpack.c.l.b16 %v63
    %v221 = vunpack.c.l.b16 %v64
    %v222 = vunpack.c.l.b16 %v65
    %v223 = vunpack.c.l.b16 %v66
    %v224 = vunpack.c.l.b16 %v67
    %v225 = vunpack.c.l.b16 %v68
    %v226 = vunpack.c.l.b16 %v69
    %v227 = vunpack.c.l.b16 %v70
    %v228 = vunpack.c.l.b16 %v71
    %v229 = vunpack.c.l.b16 %v72
    %v230 = vunpack.c.l.b16 %v73
    %v231 = vunpack.c.l.b16 %v74
    %v232 = vunpack.c.l.b16 %v75
    %v233 = vunpack.c.l.b16 %v76
    %v234 = vunpack.c.l.b16 %v77
    %v235 = vpack.c.b16 %v172, %v171
    %v236 = vpack.c.b16 %v174, %v173
    %v237 = vpack.c.b16 %v176, %v175
    %v238 = vpack.c.b16 %v178, %v177
    %v239 = vpack.c.b16 %v180, %v179
    %v240 = vpack.c.b16 %v182, %v181
    %v241 = vpack.c.b16 %v184, %v183
    %v242 = vpack.c.b16 %v186, %v185
    %v243 = vpack.c.b16 %v188, %v187
    %v244 = vpack.c.b16 %v190, %v189
    %v245 = vpack.c.b16 %v192, %v191
    %v246 = vpack.c.b16 %v194, %v193
    %v247 = vpack.c.b16 %v196, %v195
    %v248 = vpack.c.b16 %v198, %v197
    %v249 = vpack.c.b16 %v200, %v199
    %v250 = vpack.c.b16 %v202, %v201
    %v251 = vpack.c.b16 %v204, %v203
    %v252 = vpack.c.b16 %v206, %v205
    %v253 = vpack.c.b16 %v208, %v207
    %v254 = vpack.c.b16 %v210, %v209
    %v255 = vpack.c.b16 %v212, %v211
    %v256 = vpack.c.b16 %v214, %v213
    %v257 = vpack.c.b16 %v216, %v215
    %v258 = vpack.c.b16 %v218, %v217
    %v259 = vpack.c.b16 %v220, %v219
    %v260 = vpack.c.b16 %v222, %v221
    %v261 = vpack.c.b16 %v224, %v223
    %v262 = vpack.c.b16 %v226, %v225
    %v263 = vpack.c.b16 %v228, %v227
    %v264 = vpack.c.b16 %v230, %v229
    %v265 = vpack.c.b16 %v232, %v231
    %v266 = vpack.c.b16 %v234, %v233
    %299 = vmatprep.subr.bf16.mxu0 0
    %300 = vmatpush1.bf16.msra.mxu0 %v242
    %301 = vmatprep.subr.bf16.mxu0 0
    %302 = vmatpush1.bf16.msra.mxu0 %v241
    %303 = vmatprep.subr.bf16.mxu0 0
    %304 = vmatpush1.bf16.msra.mxu0 %v240
    %305 = vmatprep.subr.bf16.mxu0 0
    %306 = vmatpush1.bf16.msra.mxu0 %v239
    %307 = vmatprep.subr.bf16.mxu0 0
    %308 = vmatpush1.bf16.msra.mxu0 %v238
    %309 = vmatprep.subr.bf16.mxu0 0
    %310 = vmatpush1.bf16.msra.mxu0 %v237
    %311 = vmatprep.subr.bf16.mxu0 0
    %312 = vmatpush1.bf16.msra.mxu0 %v236
    %313 = vmatprep.subr.bf16.mxu0 0
    %314 = vmatpush1.bf16.msra.mxu0 %v235
    %315 = vmatprep.subr.bf16.mxu0 0
    %316 = vmatpush2.bf16.msra.mxu0 %v250
    %317 = vmatprep.subr.bf16.mxu0 0
    %318 = vmatpush2.bf16.msra.mxu0 %v249
    %319 = vmatprep.subr.bf16.mxu0 0
    %320 = vmatpush2.bf16.msra.mxu0 %v248
    %321 = vmatprep.subr.bf16.mxu0 0
    %322 = vmatpush2.bf16.msra.mxu0 %v247
    %323 = vmatprep.subr.bf16.mxu0 0
    %324 = vmatpush2.bf16.msra.mxu0 %v246
    %325 = vmatprep.subr.bf16.mxu0 0
    %326 = vmatpush2.bf16.msra.mxu0 %v245
    %327 = vmatprep.subr.bf16.mxu0 0
    %328 = vmatpush2.bf16.msra.mxu0 %v244
    %329 = vmatprep.subr.bf16.mxu0 0
    %330 = vmatpush2.bf16.msra.mxu0 %v243
    %331 = vmatprep.mubr.bf16.mxu0 %v100
    %332 = vmatmul.mubr.bf16.gmra.mxu0 %v93
    %v333 = vpop.f32.mrf.mxu0
    %v334 = vadd.f32 0.0, %v333
    %v335 = vpop.f32.mrf.mxu0
    %v336 = vpop.f32.mrf.mxu0
    %v337 = vpop.f32.mrf.mxu0
    %338 = vdwg.mxu0
    %339 = vmatprep.subr.bf16.mxu0 0
    %340 = vmatpush1.bf16.msra.mxu0 %v258
    %341 = vmatprep.subr.bf16.mxu0 0
    %342 = vmatpush1.bf16.msra.mxu0 %v257
    %343 = vmatprep.subr.bf16.mxu0 0
    %344 = vmatpush1.bf16.msra.mxu0 %v256
    %345 = vmatprep.subr.bf16.mxu0 0
    %346 = vmatpush1.bf16.msra.mxu0 %v255
    %347 = vmatprep.subr.bf16.mxu0 0
    %348 = vmatpush1.bf16.msra.mxu0 %v254
    %349 = vmatprep.subr.bf16.mxu0 0
    %350 = vmatpush1.bf16.msra.mxu0 %v253
    %351 = vmatprep.subr.bf16.mxu0 0
    %352 = vmatpush1.bf16.msra.mxu0 %v252
    %353 = vmatprep.subr.bf16.mxu0 0
    %354 = vmatpush1.bf16.msra.mxu0 %v251
    %355 = vmatprep.subr.bf16.mxu0 0
    %356 = vmatpush2.bf16.msra.mxu0 %v266
    %357 = vmatprep.subr.bf16.mxu0 0
    %358 = vmatpush2.bf16.msra.mxu0 %v265
    %359 = vmatprep.subr.bf16.mxu0 0
    %360 = vmatpush2.bf16.msra.mxu0 %v264
    %361 = vmatprep.subr.bf16.mxu0 0
    %362 = vmatpush2.bf16.msra.mxu0 %v263
    %363 = vmatprep.subr.bf16.mxu0 0
    %364 = vmatpush2.bf16.msra.mxu0 %v262
    %365 = vmatprep.subr.bf16.mxu0 0
    %366 = vmatpush2.bf16.msra.mxu0 %v261
    %367 = vmatprep.subr.bf16.mxu0 0
    %368 = vmatpush2.bf16.msra.mxu0 %v260
    %369 = vmatprep.subr.bf16.mxu0 0
    %370 = vmatpush2.bf16.msra.mxu0 %v259
    %371 = vmatprep.mubr.bf16.mxu0 %v102
    %372 = vmatmul.mubr.bf16.gmra.mxu0 %v101
    %v373 = vpop.f32.mrf.mxu0
    %v374 = vadd.f32 %v334, %v373
    %v375 = vpop.f32.mrf.mxu0
    %v376 = vpop.f32.mrf.mxu0
    %v377 = vpop.f32.mrf.mxu0
    %378 = vdwg.mxu0
    %vm379 = vcmask 8192
    %v380 = vsel %vm379, %v374, 0.0
    %381 = vadd.xlane.f32.xlu0 %v380
    %v382 = vpop.xlane.xlu0 %381
    %v383 = vrcp.pop 2.0
    %v384 = vmul.f32 %v382, %v383
    %vm385 = vcmask 0
    %386 = vst.msk [vmem:[#allocation2] sm:$0x1] %vm385, %v384
    // Predicated region
    $region10: #{w_discriminator_forward.15} parent=1 // pred_check
      _
    $region11: #{w_discriminator_forward.15} parent=1 // pred_check_branch
      %388 = sbr.rel (0) target = $region13
    $region12: #{w_discriminator_forward.15} parent=1 // pred_region
      %s390 = ssub.s32 16, 16
      %391 = vsyncadd [#allocation3], %s390
      %s393 = sshll.u32 [#allocation2], 4
      %s394 = int_to_ptr.vmem [resolvable:$true] %s393
      %396 = dma.vmem_to_hbm [thread:$0]  %s394, 16, %s2, [#allocation3]
    $region13: #{w_discriminator_forward.15} parent=1 // pred_fallthru
      _
    // Predicated region
    $region14: #{w_discriminator_forward.15} parent=1 // pred_check
      _
    $region15: #{w_discriminator_forward.15} parent=1 // pred_check_branch
      %398 = sbr.rel (0) target = $region17
    $region16: #{w_discriminator_forward.15} parent=1 // pred_region
      %399 = dma.done [#allocation3], 16
    $region17: #{w_discriminator_forward.15} parent=1 // pred_fallthru
      _
    %400 = vsyncpa [#allocation3], 1

</llo_original>
